<compile_context>
chip_gen: v7x
topology: tpu7x:2x2x1
jax: 0.10.0
libtpu: 0.0.40
codegen_flags: <defaults>
</compile_context>

<pallas_src>
import math

import jax
import jax.numpy as jnp
from jax.experimental import pallas as pl
from jax.experimental.pallas import tpu as pltpu

# ---- small synthetic "bert-base" configuration (scaled down, lane-aligned) ----
B = 2          # batch
S = 16         # sequence length        (bert-base: 128)
H = 128        # hidden size            (bert-base: 768) -- lane-aligned
NH = 4         # attention heads        (bert-base: 12)
HD = H // NH   # head dim
I = 256        # intermediate FFN size  (bert-base: 3072)
NL = 2         # encoder layers         (bert-base: 12)
V = 100        # vocab size             (bert-base: 30522)
MAXPOS = 32    # max positions
NTYPES = 2     # token-type vocab
EPS = 1e-12    # BERT layernorm eps


# --------------------------------------------------------------------------
# in-kernel helpers (pure jnp, traced inside the Pallas kernel) -- f32 math
# --------------------------------------------------------------------------
def _layernorm(x, g, b):
    mu = jnp.mean(x, axis=-1, keepdims=True)
    var = jnp.mean((x - mu) ** 2, axis=-1, keepdims=True)
    return (x - mu) * jax.lax.rsqrt(var + EPS) * g + b


def _gelu(x):
    # tanh-approximate gelu (erf-gelu of HF BERT differs by <1e-3)
    c = math.sqrt(2.0 / math.pi)
    return 0.5 * x * (1.0 + jnp.tanh(c * (x + 0.044715 * x * x * x)))


def _bf16(x):
    return x.astype(jnp.bfloat16)


# --------------------------------------------------------------------------
# Fused kernel: grid = (NL,)  ("arbitrary" -> sequential, weights pipelined)
# --------------------------------------------------------------------------
def fused_bert_kernel(emb_ref, mask_ref, eg_ref, eb_ref,
                      wqkv_ref, bqkv_ref, wo_ref, bo_ref,
                      ln1g_ref, ln1b_ref,
                      w1_ref, b1_ref, w2_ref, b2_ref,
                      ln2g_ref, ln2b_ref,
                      out_ref,
                      x_scr):
    l = pl.program_id(0)

    # ---- embedding layernorm once, result kept resident in VMEM scratch ----
    @pl.when(l == 0)
    def _():
        x_scr[...] = _layernorm(emb_ref[...], eg_ref[...], eb_ref[...])

    x = x_scr[...]                                  # (B*S, H) f32 token slab
    mask = mask_ref[...]                            # (B, S)  0/1 f32

    # ---- fused QKV projection on the full token slab (MXU, bf16 in / f32 acc) ----
    qkv = jnp.dot(_bf16(x), wqkv_ref[0],
                  preferred_element_type=jnp.float32) + bqkv_ref[0]   # (B*S, 3H)

    scale = 1.0 / math.sqrt(HD)
    ctx_rows = []
    # static loop over the (tiny) batch; at bert-base scale B / token-tiles would
    # go on a parallel grid axis instead.
    for b in range(B):
        r0, r1 = b * S, (b + 1) * S                 # sublane-aligned row slab
        q = pltpu.einshape("qhd->hqd", qkv[r0:r1, 0 * H:1 * H].reshape(S, NH, HD))
        k = pltpu.einshape("qhd->hqd", qkv[r0:r1, 1 * H:2 * H].reshape(S, NH, HD))
        v = pltpu.einshape("qhd->hqd", qkv[r0:r1, 2 * H:3 * H].reshape(S, NH, HD))

        mask_add = (1.0 - mask[b:b + 1, :]) * -1e9          # (1, S) additive key mask

        s = jnp.einsum("hqd,hkd->hqk", _bf16(q), _bf16(k),
                       preferred_element_type=jnp.float32) * scale    # (NH, S, S)
        s = s + mask_add[None, :, :]
        s = s - jnp.max(s, axis=-1, keepdims=True)
        p = jnp.exp(s)
        p = p * pl.reciprocal(jnp.sum(p, axis=-1, keepdims=True), approx=True)

        ctx = jnp.einsum("hqk,hkd->hqd", _bf16(p), _bf16(v),
                         preferred_element_type=jnp.float32)          # (NH, S, HD)
        ctx_rows.append(pltpu.einshape("hqd->qhd", ctx).reshape(S, H))
    ctx_all = jnp.concatenate(ctx_rows, axis=0)                       # (B*S, H)

    # ---- attention output projection + add & norm ----
    attn = jnp.dot(_bf16(ctx_all), wo_ref[0],
                   preferred_element_type=jnp.float32) + bo_ref[0]
    x1 = _layernorm(x + attn, ln1g_ref[0], ln1b_ref[0])

    # ---- FFN (full slab matmuls) + add & norm ----
    h = _gelu(jnp.dot(_bf16(x1), w1_ref[0],
                      preferred_element_type=jnp.float32) + b1_ref[0])
    ffn = jnp.dot(_bf16(h), w2_ref[0],
                  preferred_element_type=jnp.float32) + b2_ref[0]
    x2 = _layernorm(x1 + ffn, ln2g_ref[0], ln2b_ref[0])
    x_scr[...] = x2                                   # carry to next layer

    # ---- masked mean pooling (sentence_transformers Pooling default) ----
    @pl.when(l == NL - 1)
    def _():
        sums = jnp.concatenate(
            [jnp.dot(mask[b:b + 1, :], x2[b * S:(b + 1) * S, :],
                     preferred_element_type=jnp.float32) for b in range(B)],
            axis=0)                                                    # (B, H)
        cnt = jnp.maximum(jnp.sum(mask, axis=1, keepdims=True), 1e-9)  # (B, 1)
        out_ref[...] = sums * pl.reciprocal(cnt, approx=True)


# --------------------------------------------------------------------------
# pallas_call wrapper
# --------------------------------------------------------------------------
def _const_spec(arr):
    zeros = (0,) * arr.ndim
    return pl.BlockSpec(arr.shape, lambda l, _z=zeros: _z)


def _layer_spec(arr):
    tail = (0,) * (arr.ndim - 1)
    return pl.BlockSpec((1,) + arr.shape[1:], lambda l, _t=tail: (l,) + _t)


_WEIGHT_ORDER = ["wqkv", "bqkv", "wo", "bo", "ln1g", "ln1b",
                 "w1", "b1", "w2", "b2", "ln2g", "ln2b"]


def bert_for_sts_forward(params, input_ids, token_type_ids, attention_mask):
    # --- embeddings (table gather is plain-JAX glue) ---
    # TODO(synk): WordPiece tokenization / HF checkpoint loading has no Pallas
    #             equivalent; inputs are already token ids.
    Bx, Sx = input_ids.shape
    pos_ids = jnp.arange(Sx)
    emb = (params["word_emb"][input_ids]
           + params["pos_emb"][pos_ids][None, :, :]
           + params["type_emb"][token_type_ids])                   # (B, S, H) f32
    emb2d = emb.reshape(Bx * Sx, H).astype(jnp.float32)            # token-slab layout
    mask_f = attention_mask.astype(jnp.float32)                    # (B, S)

    wlist = [params[n] for n in _WEIGHT_ORDER]
    in_specs = ([_const_spec(emb2d), _const_spec(mask_f),
                 _const_spec(params["emb_ln_g"]), _const_spec(params["emb_ln_b"])]
                + [_layer_spec(a) for a in wlist])

    return pl.pallas_call(
        fused_bert_kernel,
        out_shape=jax.ShapeDtypeStruct((Bx, H), jnp.float32),
        grid_spec=pltpu.PrefetchScalarGridSpec(
            num_scalar_prefetch=0,
            grid=(NL,),
            in_specs=in_specs,
            out_specs=pl.BlockSpec((Bx, H), lambda l: (0, 0)),
            scratch_shapes=[pltpu.VMEM((Bx * Sx, H), jnp.float32)]),
        compiler_params=pltpu.CompilerParams(
            dimension_semantics=("arbitrary",)),
    )(emb2d, mask_f, params["emb_ln_g"], params["emb_ln_b"], *wlist)


# --------------------------------------------------------------------------
# pure-JAX reference (same params, f32 math) -- correctness oracle only
# --------------------------------------------------------------------------
def reference_forward(params, input_ids, token_type_ids, attention_mask):
    Bx, Sx = input_ids.shape
    pos_ids = jnp.arange(Sx)
    emb = (params["word_emb"][input_ids]
           + params["pos_emb"][pos_ids][None, :, :]
           + params["type_emb"][token_type_ids]).astype(jnp.float32)
    x = _layernorm(emb, params["emb_ln_g"], params["emb_ln_b"])     # (B, S, H)
    mask = attention_mask.astype(jnp.float32)                       # (B, S)
    scale = 1.0 / math.sqrt(HD)
    for l in range(NL):
        wqkv = params["wqkv"][l].astype(jnp.float32)
        qkv = jnp.einsum("bsh,hk->bsk", x, wqkv) + params["bqkv"][l]
        q = qkv[..., 0 * H:1 * H].reshape(Bx, Sx, NH, HD).transpose(0, 2, 1, 3)
        k = qkv[..., 1 * H:2 * H].reshape(Bx, Sx, NH, HD).transpose(0, 2, 1, 3)
        v = qkv[..., 2 * H:3 * H].reshape(Bx, Sx, NH, HD).transpose(0, 2, 1, 3)
        s = jnp.einsum("bhqd,bhkd->bhqk", q, k) * scale
        s = s + ((1.0 - mask)[:, None, None, :] * -1e9)
        p = jax.nn.softmax(s, axis=-1)
        ctx = jnp.einsum("bhqk,bhkd->bhqd", p, v).transpose(0, 2, 1, 3).reshape(Bx, Sx, H)
        attn = ctx @ params["wo"][l].astype(jnp.float32) + params["bo"][l]
        x = _layernorm(x + attn, params["ln1g"][l], params["ln1b"][l])
        h = _gelu(x @ params["w1"][l].astype(jnp.float32) + params["b1"][l])
        ffn = h @ params["w2"][l].astype(jnp.float32) + params["b2"][l]
        x = _layernorm(x + ffn, params["ln2g"][l], params["ln2b"][l])
    sums = jnp.sum(x * mask[..., None], axis=1)                     # (B, H)
    cnt = jnp.clip(jnp.sum(mask, axis=1, keepdims=True), 1e-9, None)
    return sums / cnt


# --------------------------------------------------------------------------
# parameters (layer weights stacked along a leading NL axis; matmul weights bf16)
# --------------------------------------------------------------------------
def init_params(key):
    kit = iter(jax.random.split(key, 16))

    def w(shape, dtype=jnp.float32):
        return (0.02 * jax.random.normal(next(kit), shape)).astype(dtype)

    return {
        "word_emb": w((V, H)),
        "pos_emb": w((MAXPOS, H)),
        "type_emb": w((NTYPES, H)),
        "emb_ln_g": jnp.ones((1, H), jnp.float32),
        "emb_ln_b": jnp.zeros((1, H), jnp.float32),
        # stacked per-layer weights: [NL, ...]
        "wqkv": w((NL, H, 3 * H), jnp.bfloat16),
        "bqkv": jnp.zeros((NL, 1, 3 * H), jnp.float32),
        "wo":   w((NL, H, H), jnp.bfloat16),
        "bo":   jnp.zeros((NL, 1, H), jnp.float32),
        "ln1g": jnp.ones((NL, 1, H), jnp.float32),
        "ln1b": jnp.zeros((NL, 1, H), jnp.float32),
        "w1":   w((NL, H, I), jnp.bfloat16),
        "b1":   jnp.zeros((NL, 1, I), jnp.float32),
        "w2":   w((NL, I, H), jnp.bfloat16),
        "b2":   jnp.zeros((NL, 1, H), jnp.float32),
        "ln2g": jnp.ones((NL, 1, H), jnp.float32),
        "ln2b": jnp.zeros((NL, 1, H), jnp.float32),
    }


if __name__ == "__main__":
    key = jax.random.PRNGKey(0)
    pkey, ikey = jax.random.split(key)
    params = init_params(pkey)

    input_ids = jax.random.randint(ikey, (B, S), 0, V, dtype=jnp.int32)
    token_type_ids = jnp.zeros((B, S), jnp.int32)
    # second example has 3 padding tokens at the end
    attention_mask = jnp.array([[1] * S,
                                [1] * (S - 3) + [0] * 3], dtype=jnp.int32)

    fwd = jax.jit(bert_for_sts_forward)
    out = jax.block_until_ready(fwd(params, input_ids, token_type_ids, attention_mask))

    assert out.shape == (B, H) and out.dtype == jnp.float32
    assert bool(jnp.all(jnp.isfinite(out)))

    # loose tolerance: kernel uses bf16 MXU inputs + approx reciprocals
    ref = reference_forward(params, input_ids, token_type_ids, attention_mask)
    max_diff = float(jnp.max(jnp.abs(out - ref)))
    assert max_diff < 0.1, f"kernel/reference mismatch: max|diff|={max_diff}"

    print("KERNEL_OK")
</pallas_src>

<mosaic_0001>
module attributes {stable_mosaic.version = 11 : i64} {
  func.func @fused_bert_kernel(%arg0: i32, %arg1: memref<32x128xf32, #tpu.memory_space<vmem>>, %arg2: memref<2x16xf32, #tpu.memory_space<vmem>>, %arg3: memref<1x128xf32, #tpu.memory_space<vmem>>, %arg4: memref<1x128xf32, #tpu.memory_space<vmem>>, %arg5: memref<1x128x384xbf16, #tpu.memory_space<vmem>>, %arg6: memref<1x1x384xf32, #tpu.memory_space<vmem>>, %arg7: memref<1x128x128xbf16, #tpu.memory_space<vmem>>, %arg8: memref<1x1x128xf32, #tpu.memory_space<vmem>>, %arg9: memref<1x1x128xf32, #tpu.memory_space<vmem>>, %arg10: memref<1x1x128xf32, #tpu.memory_space<vmem>>, %arg11: memref<1x128x256xbf16, #tpu.memory_space<vmem>>, %arg12: memref<1x1x256xf32, #tpu.memory_space<vmem>>, %arg13: memref<1x256x128xbf16, #tpu.memory_space<vmem>>, %arg14: memref<1x1x128xf32, #tpu.memory_space<vmem>>, %arg15: memref<1x1x128xf32, #tpu.memory_space<vmem>>, %arg16: memref<1x1x128xf32, #tpu.memory_space<vmem>>, %arg17: memref<2x128xf32, #tpu.memory_space<vmem>>, %arg18: memref<32x128xf32, #tpu.memory_space<vmem>>) attributes {dimension_semantics = [#tpu.dimension_semantics<arbitrary>], iteration_bounds = array<i64: 2>, scalar_prefetch = 0 : i64, scratch_operands = 1 : i64, tpu.core_type = #tpu.core_type<tc>, window_params = [{pipeline_mode = #tpu.pipeline_mode<synchronous>, transform_indices = @transform_0, window_bounds = array<i64: 32, 128>}, {pipeline_mode = #tpu.pipeline_mode<synchronous>, transform_indices = @transform_1, window_bounds = array<i64: 2, 16>}, {pipeline_mode = #tpu.pipeline_mode<synchronous>, transform_indices = @transform_2, window_bounds = array<i64: 1, 128>}, {pipeline_mode = #tpu.pipeline_mode<synchronous>, transform_indices = @transform_3, window_bounds = array<i64: 1, 128>}, {transform_indices = @transform_4, window_bounds = array<i64: 1, 128, 384>}, {transform_indices = @transform_5, window_bounds = array<i64: 1, 1, 384>}, {transform_indices = @transform_6, window_bounds = array<i64: 1, 128, 128>}, {transform_indices = @transform_7, window_bounds = array<i64: 1, 1, 128>}, {transform_indices = @transform_8, window_bounds = array<i64: 1, 1, 128>}, {transform_indices = @transform_9, window_bounds = array<i64: 1, 1, 128>}, {transform_indices = @transform_10, window_bounds = array<i64: 1, 128, 256>}, {transform_indices = @transform_11, window_bounds = array<i64: 1, 1, 256>}, {transform_indices = @transform_12, window_bounds = array<i64: 1, 256, 128>}, {transform_indices = @transform_13, window_bounds = array<i64: 1, 1, 128>}, {transform_indices = @transform_14, window_bounds = array<i64: 1, 1, 128>}, {transform_indices = @transform_15, window_bounds = array<i64: 1, 1, 128>}, {pipeline_mode = #tpu.pipeline_mode<synchronous>, transform_indices = @transform_16, window_bounds = array<i64: 2, 128>}]} {
    %c0_i32 = arith.constant 0 : i32
    %0 = arith.cmpi eq, %arg0, %c0_i32 : i32
    %1 = arith.extui %0 : i1 to i32
    %c0_i32_0 = arith.constant 0 : i32
    %2 = arith.cmpi ne, %1, %c0_i32_0 : i32
    scf.if %2 {
      %c0_74 = arith.constant 0 : index
      %c0_75 = arith.constant 0 : index
      %183 = vector.load %arg1[%c0_74, %c0_75] : memref<32x128xf32, #tpu.memory_space<vmem>>, vector<32x128xf32>
      %c0_76 = arith.constant 0 : index
      %c0_77 = arith.constant 0 : index
      %184 = vector.load %arg3[%c0_76, %c0_77] : memref<1x128xf32, #tpu.memory_space<vmem>>, vector<1x128xf32>
      %c0_78 = arith.constant 0 : index
      %c0_79 = arith.constant 0 : index
      %185 = vector.load %arg4[%c0_78, %c0_79] : memref<1x128xf32, #tpu.memory_space<vmem>>, vector<1x128xf32>
      %cst_80 = arith.constant dense<0.000000e+00> : vector<32xf32>
      %186 = vector.multi_reduction <add>, %183, %cst_80 [1] : vector<32x128xf32> to vector<32xf32>
      %187 = vector.shape_cast %186 : vector<32xf32> to vector<32x1xf32>
      %cst_81 = arith.constant 1.280000e+02 : f32
      %188 = vector.broadcast %cst_81 : f32 to vector<32x1xf32>
      %189 = arith.divf %187, %188 : vector<32x1xf32>
      %190 = vector.broadcast %189 : vector<32x1xf32> to vector<32x128xf32>
      %191 = arith.subf %183, %190 : vector<32x128xf32>
      %192 = arith.mulf %191, %191 : vector<32x128xf32>
      %cst_82 = arith.constant dense<0.000000e+00> : vector<32xf32>
      %193 = vector.multi_reduction <add>, %192, %cst_82 [1] : vector<32x128xf32> to vector<32xf32>
      %194 = vector.shape_cast %193 : vector<32xf32> to vector<32x1xf32>
      %cst_83 = arith.constant 1.280000e+02 : f32
      %195 = vector.broadcast %cst_83 : f32 to vector<32x1xf32>
      %196 = arith.divf %194, %195 : vector<32x1xf32>
      %197 = vector.broadcast %189 : vector<32x1xf32> to vector<32x128xf32>
      %198 = arith.subf %183, %197 : vector<32x128xf32>
      %cst_84 = arith.constant 9.99999996E-13 : f32
      %199 = vector.broadcast %cst_84 : f32 to vector<32x1xf32>
      %200 = arith.addf %196, %199 : vector<32x1xf32>
      %201 = math.rsqrt %200 : vector<32x1xf32>
      %202 = vector.broadcast %201 : vector<32x1xf32> to vector<32x128xf32>
      %203 = arith.mulf %198, %202 : vector<32x128xf32>
      %204 = vector.broadcast %184 : vector<1x128xf32> to vector<32x128xf32>
      %205 = arith.mulf %203, %204 : vector<32x128xf32>
      %206 = vector.broadcast %185 : vector<1x128xf32> to vector<32x128xf32>
      %207 = arith.addf %205, %206 : vector<32x128xf32>
      %c0_85 = arith.constant 0 : index
      %c0_86 = arith.constant 0 : index
      %208 = vector.load %arg18[%c0_85, %c0_86] : memref<32x128xf32, #tpu.memory_space<vmem>>, vector<32x128xf32>
      tpu.vector_store %arg18[%c0_85, %c0_86], %207 {strides = array<i32>} : memref<32x128xf32, #tpu.memory_space<vmem>>, vector<32x128xf32>,
    } else {
    }
    %c0 = arith.constant 0 : index
    %c0_1 = arith.constant 0 : index
    %3 = vector.load %arg18[%c0, %c0_1] : memref<32x128xf32, #tpu.memory_space<vmem>>, vector<32x128xf32>
    %c0_2 = arith.constant 0 : index
    %c0_3 = arith.constant 0 : index
    %4 = vector.load %arg2[%c0_2, %c0_3] : memref<2x16xf32, #tpu.memory_space<vmem>>, vector<2x16xf32>
    %5 = arith.truncf %3 : vector<32x128xf32> to vector<32x128xbf16>
    %c0_4 = arith.constant 0 : index
    %c0_5 = arith.constant 0 : index
    %c0_6 = arith.constant 0 : index
    %6 = vector.load %arg5[%c0_4, %c0_5, %c0_6] : memref<1x128x384xbf16, #tpu.memory_space<vmem>>, vector<1x128x384xbf16>
    %7 = vector.shape_cast %6 : vector<1x128x384xbf16> to vector<128x384xbf16>
    %cst = arith.constant dense<0.000000e+00> : vector<32x384xf32>
    %8 = tpu.matmul %5, %7, %cst {dimension_numbers = #tpu.dot_dimension_numbers<[1], [0], [0], [1], [0, 0, 1, 1], [], []>} : vector<32x128xbf16>, vector<128x384xbf16>, vector<32x384xf32> -> vector<32x384xf32>
    %c0_7 = arith.constant 0 : index
    %c0_8 = arith.constant 0 : index
    %c0_9 = arith.constant 0 : index
    %9 = vector.load %arg6[%c0_7, %c0_8, %c0_9] : memref<1x1x384xf32, #tpu.memory_space<vmem>>, vector<1x1x384xf32>
    %10 = vector.shape_cast %9 : vector<1x1x384xf32> to vector<1x384xf32>
    %11 = vector.broadcast %10 : vector<1x384xf32> to vector<32x384xf32>
    %12 = arith.addf %8, %11 : vector<32x384xf32>
    %13 = vector.extract_strided_slice %12 {offsets = [0, 0], sizes = [16, 128], strides = [1, 1]} : vector<32x384xf32> to vector<16x128xf32>
    %14 = vector.shape_cast %13 : vector<16x128xf32> to vector<16x4x32xf32>
    %15 = tpu.transpose %14, [1, 0, 2] : vector<16x4x32xf32> -> vector<4x16x32xf32>
    %16 = vector.extract_strided_slice %12 {offsets = [0, 128], sizes = [16, 128], strides = [1, 1]} : vector<32x384xf32> to vector<16x128xf32>
    %17 = vector.shape_cast %16 : vector<16x128xf32> to vector<16x4x32xf32>
    %18 = tpu.transpose %17, [1, 0, 2] : vector<16x4x32xf32> -> vector<4x16x32xf32>
    %19 = vector.extract_strided_slice %12 {offsets = [0, 256], sizes = [16, 128], strides = [1, 1]} : vector<32x384xf32> to vector<16x128xf32>
    %20 = vector.shape_cast %19 : vector<16x128xf32> to vector<16x4x32xf32>
    %21 = tpu.transpose %20, [1, 0, 2] : vector<16x4x32xf32> -> vector<4x16x32xf32>
    %22 = vector.extract_strided_slice %4 {offsets = [0, 0], sizes = [1, 16], strides = [1, 1]} : vector<2x16xf32> to vector<1x16xf32>
    %cst_10 = arith.constant 1.000000e+00 : f32
    %23 = vector.broadcast %cst_10 : f32 to vector<1x16xf32>
    %24 = arith.subf %23, %22 : vector<1x16xf32>
    %cst_11 = arith.constant -1.000000e+09 : f32
    %25 = vector.broadcast %cst_11 : f32 to vector<1x16xf32>
    %26 = arith.mulf %24, %25 : vector<1x16xf32>
    %27 = arith.truncf %15 : vector<4x16x32xf32> to vector<4x16x32xbf16>
    %28 = arith.truncf %18 : vector<4x16x32xf32> to vector<4x16x32xbf16>
    "tpu.trace_start"() <{level = 10 : i32, message = "hqd,hkd->hqk"}> : () -> ()
    %cst_12 = arith.constant dense<0.000000e+00> : vector<4x16x16xf32>
    %29 = tpu.matmul %27, %28, %cst_12 {dimension_numbers = #tpu.dot_dimension_numbers<[2], [2], [1], [1], [0, 0, 0, 1, 1, 1], [0], [0]>} : vector<4x16x32xbf16>, vector<4x16x32xbf16>, vector<4x16x16xf32> -> vector<4x16x16xf32>
    "tpu.trace_stop"() : () -> ()
    %cst_13 = arith.constant 0.176776692 : f32
    %30 = vector.broadcast %cst_13 : f32 to vector<4x16x16xf32>
    %31 = arith.mulf %29, %30 : vector<4x16x16xf32>
    %32 = vector.shape_cast %26 : vector<1x16xf32> to vector<1x1x16xf32>
    %33 = vector.broadcast %32 : vector<1x1x16xf32> to vector<4x16x16xf32>
    %34 = arith.addf %31, %33 : vector<4x16x16xf32>
    %cst_14 = arith.constant dense<0xFF800000> : vector<4x16xf32>
    %35 = vector.multi_reduction <maximumf>, %34, %cst_14 [2] : vector<4x16x16xf32> to vector<4x16xf32>
    %36 = vector.shape_cast %35 : vector<4x16xf32> to vector<4x16x1xf32>
    %37 = vector.broadcast %36 : vector<4x16x1xf32> to vector<4x16x16xf32>
    %38 = arith.subf %34, %37 : vector<4x16x16xf32>
    %39 = math.exp %38 : vector<4x16x16xf32>
    %cst_15 = arith.constant dense<0.000000e+00> : vector<4x16xf32>
    %40 = vector.multi_reduction <add>, %39, %cst_15 [2] : vector<4x16x16xf32> to vector<4x16xf32>
    %41 = vector.shape_cast %40 : vector<4x16xf32> to vector<4x16x1xf32>
    %42 = tpu.reciprocal %41 {approx = true} : vector<4x16x1xf32> -> vector<4x16x1xf32>
    %43 = vector.broadcast %42 : vector<4x16x1xf32> to vector<4x16x16xf32>
    %44 = arith.mulf %39, %43 : vector<4x16x16xf32>
    %45 = arith.truncf %44 : vector<4x16x16xf32> to vector<4x16x16xbf16>
    %46 = arith.truncf %21 : vector<4x16x32xf32> to vector<4x16x32xbf16>
    "tpu.trace_start"() <{level = 10 : i32, message = "hqk,hkd->hqd"}> : () -> ()
    %cst_16 = arith.constant dense<0.000000e+00> : vector<4x16x32xf32>
    %47 = tpu.matmul %45, %46, %cst_16 {dimension_numbers = #tpu.dot_dimension_numbers<[2], [1], [1], [2], [0, 0, 0, 1, 1, 2], [0], [0]>} : vector<4x16x16xbf16>, vector<4x16x32xbf16>, vector<4x16x32xf32> -> vector<4x16x32xf32>
    "tpu.trace_stop"() : () -> ()
    %48 = tpu.transpose %47, [1, 0, 2] : vector<4x16x32xf32> -> vector<16x4x32xf32>
    %49 = vector.shape_cast %48 : vector<16x4x32xf32> to vector<16x128xf32>
    %50 = vector.extract_strided_slice %12 {offsets = [16, 0], sizes = [16, 128], strides = [1, 1]} : vector<32x384xf32> to vector<16x128xf32>
    %51 = vector.shape_cast %50 : vector<16x128xf32> to vector<16x4x32xf32>
    %52 = tpu.transpose %51, [1, 0, 2] : vector<16x4x32xf32> -> vector<4x16x32xf32>
    %53 = vector.extract_strided_slice %12 {offsets = [16, 128], sizes = [16, 128], strides = [1, 1]} : vector<32x384xf32> to vector<16x128xf32>
    %54 = vector.shape_cast %53 : vector<16x128xf32> to vector<16x4x32xf32>
    %55 = tpu.transpose %54, [1, 0, 2] : vector<16x4x32xf32> -> vector<4x16x32xf32>
    %56 = vector.extract_strided_slice %12 {offsets = [16, 256], sizes = [16, 128], strides = [1, 1]} : vector<32x384xf32> to vector<16x128xf32>
    %57 = vector.shape_cast %56 : vector<16x128xf32> to vector<16x4x32xf32>
    %58 = tpu.transpose %57, [1, 0, 2] : vector<16x4x32xf32> -> vector<4x16x32xf32>
    %59 = vector.extract_strided_slice %4 {offsets = [1, 0], sizes = [1, 16], strides = [1, 1]} : vector<2x16xf32> to vector<1x16xf32>
    %cst_17 = arith.constant 1.000000e+00 : f32
    %60 = vector.broadcast %cst_17 : f32 to vector<1x16xf32>
    %61 = arith.subf %60, %59 : vector<1x16xf32>
    %cst_18 = arith.constant -1.000000e+09 : f32
    %62 = vector.broadcast %cst_18 : f32 to vector<1x16xf32>
    %63 = arith.mulf %61, %62 : vector<1x16xf32>
    %64 = arith.truncf %52 : vector<4x16x32xf32> to vector<4x16x32xbf16>
    %65 = arith.truncf %55 : vector<4x16x32xf32> to vector<4x16x32xbf16>
    "tpu.trace_start"() <{level = 10 : i32, message = "hqd,hkd->hqk"}> : () -> ()
    %cst_19 = arith.constant dense<0.000000e+00> : vector<4x16x16xf32>
    %66 = tpu.matmul %64, %65, %cst_19 {dimension_numbers = #tpu.dot_dimension_numbers<[2], [2], [1], [1], [0, 0, 0, 1, 1, 1], [0], [0]>} : vector<4x16x32xbf16>, vector<4x16x32xbf16>, vector<4x16x16xf32> -> vector<4x16x16xf32>
    "tpu.trace_stop"() : () -> ()
    %cst_20 = arith.constant 0.176776692 : f32
    %67 = vector.broadcast %cst_20 : f32 to vector<4x16x16xf32>
    %68 = arith.mulf %66, %67 : vector<4x16x16xf32>
    %69 = vector.shape_cast %63 : vector<1x16xf32> to vector<1x1x16xf32>
    %70 = vector.broadcast %69 : vector<1x1x16xf32> to vector<4x16x16xf32>
    %71 = arith.addf %68, %70 : vector<4x16x16xf32>
    %cst_21 = arith.constant dense<0xFF800000> : vector<4x16xf32>
    %72 = vector.multi_reduction <maximumf>, %71, %cst_21 [2] : vector<4x16x16xf32> to vector<4x16xf32>
    %73 = vector.shape_cast %72 : vector<4x16xf32> to vector<4x16x1xf32>
    %74 = vector.broadcast %73 : vector<4x16x1xf32> to vector<4x16x16xf32>
    %75 = arith.subf %71, %74 : vector<4x16x16xf32>
    %76 = math.exp %75 : vector<4x16x16xf32>
    %cst_22 = arith.constant dense<0.000000e+00> : vector<4x16xf32>
    %77 = vector.multi_reduction <add>, %76, %cst_22 [2] : vector<4x16x16xf32> to vector<4x16xf32>
    %78 = vector.shape_cast %77 : vector<4x16xf32> to vector<4x16x1xf32>
    %79 = tpu.reciprocal %78 {approx = true} : vector<4x16x1xf32> -> vector<4x16x1xf32>
    %80 = vector.broadcast %79 : vector<4x16x1xf32> to vector<4x16x16xf32>
    %81 = arith.mulf %76, %80 : vector<4x16x16xf32>
    %82 = arith.truncf %81 : vector<4x16x16xf32> to vector<4x16x16xbf16>
    %83 = arith.truncf %58 : vector<4x16x32xf32> to vector<4x16x32xbf16>
    "tpu.trace_start"() <{level = 10 : i32, message = "hqk,hkd->hqd"}> : () -> ()
    %cst_23 = arith.constant dense<0.000000e+00> : vector<4x16x32xf32>
    %84 = tpu.matmul %82, %83, %cst_23 {dimension_numbers = #tpu.dot_dimension_numbers<[2], [1], [1], [2], [0, 0, 0, 1, 1, 2], [0], [0]>} : vector<4x16x16xbf16>, vector<4x16x32xbf16>, vector<4x16x32xf32> -> vector<4x16x32xf32>
    "tpu.trace_stop"() : () -> ()
    %85 = tpu.transpose %84, [1, 0, 2] : vector<4x16x32xf32> -> vector<16x4x32xf32>
    %86 = vector.shape_cast %85 : vector<16x4x32xf32> to vector<16x128xf32>
    %87 = tpu.concatenate %49, %86 in 0 : vector<16x128xf32>, vector<16x128xf32> -> vector<32x128xf32>
    %88 = arith.truncf %87 : vector<32x128xf32> to vector<32x128xbf16>
    %c0_24 = arith.constant 0 : index
    %c0_25 = arith.constant 0 : index
    %c0_26 = arith.constant 0 : index
    %89 = vector.load %arg7[%c0_24, %c0_25, %c0_26] : memref<1x128x128xbf16, #tpu.memory_space<vmem>>, vector<1x128x128xbf16>
    %90 = vector.shape_cast %89 : vector<1x128x128xbf16> to vector<128x128xbf16>
    %cst_27 = arith.constant dense<0.000000e+00> : vector<32x128xf32>
    %91 = tpu.matmul %88, %90, %cst_27 {dimension_numbers = #tpu.dot_dimension_numbers<[1], [0], [0], [1], [0, 0, 1, 1], [], []>} : vector<32x128xbf16>, vector<128x128xbf16>, vector<32x128xf32> -> vector<32x128xf32>
    %c0_28 = arith.constant 0 : index
    %c0_29 = arith.constant 0 : index
    %c0_30 = arith.constant 0 : index
    %92 = vector.load %arg8[%c0_28, %c0_29, %c0_30] : memref<1x1x128xf32, #tpu.memory_space<vmem>>, vector<1x1x128xf32>
    %93 = vector.shape_cast %92 : vector<1x1x128xf32> to vector<1x128xf32>
    %94 = vector.broadcast %93 : vector<1x128xf32> to vector<32x128xf32>
    %95 = arith.addf %91, %94 : vector<32x128xf32>
    %96 = arith.addf %3, %95 : vector<32x128xf32>
    %c0_31 = arith.constant 0 : index
    %c0_32 = arith.constant 0 : index
    %c0_33 = arith.constant 0 : index
    %97 = vector.load %arg9[%c0_31, %c0_32, %c0_33] : memref<1x1x128xf32, #tpu.memory_space<vmem>>, vector<1x1x128xf32>
    %98 = vector.shape_cast %97 : vector<1x1x128xf32> to vector<1x128xf32>
    %c0_34 = arith.constant 0 : index
    %c0_35 = arith.constant 0 : index
    %c0_36 = arith.constant 0 : index
    %99 = vector.load %arg10[%c0_34, %c0_35, %c0_36] : memref<1x1x128xf32, #tpu.memory_space<vmem>>, vector<1x1x128xf32>
    %100 = vector.shape_cast %99 : vector<1x1x128xf32> to vector<1x128xf32>
    %cst_37 = arith.constant dense<0.000000e+00> : vector<32xf32>
    %101 = vector.multi_reduction <add>, %96, %cst_37 [1] : vector<32x128xf32> to vector<32xf32>
    %102 = vector.shape_cast %101 : vector<32xf32> to vector<32x1xf32>
    %cst_38 = arith.constant 1.280000e+02 : f32
    %103 = vector.broadcast %cst_38 : f32 to vector<32x1xf32>
    %104 = arith.divf %102, %103 : vector<32x1xf32>
    %105 = vector.broadcast %104 : vector<32x1xf32> to vector<32x128xf32>
    %106 = arith.subf %96, %105 : vector<32x128xf32>
    %107 = arith.mulf %106, %106 : vector<32x128xf32>
    %cst_39 = arith.constant dense<0.000000e+00> : vector<32xf32>
    %108 = vector.multi_reduction <add>, %107, %cst_39 [1] : vector<32x128xf32> to vector<32xf32>
    %109 = vector.shape_cast %108 : vector<32xf32> to vector<32x1xf32>
    %cst_40 = arith.constant 1.280000e+02 : f32
    %110 = vector.broadcast %cst_40 : f32 to vector<32x1xf32>
    %111 = arith.divf %109, %110 : vector<32x1xf32>
    %112 = vector.broadcast %104 : vector<32x1xf32> to vector<32x128xf32>
    %113 = arith.subf %96, %112 : vector<32x128xf32>
    %cst_41 = arith.constant 9.99999996E-13 : f32
    %114 = vector.broadcast %cst_41 : f32 to vector<32x1xf32>
    %115 = arith.addf %111, %114 : vector<32x1xf32>
    %116 = math.rsqrt %115 : vector<32x1xf32>
    %117 = vector.broadcast %116 : vector<32x1xf32> to vector<32x128xf32>
    %118 = arith.mulf %113, %117 : vector<32x128xf32>
    %119 = vector.broadcast %98 : vector<1x128xf32> to vector<32x128xf32>
    %120 = arith.mulf %118, %119 : vector<32x128xf32>
    %121 = vector.broadcast %100 : vector<1x128xf32> to vector<32x128xf32>
    %122 = arith.addf %120, %121 : vector<32x128xf32>
    %123 = arith.truncf %122 : vector<32x128xf32> to vector<32x128xbf16>
    %c0_42 = arith.constant 0 : index
    %c0_43 = arith.constant 0 : index
    %c0_44 = arith.constant 0 : index
    %124 = vector.load %arg11[%c0_42, %c0_43, %c0_44] : memref<1x128x256xbf16, #tpu.memory_space<vmem>>, vector<1x128x256xbf16>
    %125 = vector.shape_cast %124 : vector<1x128x256xbf16> to vector<128x256xbf16>
    %cst_45 = arith.constant dense<0.000000e+00> : vector<32x256xf32>
    %126 = tpu.matmul %123, %125, %cst_45 {dimension_numbers = #tpu.dot_dimension_numbers<[1], [0], [0], [1], [0, 0, 1, 1], [], []>} : vector<32x128xbf16>, vector<128x256xbf16>, vector<32x256xf32> -> vector<32x256xf32>
    %c0_46 = arith.constant 0 : index
    %c0_47 = arith.constant 0 : index
    %c0_48 = arith.constant 0 : index
    %127 = vector.load %arg12[%c0_46, %c0_47, %c0_48] : memref<1x1x256xf32, #tpu.memory_space<vmem>>, vector<1x1x256xf32>
    %128 = vector.shape_cast %127 : vector<1x1x256xf32> to vector<1x256xf32>
    %129 = vector.broadcast %128 : vector<1x256xf32> to vector<32x256xf32>
    %130 = arith.addf %126, %129 : vector<32x256xf32>
    %cst_49 = arith.constant 5.000000e-01 : f32
    %131 = vector.broadcast %cst_49 : f32 to vector<32x256xf32>
    %132 = arith.mulf %131, %130 : vector<32x256xf32>
    %cst_50 = arith.constant 4.471500e-02 : f32
    %133 = vector.broadcast %cst_50 : f32 to vector<32x256xf32>
    %134 = arith.mulf %133, %130 : vector<32x256xf32>
    %135 = arith.mulf %134, %130 : vector<32x256xf32>
    %136 = arith.mulf %135, %130 : vector<32x256xf32>
    %137 = arith.addf %130, %136 : vector<32x256xf32>
    %cst_51 = arith.constant 0.797884583 : f32
    %138 = vector.broadcast %cst_51 : f32 to vector<32x256xf32>
    %139 = arith.mulf %138, %137 : vector<32x256xf32>
    %140 = math.tanh %139 : vector<32x256xf32>
    %cst_52 = arith.constant 1.000000e+00 : f32
    %141 = vector.broadcast %cst_52 : f32 to vector<32x256xf32>
    %142 = arith.addf %141, %140 : vector<32x256xf32>
    %143 = arith.mulf %132, %142 : vector<32x256xf32>
    %144 = arith.truncf %143 : vector<32x256xf32> to vector<32x256xbf16>
    %c0_53 = arith.constant 0 : index
    %c0_54 = arith.constant 0 : index
    %c0_55 = arith.constant 0 : index
    %145 = vector.load %arg13[%c0_53, %c0_54, %c0_55] : memref<1x256x128xbf16, #tpu.memory_space<vmem>>, vector<1x256x128xbf16>
    %146 = vector.shape_cast %145 : vector<1x256x128xbf16> to vector<256x128xbf16>
    %cst_56 = arith.constant dense<0.000000e+00> : vector<32x128xf32>
    %147 = tpu.matmul %144, %146, %cst_56 {dimension_numbers = #tpu.dot_dimension_numbers<[1], [0], [0], [1], [0, 0, 1, 1], [], []>} : vector<32x256xbf16>, vector<256x128xbf16>, vector<32x128xf32> -> vector<32x128xf32>
    %c0_57 = arith.constant 0 : index
    %c0_58 = arith.constant 0 : index
    %c0_59 = arith.constant 0 : index
    %148 = vector.load %arg14[%c0_57, %c0_58, %c0_59] : memref<1x1x128xf32, #tpu.memory_space<vmem>>, vector<1x1x128xf32>
    %149 = vector.shape_cast %148 : vector<1x1x128xf32> to vector<1x128xf32>
    %150 = vector.broadcast %149 : vector<1x128xf32> to vector<32x128xf32>
    %151 = arith.addf %147, %150 : vector<32x128xf32>
    %152 = arith.addf %122, %151 : vector<32x128xf32>
    %c0_60 = arith.constant 0 : index
    %c0_61 = arith.constant 0 : index
    %c0_62 = arith.constant 0 : index
    %153 = vector.load %arg15[%c0_60, %c0_61, %c0_62] : memref<1x1x128xf32, #tpu.memory_space<vmem>>, vector<1x1x128xf32>
    %154 = vector.shape_cast %153 : vector<1x1x128xf32> to vector<1x128xf32>
    %c0_63 = arith.constant 0 : index
    %c0_64 = arith.constant 0 : index
    %c0_65 = arith.constant 0 : index
    %155 = vector.load %arg16[%c0_63, %c0_64, %c0_65] : memref<1x1x128xf32, #tpu.memory_space<vmem>>, vector<1x1x128xf32>
    %156 = vector.shape_cast %155 : vector<1x1x128xf32> to vector<1x128xf32>
    %cst_66 = arith.constant dense<0.000000e+00> : vector<32xf32>
    %157 = vector.multi_reduction <add>, %152, %cst_66 [1] : vector<32x128xf32> to vector<32xf32>
    %158 = vector.shape_cast %157 : vector<32xf32> to vector<32x1xf32>
    %cst_67 = arith.constant 1.280000e+02 : f32
    %159 = vector.broadcast %cst_67 : f32 to vector<32x1xf32>
    %160 = arith.divf %158, %159 : vector<32x1xf32>
    %161 = vector.broadcast %160 : vector<32x1xf32> to vector<32x128xf32>
    %162 = arith.subf %152, %161 : vector<32x128xf32>
    %163 = arith.mulf %162, %162 : vector<32x128xf32>
    %cst_68 = arith.constant dense<0.000000e+00> : vector<32xf32>
    %164 = vector.multi_reduction <add>, %163, %cst_68 [1] : vector<32x128xf32> to vector<32xf32>
    %165 = vector.shape_cast %164 : vector<32xf32> to vector<32x1xf32>
    %cst_69 = arith.constant 1.280000e+02 : f32
    %166 = vector.broadcast %cst_69 : f32 to vector<32x1xf32>
    %167 = arith.divf %165, %166 : vector<32x1xf32>
    %168 = vector.broadcast %160 : vector<32x1xf32> to vector<32x128xf32>
    %169 = arith.subf %152, %168 : vector<32x128xf32>
    %cst_70 = arith.constant 9.99999996E-13 : f32
    %170 = vector.broadcast %cst_70 : f32 to vector<32x1xf32>
    %171 = arith.addf %167, %170 : vector<32x1xf32>
    %172 = math.rsqrt %171 : vector<32x1xf32>
    %173 = vector.broadcast %172 : vector<32x1xf32> to vector<32x128xf32>
    %174 = arith.mulf %169, %173 : vector<32x128xf32>
    %175 = vector.broadcast %154 : vector<1x128xf32> to vector<32x128xf32>
    %176 = arith.mulf %174, %175 : vector<32x128xf32>
    %177 = vector.broadcast %156 : vector<1x128xf32> to vector<32x128xf32>
    %178 = arith.addf %176, %177 : vector<32x128xf32>
    %c0_71 = arith.constant 0 : index
    %c0_72 = arith.constant 0 : index
    %179 = vector.load %arg18[%c0_71, %c0_72] : memref<32x128xf32, #tpu.memory_space<vmem>>, vector<32x128xf32>
    tpu.vector_store %arg18[%c0_71, %c0_72], %178 {strides = array<i32>} : memref<32x128xf32, #tpu.memory_space<vmem>>, vector<32x128xf32>,
    %c1_i32 = arith.constant 1 : i32
    %180 = arith.cmpi eq, %arg0, %c1_i32 : i32
    %181 = arith.extui %180 : i1 to i32
    %c0_i32_73 = arith.constant 0 : i32
    %182 = arith.cmpi ne, %181, %c0_i32_73 : i32
    scf.if %182 {
      %183 = vector.extract_strided_slice %4 {offsets = [0, 0], sizes = [1, 16], strides = [1, 1]} : vector<2x16xf32> to vector<1x16xf32>
      %184 = vector.extract_strided_slice %178 {offsets = [0, 0], sizes = [16, 128], strides = [1, 1]} : vector<32x128xf32> to vector<16x128xf32>
      %cst_74 = arith.constant dense<0.000000e+00> : vector<1x128xf32>
      %185 = tpu.matmul %183, %184, %cst_74 {dimension_numbers = #tpu.dot_dimension_numbers<[1], [0], [0], [1], [0, 0, 1, 1], [], []>} : vector<1x16xf32>, vector<16x128xf32>, vector<1x128xf32> -> vector<1x128xf32>
      %186 = vector.extract_strided_slice %4 {offsets = [1, 0], sizes = [1, 16], strides = [1, 1]} : vector<2x16xf32> to vector<1x16xf32>
      %187 = vector.extract_strided_slice %178 {offsets = [16, 0], sizes = [16, 128], strides = [1, 1]} : vector<32x128xf32> to vector<16x128xf32>
      %cst_75 = arith.constant dense<0.000000e+00> : vector<1x128xf32>
      %188 = tpu.matmul %186, %187, %cst_75 {dimension_numbers = #tpu.dot_dimension_numbers<[1], [0], [0], [1], [0, 0, 1, 1], [], []>} : vector<1x16xf32>, vector<16x128xf32>, vector<1x128xf32> -> vector<1x128xf32>
      %189 = tpu.concatenate %185, %188 in 0 : vector<1x128xf32>, vector<1x128xf32> -> vector<2x128xf32>
      %cst_76 = arith.constant dense<0.000000e+00> : vector<2xf32>
      %190 = vector.multi_reduction <add>, %4, %cst_76 [1] : vector<2x16xf32> to vector<2xf32>
      %191 = vector.shape_cast %190 : vector<2xf32> to vector<2x1xf32>
      %cst_77 = arith.constant 9.99999971E-10 : f32
      %192 = vector.broadcast %cst_77 : f32 to vector<2x1xf32>
      %193 = arith.maximumf %191, %192 : vector<2x1xf32>
      %194 = tpu.reciprocal %193 {approx = true} : vector<2x1xf32> -> vector<2x1xf32>
      %195 = vector.broadcast %194 : vector<2x1xf32> to vector<2x128xf32>
      %196 = arith.mulf %189, %195 : vector<2x128xf32>
      %c0_78 = arith.constant 0 : index
      %c0_79 = arith.constant 0 : index
      %197 = vector.load %arg17[%c0_78, %c0_79] : memref<2x128xf32, #tpu.memory_space<vmem>>, vector<2x128xf32>
      tpu.vector_store %arg17[%c0_78, %c0_79], %196 {strides = array<i32>} : memref<2x128xf32, #tpu.memory_space<vmem>>, vector<2x128xf32>,
    } else {
    }
    return
  }
  func.func @transform_0(%arg0: i32) -> (i32, i32) {
    %c0_i32 = arith.constant 0 : i32
    %c0_i32_0 = arith.constant 0 : i32
    %c0_i32_1 = arith.constant 0 : i32
    return %c0_i32, %c0_i32_0 : i32, i32
  }
  func.func @transform_1(%arg0: i32) -> (i32, i32) {
    %c0_i32 = arith.constant 0 : i32
    %c0_i32_0 = arith.constant 0 : i32
    %c0_i32_1 = arith.constant 0 : i32
    return %c0_i32, %c0_i32_0 : i32, i32
  }
  func.func @transform_2(%arg0: i32) -> (i32, i32) {
    %c0_i32 = arith.constant 0 : i32
    %c0_i32_0 = arith.constant 0 : i32
    %c0_i32_1 = arith.constant 0 : i32
    return %c0_i32, %c0_i32_0 : i32, i32
  }
  func.func @transform_3(%arg0: i32) -> (i32, i32) {
    %c0_i32 = arith.constant 0 : i32
    %c0_i32_0 = arith.constant 0 : i32
    %c0_i32_1 = arith.constant 0 : i32
    return %c0_i32, %c0_i32_0 : i32, i32
  }
  func.func @transform_4(%arg0: i32) -> (i32, i32, i32) {
    %c0_i32 = arith.constant 0 : i32
    %c0_i32_0 = arith.constant 0 : i32
    %c0_i32_1 = arith.constant 0 : i32
    return %arg0, %c0_i32, %c0_i32_0 : i32, i32, i32
  }
  func.func @transform_5(%arg0: i32) -> (i32, i32, i32) {
    %c0_i32 = arith.constant 0 : i32
    %c0_i32_0 = arith.constant 0 : i32
    %c0_i32_1 = arith.constant 0 : i32
    return %arg0, %c0_i32, %c0_i32_0 : i32, i32, i32
  }
  func.func @transform_6(%arg0: i32) -> (i32, i32, i32) {
    %c0_i32 = arith.constant 0 : i32
    %c0_i32_0 = arith.constant 0 : i32
    %c0_i32_1 = arith.constant 0 : i32
    return %arg0, %c0_i32, %c0_i32_0 : i32, i32, i32
  }
  func.func @transform_7(%arg0: i32) -> (i32, i32, i32) {
    %c0_i32 = arith.constant 0 : i32
    %c0_i32_0 = arith.constant 0 : i32
    %c0_i32_1 = arith.constant 0 : i32
    return %arg0, %c0_i32, %c0_i32_0 : i32, i32, i32
  }
  func.func @transform_8(%arg0: i32) -> (i32, i32, i32) {
    %c0_i32 = arith.constant 0 : i32
    %c0_i32_0 = arith.constant 0 : i32
    %c0_i32_1 = arith.constant 0 : i32
    return %arg0, %c0_i32, %c0_i32_0 : i32, i32, i32
  }
  func.func @transform_9(%arg0: i32) -> (i32, i32, i32) {
    %c0_i32 = arith.constant 0 : i32
    %c0_i32_0 = arith.constant 0 : i32
    %c0_i32_1 = arith.constant 0 : i32
    return %arg0, %c0_i32, %c0_i32_0 : i32, i32, i32
  }
  func.func @transform_10(%arg0: i32) -> (i32, i32, i32) {
    %c0_i32 = arith.constant 0 : i32
    %c0_i32_0 = arith.constant 0 : i32
    %c0_i32_1 = arith.constant 0 : i32
    return %arg0, %c0_i32, %c0_i32_0 : i32, i32, i32
  }
  func.func @transform_11(%arg0: i32) -> (i32, i32, i32) {
    %c0_i32 = arith.constant 0 : i32
    %c0_i32_0 = arith.constant 0 : i32
    %c0_i32_1 = arith.constant 0 : i32
    return %arg0, %c0_i32, %c0_i32_0 : i32, i32, i32
  }
  func.func @transform_12(%arg0: i32) -> (i32, i32, i32) {
    %c0_i32 = arith.constant 0 : i32
    %c0_i32_0 = arith.constant 0 : i32
    %c0_i32_1 = arith.constant 0 : i32
    return %arg0, %c0_i32, %c0_i32_0 : i32, i32, i32
  }
  func.func @transform_13(%arg0: i32) -> (i32, i32, i32) {
    %c0_i32 = arith.constant 0 : i32
    %c0_i32_0 = arith.constant 0 : i32
    %c0_i32_1 = arith.constant 0 : i32
    return %arg0, %c0_i32, %c0_i32_0 : i32, i32, i32
  }
  func.func @transform_14(%arg0: i32) -> (i32, i32, i32) {
    %c0_i32 = arith.constant 0 : i32
    %c0_i32_0 = arith.constant 0 : i32
    %c0_i32_1 = arith.constant 0 : i32
    return %arg0, %c0_i32, %c0_i32_0 : i32, i32, i32
  }
  func.func @transform_15(%arg0: i32) -> (i32, i32, i32) {
    %c0_i32 = arith.constant 0 : i32
    %c0_i32_0 = arith.constant 0 : i32
    %c0_i32_1 = arith.constant 0 : i32
    return %arg0, %c0_i32, %c0_i32_0 : i32, i32, i32
  }
  func.func @transform_16(%arg0: i32) -> (i32, i32) {
    %c0_i32 = arith.constant 0 : i32
    %c0_i32_0 = arith.constant 0 : i32
    %c0_i32_1 = arith.constant 0 : i32
    return %c0_i32, %c0_i32_0 : i32, i32
  }
}

</mosaic_0001>

<llo_original>
// kernel: bert_for_sts_forward.1
$region0: #{bert_for_sts_forward.1}
  #allocation0 [shape = 'u32[]', space=smem, size = 0x4, offset = 0x4, fixed_abs, tag = 'smem constant byte address 0x4 - core index']
  #allocation1 [shape = 'u32[144,128]{1,0:T(1,128)}', space=vmem, size = 0x12000, scoped, tag = 'internal scratch']
  #allocation2 [shape = 'f32[32,128]{1,0:T(8,128)}', space=vmem, size = 0x4000, scoped, tag = 'scratch operand']
  %s0 = inlined_call_operand.vmem [shape: f32[32,128], index: 0, kind: input, shape index: {}]
  %s1 = inlined_call_operand.vmem [shape: f32[2,16], index: 1, kind: input, shape index: {}]
  %s2 = inlined_call_operand.vmem [shape: f32[1,128], index: 2, kind: input, shape index: {}]
  %s3 = inlined_call_operand.vmem [shape: f32[1,128], index: 3, kind: input, shape index: {}]
  %s4 = inlined_call_operand.vmem [shape: bf16[2,128,384], index: 4, kind: input, shape index: {}]
  %s5 = inlined_call_operand.vmem [shape: f32[2,1,384], index: 5, kind: input, shape index: {}]
  %s6 = inlined_call_operand.vmem [shape: bf16[2,128,128], index: 6, kind: input, shape index: {}]
  %s7 = inlined_call_operand.vmem [shape: f32[2,1,128], index: 7, kind: input, shape index: {}]
  %s8 = inlined_call_operand.vmem [shape: f32[2,1,128], index: 8, kind: input, shape index: {}]
  %s9 = inlined_call_operand.vmem [shape: f32[2,1,128], index: 9, kind: input, shape index: {}]
  %s10 = inlined_call_operand.vmem [shape: bf16[2,128,256], index: 10, kind: input, shape index: {}]
  %s11 = inlined_call_operand.vmem [shape: f32[2,1,256], index: 11, kind: input, shape index: {}]
  %s12 = inlined_call_operand.hbm [shape: bf16[2,256,128], index: 12, kind: input, shape index: {}]
  %s13 = inlined_call_operand.vmem [shape: f32[2,1,128], index: 13, kind: input, shape index: {}]
  %s14 = inlined_call_operand.vmem [shape: f32[2,1,128], index: 14, kind: input, shape index: {}]
  %s15 = inlined_call_operand.vmem [shape: f32[2,1,128], index: 15, kind: input, shape index: {}]
  %s16 = inlined_call_operand.hbm [shape: f32[2,128], index: 16, kind: output, shape index: {}]
  %s17 = sld [smem:[#allocation0]]
  $region109: #{bert_for_sts_forward.1} parent=0
    _
  %s19 = ssub.s32 1, %s17
  %s20 = scalar_select 0, %s19, %s17
  $region1: #{bert_for_sts_forward.1} parent=0
    #allocation3 [shape = 'u8[131072]{0}', space=vmem, size = 0x20000, scoped, tag = 'input window, operand 12']
    #allocation4 [shape = 's32[2]{0}', space=sflag, size = 0x8, scoped, tag = 'scoped memory for bert_for_sts_forward.1']
    #allocation5 [shape = 's32[2]{0}', space=sflag, size = 0x8, scoped, tag = 'scoped memory for bert_for_sts_forward.1']
    #allocation6 [shape = 'u8[1024]{0}', space=vmem, size = 0x400, scoped, tag = 'output window, operand 0, single buffered']
    %21 = vsyncpa [#allocation4], 0
    %s22 = scalar_lea.sflag [#allocation4], 1
    %23 = vsyncpa %s22, 0
    %24 = vsyncpa [#allocation5], 0
    loop: start=0, step=1, limit=4
    $region2: #{bert_for_sts_forward.1} parent=1 // loop_pre_header
      _
    $region3: #{bert_for_sts_forward.1} parent=1 // loop_header
      %s26 = sphi 0, %s30
      %p27 = scmp.ge.s32.totalorder %s26, 4
      %s34 = sphi 0, %s34
      %s36 = sphi 0, %s34
      %s37 = sphi 0, %s36
      %s51 = sphi 0, %s37
      %s55 = sphi 0, %s55
      %s57 = sphi 0, %s55
      %s58 = sphi 0, %s57
      %s72 = sphi 0, %s58
      %s76 = sphi 0, %s76
      %s78 = sphi 0, %s76
      %s79 = sphi 0, %s78
      %s93 = sphi 0, %s79
      %s97 = sphi 0, %s97
      %s99 = sphi 0, %s97
      %s100 = sphi 0, %s99
      %s114 = sphi 0, %s100
      %s120 = sphi 0, %s122
      %s123 = sphi 0, %s120
      %s124 = sphi 0, %s123
      %s140 = sphi 0, %s124
      %s146 = sphi 0, %s148
      %s149 = sphi 0, %s146
      %s150 = sphi 0, %s149
      %s166 = sphi 0, %s150
      %s172 = sphi 0, %s174
      %s175 = sphi 0, %s172
      %s176 = sphi 0, %s175
      %s192 = sphi 0, %s176
      %s198 = sphi 0, %s200
      %s201 = sphi 0, %s198
      %s202 = sphi 0, %s201
      %s218 = sphi 0, %s202
      %s224 = sphi 0, %s226
      %s227 = sphi 0, %s224
      %s228 = sphi 0, %s227
      %s244 = sphi 0, %s228
      %s250 = sphi 0, %s252
      %s253 = sphi 0, %s250
      %s254 = sphi 0, %s253
      %s270 = sphi 0, %s254
      %s276 = sphi 0, %s278
      %s279 = sphi 0, %s276
      %s280 = sphi 0, %s279
      %s296 = sphi 0, %s280
      %s302 = sphi 0, %s304
      %s305 = sphi 0, %s302
      %s306 = sphi 0, %s305
      %s322 = sphi 0, %s306
      %s328 = sphi 0, %s330
      %s331 = sphi 0, %s328
      %s332 = sphi 0, %s331
      %s348 = sphi 0, %s332
      %s354 = sphi 0, %s356
      %s357 = sphi 0, %s354
      %s358 = sphi 0, %s357
      %s374 = sphi 0, %s358
      %s380 = sphi 0, %s382
      %s383 = sphi 0, %s380
      %s384 = sphi 0, %s383
      %s400 = sphi 0, %s384
      %s406 = sphi 0, %s408
      %s409 = sphi 0, %s406
      %s410 = sphi 0, %s409
      %s426 = sphi 0, %s410
      %s430 = sphi 0, %s430
      %s432 = sphi 0, %s430
      %s433 = sphi 0, %s432
      %s447 = sphi 0, %s433
    $region4: #{bert_for_sts_forward.1} parent=1 // loop_header_branch
      %29 = sbr.rel (%p27) target = $region8
    $region5: #{bert_for_sts_forward.1} parent=1 // loop_body
      %s31 = ssub.s32 %s26, 1
      %s32 = ssub.s32 %s26, 2
      %s33 = sadd.s32 %s26, 1
      %s35 = sadd.s32 %s34, 1
      %p38 = scmp.eq.s32.totalorder %s26, 1
      %p39 = scmp.ne.s32.totalorder %s34, %s36
      %p40 = scmp.eq.s32.totalorder %s26, 0
      %p41 = por %p39, %p40
      %p42 = scmp.ne.s32.totalorder %s34, %s36
      %p43 = scmp.eq.s32.totalorder %s31, 1
      %p44 = por %p42, %p43
      %p45 = scmp.ne.s32.totalorder %s36, %s37
      %p46 = scmp.eq.s32.totalorder %s31, 0
      %p47 = por %p45, %p46
      %p48 = scmp.ne.s32.totalorder %s36, %s37
      %p49 = scmp.eq.s32.totalorder %s32, 1
      %p50 = por %p48, %p49
      %p52 = scmp.ne.s32.totalorder %s37, %s51
      %p53 = scmp.eq.s32.totalorder %s32, 0
      %p54 = por %p52, %p53
      %s56 = sadd.s32 %s55, 1
      %p59 = scmp.eq.s32.totalorder %s26, 1
      %p60 = scmp.ne.s32.totalorder %s55, %s57
      %p61 = scmp.eq.s32.totalorder %s26, 0
      %p62 = por %p60, %p61
      %p63 = scmp.ne.s32.totalorder %s55, %s57
      %p64 = scmp.eq.s32.totalorder %s31, 1
      %p65 = por %p63, %p64
      %p66 = scmp.ne.s32.totalorder %s57, %s58
      %p67 = scmp.eq.s32.totalorder %s31, 0
      %p68 = por %p66, %p67
      %p69 = scmp.ne.s32.totalorder %s57, %s58
      %p70 = scmp.eq.s32.totalorder %s32, 1
      %p71 = por %p69, %p70
      %p73 = scmp.ne.s32.totalorder %s58, %s72
      %p74 = scmp.eq.s32.totalorder %s32, 0
      %p75 = por %p73, %p74
      %s77 = sadd.s32 %s76, 1
      %p80 = scmp.eq.s32.totalorder %s26, 1
      %p81 = scmp.ne.s32.totalorder %s76, %s78
      %p82 = scmp.eq.s32.totalorder %s26, 0
      %p83 = por %p81, %p82
      %p84 = scmp.ne.s32.totalorder %s76, %s78
      %p85 = scmp.eq.s32.totalorder %s31, 1
      %p86 = por %p84, %p85
      %p87 = scmp.ne.s32.totalorder %s78, %s79
      %p88 = scmp.eq.s32.totalorder %s31, 0
      %p89 = por %p87, %p88
      %p90 = scmp.ne.s32.totalorder %s78, %s79
      %p91 = scmp.eq.s32.totalorder %s32, 1
      %p92 = por %p90, %p91
      %p94 = scmp.ne.s32.totalorder %s79, %s93
      %p95 = scmp.eq.s32.totalorder %s32, 0
      %p96 = por %p94, %p95
      %s98 = sadd.s32 %s97, 1
      %p101 = scmp.eq.s32.totalorder %s26, 1
      %p102 = scmp.ne.s32.totalorder %s97, %s99
      %p103 = scmp.eq.s32.totalorder %s26, 0
      %p104 = por %p102, %p103
      %p105 = scmp.ne.s32.totalorder %s97, %s99
      %p106 = scmp.eq.s32.totalorder %s31, 1
      %p107 = por %p105, %p106
      %p108 = scmp.ne.s32.totalorder %s99, %s100
      %p109 = scmp.eq.s32.totalorder %s31, 0
      %p110 = por %p108, %p109
      %p111 = scmp.ne.s32.totalorder %s99, %s100
      %p112 = scmp.eq.s32.totalorder %s32, 1
      %p113 = por %p111, %p112
      %p115 = scmp.ne.s32.totalorder %s100, %s114
      %p116 = scmp.eq.s32.totalorder %s32, 0
      %p117 = por %p115, %p116
      %s118 = ssub.s32 %s26, %s33
      %p119 = scmp.eq.s32.totalorder %s118, 0
      %s121 = sadd.s32 %s120, 1
      %s122 = scalar_select %p119, %s120, %s121
      %p125 = pneg %p119
      %p126 = scmp.eq.s32.totalorder %s26, 1
      %p127 = por %p125, %p126
      %p128 = scmp.ne.s32.totalorder %s120, %s123
      %p129 = scmp.eq.s32.totalorder %s26, 0
      %p130 = por %p128, %p129
      %p131 = scmp.ne.s32.totalorder %s120, %s123
      %p132 = scmp.eq.s32.totalorder %s31, 1
      %p133 = por %p131, %p132
      %p134 = scmp.ne.s32.totalorder %s123, %s124
      %p135 = scmp.eq.s32.totalorder %s31, 0
      %p136 = por %p134, %p135
      %p137 = scmp.ne.s32.totalorder %s123, %s124
      %p138 = scmp.eq.s32.totalorder %s32, 1
      %p139 = por %p137, %p138
      %p141 = scmp.ne.s32.totalorder %s124, %s140
      %p142 = scmp.eq.s32.totalorder %s32, 0
      %p143 = por %p141, %p142
      %s144 = ssub.s32 %s26, %s33
      %p145 = scmp.eq.s32.totalorder %s144, 0
      %s147 = sadd.s32 %s146, 1
      %s148 = scalar_select %p145, %s146, %s147
      %p151 = pneg %p145
      %p152 = scmp.eq.s32.totalorder %s26, 1
      %p153 = por %p151, %p152
      %p154 = scmp.ne.s32.totalorder %s146, %s149
      %p155 = scmp.eq.s32.totalorder %s26, 0
      %p156 = por %p154, %p155
      %p157 = scmp.ne.s32.totalorder %s146, %s149
      %p158 = scmp.eq.s32.totalorder %s31, 1
      %p159 = por %p157, %p158
      %p160 = scmp.ne.s32.totalorder %s149, %s150
      %p161 = scmp.eq.s32.totalorder %s31, 0
      %p162 = por %p160, %p161
      %p163 = scmp.ne.s32.totalorder %s149, %s150
      %p164 = scmp.eq.s32.totalorder %s32, 1
      %p165 = por %p163, %p164
      %p167 = scmp.ne.s32.totalorder %s150, %s166
      %p168 = scmp.eq.s32.totalorder %s32, 0
      %p169 = por %p167, %p168
      %s170 = ssub.s32 %s26, %s33
      %p171 = scmp.eq.s32.totalorder %s170, 0
      %s173 = sadd.s32 %s172, 1
      %s174 = scalar_select %p171, %s172, %s173
      %p177 = pneg %p171
      %p178 = scmp.eq.s32.totalorder %s26, 1
      %p179 = por %p177, %p178
      %p180 = scmp.ne.s32.totalorder %s172, %s175
      %p181 = scmp.eq.s32.totalorder %s26, 0
      %p182 = por %p180, %p181
      %p183 = scmp.ne.s32.totalorder %s172, %s175
      %p184 = scmp.eq.s32.totalorder %s31, 1
      %p185 = por %p183, %p184
      %p186 = scmp.ne.s32.totalorder %s175, %s176
      %p187 = scmp.eq.s32.totalorder %s31, 0
      %p188 = por %p186, %p187
      %p189 = scmp.ne.s32.totalorder %s175, %s176
      %p190 = scmp.eq.s32.totalorder %s32, 1
      %p191 = por %p189, %p190
      %p193 = scmp.ne.s32.totalorder %s176, %s192
      %p194 = scmp.eq.s32.totalorder %s32, 0
      %p195 = por %p193, %p194
      %s196 = ssub.s32 %s26, %s33
      %p197 = scmp.eq.s32.totalorder %s196, 0
      %s199 = sadd.s32 %s198, 1
      %s200 = scalar_select %p197, %s198, %s199
      %p203 = pneg %p197
      %p204 = scmp.eq.s32.totalorder %s26, 1
      %p205 = por %p203, %p204
      %p206 = scmp.ne.s32.totalorder %s198, %s201
      %p207 = scmp.eq.s32.totalorder %s26, 0
      %p208 = por %p206, %p207
      %p209 = scmp.ne.s32.totalorder %s198, %s201
      %p210 = scmp.eq.s32.totalorder %s31, 1
      %p211 = por %p209, %p210
      %p212 = scmp.ne.s32.totalorder %s201, %s202
      %p213 = scmp.eq.s32.totalorder %s31, 0
      %p214 = por %p212, %p213
      %p215 = scmp.ne.s32.totalorder %s201, %s202
      %p216 = scmp.eq.s32.totalorder %s32, 1
      %p217 = por %p215, %p216
      %p219 = scmp.ne.s32.totalorder %s202, %s218
      %p220 = scmp.eq.s32.totalorder %s32, 0
      %p221 = por %p219, %p220
      %s222 = ssub.s32 %s26, %s33
      %p223 = scmp.eq.s32.totalorder %s222, 0
      %s225 = sadd.s32 %s224, 1
      %s226 = scalar_select %p223, %s224, %s225
      %p229 = pneg %p223
      %p230 = scmp.eq.s32.totalorder %s26, 1
      %p231 = por %p229, %p230
      %p232 = scmp.ne.s32.totalorder %s224, %s227
      %p233 = scmp.eq.s32.totalorder %s26, 0
      %p234 = por %p232, %p233
      %p235 = scmp.ne.s32.totalorder %s224, %s227
      %p236 = scmp.eq.s32.totalorder %s31, 1
      %p237 = por %p235, %p236
      %p238 = scmp.ne.s32.totalorder %s227, %s228
      %p239 = scmp.eq.s32.totalorder %s31, 0
      %p240 = por %p238, %p239
      %p241 = scmp.ne.s32.totalorder %s227, %s228
      %p242 = scmp.eq.s32.totalorder %s32, 1
      %p243 = por %p241, %p242
      %p245 = scmp.ne.s32.totalorder %s228, %s244
      %p246 = scmp.eq.s32.totalorder %s32, 0
      %p247 = por %p245, %p246
      %s248 = ssub.s32 %s26, %s33
      %p249 = scmp.eq.s32.totalorder %s248, 0
      %s251 = sadd.s32 %s250, 1
      %s252 = scalar_select %p249, %s250, %s251
      %p255 = pneg %p249
      %p256 = scmp.eq.s32.totalorder %s26, 1
      %p257 = por %p255, %p256
      %p258 = scmp.ne.s32.totalorder %s250, %s253
      %p259 = scmp.eq.s32.totalorder %s26, 0
      %p260 = por %p258, %p259
      %p261 = scmp.ne.s32.totalorder %s250, %s253
      %p262 = scmp.eq.s32.totalorder %s31, 1
      %p263 = por %p261, %p262
      %p264 = scmp.ne.s32.totalorder %s253, %s254
      %p265 = scmp.eq.s32.totalorder %s31, 0
      %p266 = por %p264, %p265
      %p267 = scmp.ne.s32.totalorder %s253, %s254
      %p268 = scmp.eq.s32.totalorder %s32, 1
      %p269 = por %p267, %p268
      %p271 = scmp.ne.s32.totalorder %s254, %s270
      %p272 = scmp.eq.s32.totalorder %s32, 0
      %p273 = por %p271, %p272
      %s274 = ssub.s32 %s26, %s33
      %p275 = scmp.eq.s32.totalorder %s274, 0
      %s277 = sadd.s32 %s276, 1
      %s278 = scalar_select %p275, %s276, %s277
      %p281 = pneg %p275
      %p282 = scmp.eq.s32.totalorder %s26, 1
      %p283 = por %p281, %p282
      %p284 = scmp.ne.s32.totalorder %s276, %s279
      %p285 = scmp.eq.s32.totalorder %s26, 0
      %p286 = por %p284, %p285
      %p287 = scmp.ne.s32.totalorder %s276, %s279
      %p288 = scmp.eq.s32.totalorder %s31, 1
      %p289 = por %p287, %p288
      %p290 = scmp.ne.s32.totalorder %s279, %s280
      %p291 = scmp.eq.s32.totalorder %s31, 0
      %p292 = por %p290, %p291
      %p293 = scmp.ne.s32.totalorder %s279, %s280
      %p294 = scmp.eq.s32.totalorder %s32, 1
      %p295 = por %p293, %p294
      %p297 = scmp.ne.s32.totalorder %s280, %s296
      %p298 = scmp.eq.s32.totalorder %s32, 0
      %p299 = por %p297, %p298
      %s300 = ssub.s32 %s26, %s33
      %p301 = scmp.eq.s32.totalorder %s300, 0
      %s303 = sadd.s32 %s302, 1
      %s304 = scalar_select %p301, %s302, %s303
      %p307 = pneg %p301
      %p308 = scmp.eq.s32.totalorder %s26, 1
      %p309 = por %p307, %p308
      %p310 = scmp.ne.s32.totalorder %s302, %s305
      %p311 = scmp.eq.s32.totalorder %s26, 0
      %p312 = por %p310, %p311
      %p313 = scmp.ne.s32.totalorder %s302, %s305
      %p314 = scmp.eq.s32.totalorder %s31, 1
      %p315 = por %p313, %p314
      %p316 = scmp.ne.s32.totalorder %s305, %s306
      %p317 = scmp.eq.s32.totalorder %s31, 0
      %p318 = por %p316, %p317
      %p319 = scmp.ne.s32.totalorder %s305, %s306
      %p320 = scmp.eq.s32.totalorder %s32, 1
      %p321 = por %p319, %p320
      %p323 = scmp.ne.s32.totalorder %s306, %s322
      %p324 = scmp.eq.s32.totalorder %s32, 0
      %p325 = por %p323, %p324
      %s326 = ssub.s32 %s26, %s33
      %p327 = scmp.eq.s32.totalorder %s326, 0
      %s329 = sadd.s32 %s328, 1
      %s330 = scalar_select %p327, %s328, %s329
      %p333 = pneg %p327
      %p334 = scmp.eq.s32.totalorder %s26, 1
      %p335 = por %p333, %p334
      %p336 = scmp.ne.s32.totalorder %s328, %s331
      %p337 = scmp.eq.s32.totalorder %s26, 0
      %p338 = por %p336, %p337
      %p339 = scmp.ne.s32.totalorder %s328, %s331
      %p340 = scmp.eq.s32.totalorder %s31, 1
      %p341 = por %p339, %p340
      %p342 = scmp.ne.s32.totalorder %s331, %s332
      %p343 = scmp.eq.s32.totalorder %s31, 0
      %p344 = por %p342, %p343
      %p345 = scmp.ne.s32.totalorder %s331, %s332
      %p346 = scmp.eq.s32.totalorder %s32, 1
      %p347 = por %p345, %p346
      %p349 = scmp.ne.s32.totalorder %s332, %s348
      %p350 = scmp.eq.s32.totalorder %s32, 0
      %p351 = por %p349, %p350
      %s352 = ssub.s32 %s26, %s33
      %p353 = scmp.eq.s32.totalorder %s352, 0
      %s355 = sadd.s32 %s354, 1
      %s356 = scalar_select %p353, %s354, %s355
      %p359 = pneg %p353
      %p360 = scmp.eq.s32.totalorder %s26, 1
      %p361 = por %p359, %p360
      %p362 = scmp.ne.s32.totalorder %s354, %s357
      %p363 = scmp.eq.s32.totalorder %s26, 0
      %p364 = por %p362, %p363
      %p365 = scmp.ne.s32.totalorder %s354, %s357
      %p366 = scmp.eq.s32.totalorder %s31, 1
      %p367 = por %p365, %p366
      %p368 = scmp.ne.s32.totalorder %s357, %s358
      %p369 = scmp.eq.s32.totalorder %s31, 0
      %p370 = por %p368, %p369
      %p371 = scmp.ne.s32.totalorder %s357, %s358
      %p372 = scmp.eq.s32.totalorder %s32, 1
      %p373 = por %p371, %p372
      %p375 = scmp.ne.s32.totalorder %s358, %s374
      %p376 = scmp.eq.s32.totalorder %s32, 0
      %p377 = por %p375, %p376
      %s378 = ssub.s32 %s26, %s33
      %p379 = scmp.eq.s32.totalorder %s378, 0
      %s381 = sadd.s32 %s380, 1
      %s382 = scalar_select %p379, %s380, %s381
      %p385 = pneg %p379
      %p386 = scmp.eq.s32.totalorder %s26, 1
      %p387 = por %p385, %p386
      %p388 = scmp.ne.s32.totalorder %s380, %s383
      %p389 = scmp.eq.s32.totalorder %s26, 0
      %p390 = por %p388, %p389
      %p391 = scmp.ne.s32.totalorder %s380, %s383
      %p392 = scmp.eq.s32.totalorder %s31, 1
      %p393 = por %p391, %p392
      %p394 = scmp.ne.s32.totalorder %s383, %s384
      %p395 = scmp.eq.s32.totalorder %s31, 0
      %p396 = por %p394, %p395
      %p397 = scmp.ne.s32.totalorder %s383, %s384
      %p398 = scmp.eq.s32.totalorder %s32, 1
      %p399 = por %p397, %p398
      %p401 = scmp.ne.s32.totalorder %s384, %s400
      %p402 = scmp.eq.s32.totalorder %s32, 0
      %p403 = por %p401, %p402
      %s404 = ssub.s32 %s26, %s33
      %p405 = scmp.eq.s32.totalorder %s404, 0
      %s407 = sadd.s32 %s406, 1
      %s408 = scalar_select %p405, %s406, %s407
      %p411 = pneg %p405
      %p412 = scmp.eq.s32.totalorder %s26, 1
      %p413 = por %p411, %p412
      %p414 = scmp.ne.s32.totalorder %s406, %s409
      %p415 = scmp.eq.s32.totalorder %s26, 0
      %p416 = por %p414, %p415
      %p417 = scmp.ne.s32.totalorder %s406, %s409
      %p418 = scmp.eq.s32.totalorder %s31, 1
      %p419 = por %p417, %p418
      %p420 = scmp.ne.s32.totalorder %s409, %s410
      %p421 = scmp.eq.s32.totalorder %s31, 0
      %p422 = por %p420, %p421
      %p423 = scmp.ne.s32.totalorder %s409, %s410
      %p424 = scmp.eq.s32.totalorder %s32, 1
      %p425 = por %p423, %p424
      %p427 = scmp.ne.s32.totalorder %s410, %s426
      %p428 = scmp.eq.s32.totalorder %s32, 0
      %p429 = por %p427, %p428
      %s431 = sadd.s32 %s430, 1
      %p434 = scmp.eq.s32.totalorder %s26, 1
      %p435 = scmp.ne.s32.totalorder %s430, %s432
      %p436 = scmp.eq.s32.totalorder %s26, 0
      %p437 = por %p435, %p436
      %p438 = scmp.ne.s32.totalorder %s430, %s432
      %p439 = scmp.eq.s32.totalorder %s31, 1
      %p440 = por %p438, %p439
      %p441 = scmp.ne.s32.totalorder %s432, %s433
      %p442 = scmp.eq.s32.totalorder %s31, 0
      %p443 = por %p441, %p442
      %p444 = scmp.ne.s32.totalorder %s432, %s433
      %p445 = scmp.eq.s32.totalorder %s32, 1
      %p446 = por %p444, %p445
      %p448 = scmp.ne.s32.totalorder %s433, %s447
      %p449 = scmp.eq.s32.totalorder %s32, 0
      %p450 = por %p448, %p449
      %p451 = scmp.le.s32.totalorder 1, %s26
      %p452 = scmp.lt.s32.totalorder %s26, 3
      %p453 = pnand %p451, %p452
      %p454 = pneg %p453
      // Predicated region
      $region9: #{bert_for_sts_forward.1} parent=5 // pred_check
        _
      $region10: #{bert_for_sts_forward.1} parent=5 // pred_check_branch
        %456 = sbr.rel (%p453) target = $region12
      $region11: #{bert_for_sts_forward.1} parent=5 // pred_region
        %s457 = ssub.s32 %s26, 1
        // Predicated region
        $region13: #{bert_for_sts_forward.1} parent=11 // pred_check
          %p458 = pneg %p47
        $region14: #{bert_for_sts_forward.1} parent=11 // pred_check_branch
          %460 = sbr.rel (%p458) target = $region16
        $region15: #{bert_for_sts_forward.1} parent=11 // pred_region
          _
        $region16: #{bert_for_sts_forward.1} parent=11 // pred_fallthru
          _
        // Predicated region
        $region17: #{bert_for_sts_forward.1} parent=11 // pred_check
          %p461 = pneg %p68
        $region18: #{bert_for_sts_forward.1} parent=11 // pred_check_branch
          %463 = sbr.rel (%p461) target = $region20
        $region19: #{bert_for_sts_forward.1} parent=11 // pred_region
          _
        $region20: #{bert_for_sts_forward.1} parent=11 // pred_fallthru
          _
        // Predicated region
        $region21: #{bert_for_sts_forward.1} parent=11 // pred_check
          %p464 = pneg %p89
        $region22: #{bert_for_sts_forward.1} parent=11 // pred_check_branch
          %466 = sbr.rel (%p464) target = $region24
        $region23: #{bert_for_sts_forward.1} parent=11 // pred_region
          _
        $region24: #{bert_for_sts_forward.1} parent=11 // pred_fallthru
          _
        // Predicated region
        $region25: #{bert_for_sts_forward.1} parent=11 // pred_check
          %p467 = pneg %p110
        $region26: #{bert_for_sts_forward.1} parent=11 // pred_check_branch
          %469 = sbr.rel (%p467) target = $region28
        $region27: #{bert_for_sts_forward.1} parent=11 // pred_region
          _
        $region28: #{bert_for_sts_forward.1} parent=11 // pred_fallthru
          _
      $region12: #{bert_for_sts_forward.1} parent=5 // pred_fallthru
        _
      %p470 = scmp.lt.s32.totalorder %s26, 2
      // Predicated region
      $region29: #{bert_for_sts_forward.1} parent=5 // pred_check
        %p471 = pneg %p470
      $region30: #{bert_for_sts_forward.1} parent=5 // pred_check_branch
        %473 = sbr.rel (%p471) target = $region32
      $region31: #{bert_for_sts_forward.1} parent=5 // pred_region
        // Predicated region
        $region33: #{bert_for_sts_forward.1} parent=31 // pred_check
          %p474 = pneg %p130
        $region34: #{bert_for_sts_forward.1} parent=31 // pred_check_branch
          %476 = sbr.rel (%p474) target = $region36
        $region35: #{bert_for_sts_forward.1} parent=31 // pred_region
          %p477 = scmp.lt.s32.totalorder %s26, 1
          %s478 = scalar_select %p477, %s26, 1
          %s479 = smul.addr %s478, 48
          %s480 = smul.addr %s479, 4
          %s481 = scalar_lea.vmem %s4, %s480
        $region36: #{bert_for_sts_forward.1} parent=31 // pred_fallthru
          _
        // Predicated region
        $region37: #{bert_for_sts_forward.1} parent=31 // pred_check
          %p482 = pneg %p156
        $region38: #{bert_for_sts_forward.1} parent=31 // pred_check_branch
          %484 = sbr.rel (%p482) target = $region40
        $region39: #{bert_for_sts_forward.1} parent=31 // pred_region
          %p485 = scmp.lt.s32.totalorder %s26, 1
          %s486 = scalar_select %p485, %s26, 1
          %s487 = smul.addr %s486, 3
          %s488 = scalar_lea.vmem %s5, %s487
        $region40: #{bert_for_sts_forward.1} parent=31 // pred_fallthru
          _
        // Predicated region
        $region41: #{bert_for_sts_forward.1} parent=31 // pred_check
          %p489 = pneg %p182
        $region42: #{bert_for_sts_forward.1} parent=31 // pred_check_branch
          %491 = sbr.rel (%p489) target = $region44
        $region43: #{bert_for_sts_forward.1} parent=31 // pred_region
          %p492 = scmp.lt.s32.totalorder %s26, 1
          %s493 = scalar_select %p492, %s26, 1
          %s494 = smul.addr %s493, 16
          %s495 = smul.addr %s494, 4
          %s496 = scalar_lea.vmem %s6, %s495
        $region44: #{bert_for_sts_forward.1} parent=31 // pred_fallthru
          _
        // Predicated region
        $region45: #{bert_for_sts_forward.1} parent=31 // pred_check
          %p497 = pneg %p208
        $region46: #{bert_for_sts_forward.1} parent=31 // pred_check_branch
          %499 = sbr.rel (%p497) target = $region48
        $region47: #{bert_for_sts_forward.1} parent=31 // pred_region
          %p500 = scmp.lt.s32.totalorder %s26, 1
          %s501 = scalar_select %p500, %s26, 1
          %s502 = scalar_lea.vmem %s7, %s501
        $region48: #{bert_for_sts_forward.1} parent=31 // pred_fallthru
          _
        // Predicated region
        $region49: #{bert_for_sts_forward.1} parent=31 // pred_check
          %p503 = pneg %p234
        $region50: #{bert_for_sts_forward.1} parent=31 // pred_check_branch
          %505 = sbr.rel (%p503) target = $region52
        $region51: #{bert_for_sts_forward.1} parent=31 // pred_region
          %p506 = scmp.lt.s32.totalorder %s26, 1
          %s507 = scalar_select %p506, %s26, 1
          %s508 = scalar_lea.vmem %s8, %s507
        $region52: #{bert_for_sts_forward.1} parent=31 // pred_fallthru
          _
        // Predicated region
        $region53: #{bert_for_sts_forward.1} parent=31 // pred_check
          %p509 = pneg %p260
        $region54: #{bert_for_sts_forward.1} parent=31 // pred_check_branch
          %511 = sbr.rel (%p509) target = $region56
        $region55: #{bert_for_sts_forward.1} parent=31 // pred_region
          %p512 = scmp.lt.s32.totalorder %s26, 1
          %s513 = scalar_select %p512, %s26, 1
          %s514 = scalar_lea.vmem %s9, %s513
        $region56: #{bert_for_sts_forward.1} parent=31 // pred_fallthru
          _
        // Predicated region
        $region57: #{bert_for_sts_forward.1} parent=31 // pred_check
          %p515 = pneg %p286
        $region58: #{bert_for_sts_forward.1} parent=31 // pred_check_branch
          %517 = sbr.rel (%p515) target = $region60
        $region59: #{bert_for_sts_forward.1} parent=31 // pred_region
          %p518 = scmp.lt.s32.totalorder %s26, 1
          %s519 = scalar_select %p518, %s26, 1
          %s520 = smul.addr %s519, 32
          %s521 = smul.addr %s520, 4
          %s522 = scalar_lea.vmem %s10, %s521
        $region60: #{bert_for_sts_forward.1} parent=31 // pred_fallthru
          _
        // Predicated region
        $region61: #{bert_for_sts_forward.1} parent=31 // pred_check
          %p523 = pneg %p312
        $region62: #{bert_for_sts_forward.1} parent=31 // pred_check_branch
          %525 = sbr.rel (%p523) target = $region64
        $region63: #{bert_for_sts_forward.1} parent=31 // pred_region
          %p526 = scmp.lt.s32.totalorder %s26, 1
          %s527 = scalar_select %p526, %s26, 1
          %s528 = smul.addr %s527, 2
          %s529 = scalar_lea.vmem %s11, %s528
        $region64: #{bert_for_sts_forward.1} parent=31 // pred_fallthru
          _
        // Predicated region
        $region65: #{bert_for_sts_forward.1} parent=31 // pred_check
          %p530 = pneg %p338
        $region66: #{bert_for_sts_forward.1} parent=31 // pred_check_branch
          %532 = sbr.rel (%p530) target = $region68
        $region67: #{bert_for_sts_forward.1} parent=31 // pred_region
          %s533 = sand.u32 %s328, 1
          %s534 = scalar_lea.sflag [#allocation4], %s533
          %s535 = sand.u32 %s328, 1
          %s536 = smul.addr %s535, 128
          %s537 = scalar_lea.vmem [#allocation3], %s536
          %s539 = ssub.s32 2048, 2048
          %540 = vsyncadd %s534, %s539
          %s541 = smul.addr %s26, 32
          %s542 = smul.addr %s541, 64
          %s543 = scalar_lea.hbm %s12, %s542
          %s544 = sshll.u32 %s537, 4
          %s545 = int_to_ptr.vmem [resolvable:$true] %s544
          %550 = dma.hbm_to_vmem [thread:$0]  %s543, 2048, %s545, %s534, 64, 64, 4
        $region68: #{bert_for_sts_forward.1} parent=31 // pred_fallthru
          _
        // Predicated region
        $region69: #{bert_for_sts_forward.1} parent=31 // pred_check
          %p551 = pneg %p364
        $region70: #{bert_for_sts_forward.1} parent=31 // pred_check_branch
          %553 = sbr.rel (%p551) target = $region72
        $region71: #{bert_for_sts_forward.1} parent=31 // pred_region
          %p554 = scmp.lt.s32.totalorder %s26, 1
          %s555 = scalar_select %p554, %s26, 1
          %s556 = scalar_lea.vmem %s13, %s555
        $region72: #{bert_for_sts_forward.1} parent=31 // pred_fallthru
          _
        // Predicated region
        $region73: #{bert_for_sts_forward.1} parent=31 // pred_check
          %p557 = pneg %p390
        $region74: #{bert_for_sts_forward.1} parent=31 // pred_check_branch
          %559 = sbr.rel (%p557) target = $region76
        $region75: #{bert_for_sts_forward.1} parent=31 // pred_region
          %p560 = scmp.lt.s32.totalorder %s26, 1
          %s561 = scalar_select %p560, %s26, 1
          %s562 = scalar_lea.vmem %s14, %s561
        $region76: #{bert_for_sts_forward.1} parent=31 // pred_fallthru
          _
        // Predicated region
        $region77: #{bert_for_sts_forward.1} parent=31 // pred_check
          %p563 = pneg %p416
        $region78: #{bert_for_sts_forward.1} parent=31 // pred_check_branch
          %565 = sbr.rel (%p563) target = $region80
        $region79: #{bert_for_sts_forward.1} parent=31 // pred_region
          %p566 = scmp.lt.s32.totalorder %s26, 1
          %s567 = scalar_select %p566, %s26, 1
          %s568 = scalar_lea.vmem %s15, %s567
        $region80: #{bert_for_sts_forward.1} parent=31 // pred_fallthru
          _
      $region32: #{bert_for_sts_forward.1} parent=5 // pred_fallthru
        _
      %p569 = scmp.le.s32.totalorder 1, %s26
      %p570 = scmp.lt.s32.totalorder %s26, 3
      %p571 = pnand %p569, %p570
      %p572 = pneg %p571
      // Predicated region
      $region81: #{bert_for_sts_forward.1} parent=5 // pred_check
        _
      $region82: #{bert_for_sts_forward.1} parent=5 // pred_check_branch
        %574 = sbr.rel (%p571) target = $region84
      $region83: #{bert_for_sts_forward.1} parent=5 // pred_region
        %s575 = ssub.s32 %s26, 1
        %s576 = sand.u32 %s331, 1
        %s577 = scalar_lea.sflag [#allocation4], %s576
        %s578 = sand.u32 %s331, 1
        %s579 = smul.addr %s578, 128
        %s580 = scalar_lea.vmem [#allocation3], %s579
        // Predicated region
        $region85: #{bert_for_sts_forward.1} parent=83 // pred_check
          %p581 = pneg %p344
        $region86: #{bert_for_sts_forward.1} parent=83 // pred_check_branch
          %583 = sbr.rel (%p581) target = $region88
        $region87: #{bert_for_sts_forward.1} parent=83 // pred_region
          %584 = dma.done %s577, 2048
        $region88: #{bert_for_sts_forward.1} parent=83 // pred_fallthru
          _
        %p585 = pneg %p47
        %p586 = pneg %p44
        %p587 = pneg %p68
        %p588 = pneg %p65
        %p589 = pneg %p89
        %p590 = pneg %p86
        %p591 = pneg %p110
        %p592 = pneg %p107
        %p593 = scmp.lt.s32.totalorder %s31, 1
        %s594 = scalar_select %p593, %s31, 1
        %s595 = smul.addr %s594, 48
        %s596 = smul.addr %s595, 4
        %s597 = scalar_lea.vmem %s4, %s596
        %p598 = pneg %p136
        %p599 = pneg %p133
        %p600 = scmp.lt.s32.totalorder %s31, 1
        %s601 = scalar_select %p600, %s31, 1
        %s602 = smul.addr %s601, 3
        %s603 = scalar_lea.vmem %s5, %s602
        %p604 = pneg %p162
        %p605 = pneg %p159
        %p606 = scmp.lt.s32.totalorder %s31, 1
        %s607 = scalar_select %p606, %s31, 1
        %s608 = smul.addr %s607, 16
        %s609 = smul.addr %s608, 4
        %s610 = scalar_lea.vmem %s6, %s609
        %p611 = pneg %p188
        %p612 = pneg %p185
        %p613 = scmp.lt.s32.totalorder %s31, 1
        %s614 = scalar_select %p613, %s31, 1
        %s615 = scalar_lea.vmem %s7, %s614
        %p616 = pneg %p214
        %p617 = pneg %p211
        %p618 = scmp.lt.s32.totalorder %s31, 1
        %s619 = scalar_select %p618, %s31, 1
        %s620 = scalar_lea.vmem %s8, %s619
        %p621 = pneg %p240
        %p622 = pneg %p237
        %p623 = scmp.lt.s32.totalorder %s31, 1
        %s624 = scalar_select %p623, %s31, 1
        %s625 = scalar_lea.vmem %s9, %s624
        %p626 = pneg %p266
        %p627 = pneg %p263
        %p628 = scmp.lt.s32.totalorder %s31, 1
        %s629 = scalar_select %p628, %s31, 1
        %s630 = smul.addr %s629, 32
        %s631 = smul.addr %s630, 4
        %s632 = scalar_lea.vmem %s10, %s631
        %p633 = pneg %p292
        %p634 = pneg %p289
        %p635 = scmp.lt.s32.totalorder %s31, 1
        %s636 = scalar_select %p635, %s31, 1
        %s637 = smul.addr %s636, 2
        %s638 = scalar_lea.vmem %s11, %s637
        %p639 = pneg %p318
        %p640 = pneg %p315
        %s641 = sand.u32 %s331, 1
        %s642 = scalar_lea.sflag [#allocation4], %s641
        %s643 = sand.u32 %s331, 1
        %s644 = smul.addr %s643, 128
        %s645 = scalar_lea.vmem [#allocation3], %s644
        %p646 = pneg %p344
        %p647 = pneg %p341
        %p648 = scmp.lt.s32.totalorder %s31, 1
        %s649 = scalar_select %p648, %s31, 1
        %s650 = scalar_lea.vmem %s13, %s649
        %p651 = pneg %p370
        %p652 = pneg %p367
        %p653 = scmp.lt.s32.totalorder %s31, 1
        %s654 = scalar_select %p653, %s31, 1
        %s655 = scalar_lea.vmem %s14, %s654
        %p656 = pneg %p396
        %p657 = pneg %p393
        %p658 = scmp.lt.s32.totalorder %s31, 1
        %s659 = scalar_select %p658, %s31, 1
        %s660 = scalar_lea.vmem %s15, %s659
        %p661 = pneg %p422
        %p662 = pneg %p419
        %p663 = pneg %p443
        %p664 = pneg %p440
        %p665 = scmp.lt.s32.totalorder %s31, 1
        %s666 = scalar_select %p665, %s31, 1
        %s667 = smul.addr %s666, 48
        %s668 = smul.addr %s667, 4
        %s669 = scalar_lea.vmem %s4, %s668
        %p670 = scmp.lt.s32.totalorder %s31, 1
        %s671 = scalar_select %p670, %s31, 1
        %s672 = smul.addr %s671, 3
        %s673 = scalar_lea.vmem %s5, %s672
        %p674 = scmp.lt.s32.totalorder %s31, 1
        %s675 = scalar_select %p674, %s31, 1
        %s676 = smul.addr %s675, 16
        %s677 = smul.addr %s676, 4
        %s678 = scalar_lea.vmem %s6, %s677
        %p679 = scmp.lt.s32.totalorder %s31, 1
        %s680 = scalar_select %p679, %s31, 1
        %s681 = scalar_lea.vmem %s7, %s680
        %p682 = scmp.lt.s32.totalorder %s31, 1
        %s683 = scalar_select %p682, %s31, 1
        %s684 = scalar_lea.vmem %s8, %s683
        %p685 = scmp.lt.s32.totalorder %s31, 1
        %s686 = scalar_select %p685, %s31, 1
        %s687 = scalar_lea.vmem %s9, %s686
        %p688 = scmp.lt.s32.totalorder %s31, 1
        %s689 = scalar_select %p688, %s31, 1
        %s690 = smul.addr %s689, 32
        %s691 = smul.addr %s690, 4
        %s692 = scalar_lea.vmem %s10, %s691
        %p693 = scmp.lt.s32.totalorder %s31, 1
        %s694 = scalar_select %p693, %s31, 1
        %s695 = smul.addr %s694, 2
        %s696 = scalar_lea.vmem %s11, %s695
        %p697 = scmp.lt.s32.totalorder %s31, 1
        %s698 = scalar_select %p697, %s31, 1
        %s699 = scalar_lea.vmem %s13, %s698
        %p700 = scmp.lt.s32.totalorder %s31, 1
        %s701 = scalar_select %p700, %s31, 1
        %s702 = scalar_lea.vmem %s14, %s701
        %p703 = scmp.lt.s32.totalorder %s31, 1
        %s704 = scalar_select %p703, %s31, 1
        %s705 = scalar_lea.vmem %s15, %s704
        %p707 = scmp.eq.s32.totalorder %s31, 0
        // Predicated region
        $region89: #{bert_for_sts_forward.1} parent=83 // pred_check
          %p708 = pneg %p707
        $region90: #{bert_for_sts_forward.1} parent=83 // pred_check_branch
          %710 = sbr.rel (%p708) target = $region92
        $region91: #{bert_for_sts_forward.1} parent=83 // pred_region
          %v711 = vld [vmem:[%s0] sm:$0xff]
          %v712 = vld [vmem:[%s0 + $0x8] sm:$0xff]
          %v713 = vld [vmem:[%s0 + $0x10] sm:$0xff]
          %v714 = vld [vmem:[%s0 + $0x18] sm:$0xff]
          %v715 = vld [vmem:[%s2] sm:$0x1]
          %v716 = vld [vmem:[%s3] sm:$0x1]
          %717 = vadd.xlane.f32.xlu0 %v711
          %v718 = vpop.xlane.xlu0 %717
          %719 = vadd.xlane.f32.xlu0 %v712
          %v720 = vpop.xlane.xlu0 %719
          %721 = vadd.xlane.f32.xlu0 %v713
          %v722 = vpop.xlane.xlu0 %721
          %723 = vadd.xlane.f32.xlu0 %v714
          %v724 = vpop.xlane.xlu0 %723
          %v725 = vrcp.pop 128.0
          %v726 = vmul.f32 %v718, %v725
          %v727 = vmul.f32 %v720, %v725
          %v728 = vmul.f32 %v722, %v725
          %v729 = vmul.f32 %v724, %v725
          %v730 = vsub.f32 %v711, %v726
          %v731 = vsub.f32 %v712, %v727
          %v732 = vsub.f32 %v713, %v728
          %v733 = vsub.f32 %v714, %v729
          %v734 = vmul.f32 %v730, %v730
          %v735 = vmul.f32 %v731, %v731
          %v736 = vmul.f32 %v732, %v732
          %v737 = vmul.f32 %v733, %v733
          %738 = vadd.xlane.f32.xlu0 %v734
          %v739 = vpop.xlane.xlu0 %738
          %740 = vadd.xlane.f32.xlu0 %v735
          %v741 = vpop.xlane.xlu0 %740
          %742 = vadd.xlane.f32.xlu0 %v736
          %v743 = vpop.xlane.xlu0 %742
          %744 = vadd.xlane.f32.xlu0 %v737
          %v745 = vpop.xlane.xlu0 %744
          %v746 = vmul.f32 %v739, %v725
          %v747 = vmul.f32 %v741, %v725
          %v748 = vmul.f32 %v743, %v725
          %v749 = vmul.f32 %v745, %v725
          %v750 = vadd.f32 %v746, 1e-12
          %v751 = vadd.f32 %v747, 1e-12
          %v752 = vadd.f32 %v748, 1e-12
          %v753 = vadd.f32 %v749, 1e-12
          %v754 = vrsqrt.pop %v750
          %v755 = vrsqrt.pop %v751
          %v756 = vrsqrt.pop %v752
          %v757 = vrsqrt.pop %v753
          %v758 = vmul.f32 %v730, %v754
          %v759 = vmul.f32 %v731, %v755
          %v760 = vmul.f32 %v732, %v756
          %v761 = vmul.f32 %v733, %v757
          %v763 = vlaneseq
          %v764 = vshrl.u32 %v763, 7
          %v765 = vsub.s32 0, %v764
          %v766 = vrot.slane %v715, %v765
          %v768 = vmul.f32 %v758, %v766
          %v769 = vmul.f32 %v759, %v766
          %v770 = vmul.f32 %v760, %v766
          %v771 = vmul.f32 %v761, %v766
          %v773 = vlaneseq
          %v774 = vshrl.u32 %v773, 7
          %v775 = vsub.s32 0, %v774
          %v776 = vrot.slane %v716, %v775
          %v778 = vadd.f32 %v768, %v776
          %v779 = vadd.f32 %v769, %v776
          %v780 = vadd.f32 %v770, %v776
          %v781 = vadd.f32 %v771, %v776
          %782 = vst [vmem:[#allocation2] sm:$0xff] %v778
          %783 = vst [vmem:[#allocation2 + $0x8] sm:$0xff] %v779
          %784 = vst [vmem:[#allocation2 + $0x10] sm:$0xff] %v780
          %785 = vst [vmem:[#allocation2 + $0x18] sm:$0xff] %v781
        $region92: #{bert_for_sts_forward.1} parent=83 // pred_fallthru
          _
        %v786 = vld [vmem:[#allocation2] sm:$0xff]
        %v787 = vld [vmem:[#allocation2 + $0x8] sm:$0xff]
        %v788 = vld [vmem:[#allocation2 + $0x10] sm:$0xff]
        %v789 = vld [vmem:[#allocation2 + $0x18] sm:$0xff]
        %v790 = vld [vmem:[%s1] sm:$0x3]
        %v791 = vpack.c.bf16 %v787, %v786
        %v792 = vpack.c.bf16 %v789, %v788
        %v793 = vld [vmem:[%s669] sm:$0xff]
        %v794 = vld [vmem:[%s669 + $0x8] sm:$0xf]
        %v795 = vld [vmem:[%s669 + $0xc] sm:$0xff]
        %v796 = vld [vmem:[%s669 + $0x14] sm:$0xf]
        %v797 = vld [vmem:[%s669 + $0x18] sm:$0xff]
        %v798 = vld [vmem:[%s669 + $0x20] sm:$0xf]
        %v799 = vld [vmem:[%s669 + $0x24] sm:$0xff]
        %v800 = vld [vmem:[%s669 + $0x2c] sm:$0xf]
        %v801 = vld [vmem:[%s669 + $0x30] sm:$0xff]
        %v802 = vld [vmem:[%s669 + $0x38] sm:$0xf]
        %v803 = vld [vmem:[%s669 + $0x3c] sm:$0xff]
        %v804 = vld [vmem:[%s669 + $0x44] sm:$0xf]
        %v805 = vld [vmem:[%s669 + $0x48] sm:$0xff]
        %v806 = vld [vmem:[%s669 + $0x50] sm:$0xf]
        %v807 = vld [vmem:[%s669 + $0x54] sm:$0xff]
        %v808 = vld [vmem:[%s669 + $0x5c] sm:$0xf]
        %v809 = vld [vmem:[%s669 + $0x60] sm:$0xff]
        %v810 = vld [vmem:[%s669 + $0x68] sm:$0xf]
        %v811 = vld [vmem:[%s669 + $0x6c] sm:$0xff]
        %v812 = vld [vmem:[%s669 + $0x74] sm:$0xf]
        %v813 = vld [vmem:[%s669 + $0x78] sm:$0xff]
        %v814 = vld [vmem:[%s669 + $0x80] sm:$0xf]
        %v815 = vld [vmem:[%s669 + $0x84] sm:$0xff]
        %v816 = vld [vmem:[%s669 + $0x8c] sm:$0xf]
        %v817 = vld [vmem:[%s669 + $0x90] sm:$0xff]
        %v818 = vld [vmem:[%s669 + $0x98] sm:$0xf]
        %v819 = vld [vmem:[%s669 + $0x9c] sm:$0xff]
        %v820 = vld [vmem:[%s669 + $0xa4] sm:$0xf]
        %v821 = vld [vmem:[%s669 + $0xa8] sm:$0xff]
        %v822 = vld [vmem:[%s669 + $0xb0] sm:$0xf]
        %v823 = vld [vmem:[%s669 + $0xb4] sm:$0xff]
        %v824 = vld [vmem:[%s669 + $0xbc] sm:$0xf]
        %v825 = vld [vmem:[%s673] sm:$0x7]
        %v827 = vlaneseq
        %v828 = vshrl.u32 %v827, 7
        %v829 = vsub.s32 0, %v828
        %v830 = vrot.slane %v825, %v829
        %v831 = vlaneseq
        %v832 = vshrl.u32 %v831, 7
        %v833 = vsub.s32 1, %v832
        %v834 = vrot.slane %v825, %v833
        %v835 = vlaneseq
        %v836 = vshrl.u32 %v835, 7
        %v837 = vsub.s32 2, %v836
        %v838 = vrot.slane %v825, %v837
        %v874 = vunpack.c.l.b16 %v793
        %v875 = vunpack.c.h.b16 %v793
        %v876 = vunpack.c.l.b16 %v794
        %v877 = vunpack.c.l.b16 %v795
        %v878 = vunpack.c.h.b16 %v795
        %v879 = vunpack.c.l.b16 %v796
        %v880 = vunpack.c.l.b16 %v797
        %v881 = vunpack.c.h.b16 %v797
        %v882 = vunpack.c.l.b16 %v798
        %v883 = vunpack.c.l.b16 %v799
        %v884 = vunpack.c.h.b16 %v799
        %v885 = vunpack.c.l.b16 %v800
        %v886 = vunpack.c.l.b16 %v801
        %v887 = vunpack.c.h.b16 %v801
        %v888 = vunpack.c.l.b16 %v802
        %v889 = vunpack.c.l.b16 %v803
        %v890 = vunpack.c.h.b16 %v803
        %v891 = vunpack.c.l.b16 %v804
        %v892 = vunpack.c.l.b16 %v805
        %v893 = vunpack.c.h.b16 %v805
        %v894 = vunpack.c.l.b16 %v806
        %v895 = vunpack.c.l.b16 %v807
        %v896 = vunpack.c.h.b16 %v807
        %v897 = vunpack.c.l.b16 %v808
        %v898 = vunpack.c.l.b16 %v809
        %v899 = vunpack.c.h.b16 %v809
        %v900 = vunpack.c.l.b16 %v810
        %v901 = vunpack.c.l.b16 %v811
        %v902 = vunpack.c.h.b16 %v811
        %v903 = vunpack.c.l.b16 %v812
        %v904 = vunpack.c.l.b16 %v813
        %v905 = vunpack.c.h.b16 %v813
        %v906 = vunpack.c.l.b16 %v814
        %v907 = vunpack.c.l.b16 %v815
        %v908 = vunpack.c.h.b16 %v815
        %v909 = vunpack.c.l.b16 %v816
        %v910 = vunpack.c.l.b16 %v817
        %v911 = vunpack.c.h.b16 %v817
        %v912 = vunpack.c.l.b16 %v818
        %v913 = vunpack.c.l.b16 %v819
        %v914 = vunpack.c.h.b16 %v819
        %v915 = vunpack.c.l.b16 %v820
        %v916 = vunpack.c.l.b16 %v821
        %v917 = vunpack.c.h.b16 %v821
        %v918 = vunpack.c.l.b16 %v822
        %v919 = vunpack.c.l.b16 %v823
        %v920 = vunpack.c.h.b16 %v823
        %v921 = vunpack.c.l.b16 %v824
        %v922 = vpack.c.b16 %v877, %v874
        %v923 = vpack.c.b16 %v878, %v875
        %v924 = vpack.c.b16 %v879, %v876
        %v925 = vpack.c.b16 %v883, %v880
        %v926 = vpack.c.b16 %v884, %v881
        %v927 = vpack.c.b16 %v885, %v882
        %v928 = vpack.c.b16 %v889, %v886
        %v929 = vpack.c.b16 %v890, %v887
        %v930 = vpack.c.b16 %v891, %v888
        %v931 = vpack.c.b16 %v895, %v892
        %v932 = vpack.c.b16 %v896, %v893
        %v933 = vpack.c.b16 %v897, %v894
        %v934 = vpack.c.b16 %v901, %v898
        %v935 = vpack.c.b16 %v902, %v899
        %v936 = vpack.c.b16 %v903, %v900
        %v937 = vpack.c.b16 %v907, %v904
        %v938 = vpack.c.b16 %v908, %v905
        %v939 = vpack.c.b16 %v909, %v906
        %v940 = vpack.c.b16 %v913, %v910
        %v941 = vpack.c.b16 %v914, %v911
        %v942 = vpack.c.b16 %v915, %v912
        %v943 = vpack.c.b16 %v919, %v916
        %v944 = vpack.c.b16 %v920, %v917
        %v945 = vpack.c.b16 %v921, %v918
        %970 = vmatprep.subr.bf16.mxu0 %v923
        %971 = vmatpush1.bf16.msra.mxu0 %v922
        %972 = vmatprep.subr.bf16.mxu0 %v926
        %973 = vmatpush1.bf16.msra.mxu0 %v925
        %974 = vmatprep.subr.bf16.mxu0 %v929
        %975 = vmatpush1.bf16.msra.mxu0 %v928
        %976 = vmatprep.subr.bf16.mxu0 %v932
        %977 = vmatpush1.bf16.msra.mxu0 %v931
        %978 = vmatprep.subr.bf16.mxu0 %v935
        %979 = vmatpush1.bf16.msra.mxu0 %v934
        %980 = vmatprep.subr.bf16.mxu0 %v938
        %981 = vmatpush1.bf16.msra.mxu0 %v937
        %982 = vmatprep.subr.bf16.mxu0 %v941
        %983 = vmatpush1.bf16.msra.mxu0 %v940
        %984 = vmatprep.subr.bf16.mxu0 %v944
        %985 = vmatpush1.bf16.msra.mxu0 %v943
        %986 = vmatprep.subr.bf16.mxu0 0
        %987 = vmatpush1.bf16.msra.mxu0 0
        %988 = vmatprep.subr.bf16.mxu0 0
        %989 = vmatpush1.bf16.msra.mxu0 0
        %990 = vmatprep.subr.bf16.mxu0 0
        %991 = vmatpush1.bf16.msra.mxu0 0
        %992 = vmatprep.subr.bf16.mxu0 0
        %993 = vmatpush1.bf16.msra.mxu0 0
        %994 = vmatprep.subr.bf16.mxu0 0
        %995 = vmatpush1.bf16.msra.mxu0 0
        %996 = vmatprep.subr.bf16.mxu0 0
        %997 = vmatpush1.bf16.msra.mxu0 0
        %998 = vmatprep.subr.bf16.mxu0 0
        %999 = vmatpush1.bf16.msra.mxu0 0
        %1000 = vmatprep.subr.bf16.mxu0 0
        %1001 = vmatpush1.bf16.msra.mxu0 0
        %1002 = vmatprep.mubr.bf16.mxu0 0
        %1003 = vmatmul.mubr.bf16.gmra.mrb[0].mxu0 %v791
        %v1004 = vpop.f32.mrb[0].mxu0
        %v1005 = vadd.f32 %v830, %v1004
        %v1006 = vpop.f32.mrb[0].mxu0
        %v1007 = vadd.f32 %v834, %v1006
        %v1008 = vpop.f32.mrb[0].mxu0
        %v1009 = vadd.f32 %v830, %v1008
        %v1010 = vpop.f32.mrb[0].mxu0
        %v1011 = vadd.f32 %v834, %v1010
        %1012 = vmatprep.mubr.bf16.mxu0 0
        %1013 = vmatmul.mubr.bf16.gmra.mrb[0].mxu0 %v792
        %v1014 = vpop.f32.mrb[0].mxu0
        %v1015 = vadd.f32 %v830, %v1014
        %v1016 = vpop.f32.mrb[0].mxu0
        %v1017 = vadd.f32 %v834, %v1016
        %v1018 = vpop.f32.mrb[0].mxu0
        %v1019 = vadd.f32 %v830, %v1018
        %v1020 = vpop.f32.mrb[0].mxu0
        %v1021 = vadd.f32 %v834, %v1020
        %1022 = vdwg.mxu0
        %1023 = vmatprep.subr.bf16.mxu0 0
        %1024 = vmatpush1.bf16.msra.mxu0 %v924
        %1025 = vmatprep.subr.bf16.mxu0 0
        %1026 = vmatpush1.bf16.msra.mxu0 %v927
        %1027 = vmatprep.subr.bf16.mxu0 0
        %1028 = vmatpush1.bf16.msra.mxu0 %v930
        %1029 = vmatprep.subr.bf16.mxu0 0
        %1030 = vmatpush1.bf16.msra.mxu0 %v933
        %1031 = vmatprep.subr.bf16.mxu0 0
        %1032 = vmatpush1.bf16.msra.mxu0 %v936
        %1033 = vmatprep.subr.bf16.mxu0 0
        %1034 = vmatpush1.bf16.msra.mxu0 %v939
        %1035 = vmatprep.subr.bf16.mxu0 0
        %1036 = vmatpush1.bf16.msra.mxu0 %v942
        %1037 = vmatprep.subr.bf16.mxu0 0
        %1038 = vmatpush1.bf16.msra.mxu0 %v945
        %1039 = vmatprep.subr.bf16.mxu0 0
        %1040 = vmatpush1.bf16.msra.mxu0 0
        %1041 = vmatprep.subr.bf16.mxu0 0
        %1042 = vmatpush1.bf16.msra.mxu0 0
        %1043 = vmatprep.subr.bf16.mxu0 0
        %1044 = vmatpush1.bf16.msra.mxu0 0
        %1045 = vmatprep.subr.bf16.mxu0 0
        %1046 = vmatpush1.bf16.msra.mxu0 0
        %1047 = vmatprep.subr.bf16.mxu0 0
        %1048 = vmatpush1.bf16.msra.mxu0 0
        %1049 = vmatprep.subr.bf16.mxu0 0
        %1050 = vmatpush1.bf16.msra.mxu0 0
        %1051 = vmatprep.subr.bf16.mxu0 0
        %1052 = vmatpush1.bf16.msra.mxu0 0
        %1053 = vmatprep.subr.bf16.mxu0 0
        %1054 = vmatpush1.bf16.msra.mxu0 0
        %1055 = vmatprep.mubr.bf16.mxu0 0
        %1056 = vmatmul.mubr.bf16.gmra.mrb[0].mxu0 %v791
        %v1057 = vpop.f32.mrb[0].mxu0
        %v1058 = vadd.f32 %v838, %v1057
        %v1059 = vpop.f32.mrb[0].mxu0
        %v1060 = vpop.f32.mrb[0].mxu0
        %v1061 = vadd.f32 %v838, %v1060
        %v1062 = vpop.f32.mrb[0].mxu0
        %1063 = vmatprep.mubr.bf16.mxu0 0
        %1064 = vmatmul.mubr.bf16.gmra.mrb[0].mxu0 %v792
        %v1065 = vpop.f32.mrb[0].mxu0
        %v1066 = vadd.f32 %v838, %v1065
        %v1067 = vpop.f32.mrb[0].mxu0
        %v1068 = vpop.f32.mrb[0].mxu0
        %v1069 = vadd.f32 %v838, %v1068
        %v1070 = vpop.f32.mrb[0].mxu0
        %1071 = vdwg.mxu0
        %1074 = vrot.lane.b32.xlu0 %v1005, 96
        %v1075 = vpop.permute.xlu0 %1074
        %1076 = vrot.lane.b32.xlu0 %v1009, 96
        %v1077 = vpop.permute.xlu0 %1076
        %1080 = vrot.lane.b32.xlu0 %v1005, 64
        %v1081 = vpop.permute.xlu0 %1080
        %1082 = vrot.lane.b32.xlu0 %v1009, 64
        %v1083 = vpop.permute.xlu0 %1082
        %1086 = vrot.lane.b32.xlu0 %v1005, 32
        %v1087 = vpop.permute.xlu0 %1086
        %1088 = vrot.lane.b32.xlu0 %v1009, 32
        %v1089 = vpop.permute.xlu0 %1088
        %v1092 = vcombine.low %v1005, %v1081
        %v1093 = vcombine.high %v1005, %v1081
        %v1095 = vunpack.c.l.s4 1983009808
        %v1096 = vunpack.c.0.s8 %v1095
        %v1097 = vlaneseq
        %v1098 = vshrl.u32 %v1097, 7
        %v1099 = vsub.s32 %v1096, %v1098
        %v1100 = vrot.slane %v1092, %v1099
        %v1102 = vunpack.c.l.s4 1983009808
        %v1103 = vunpack.c.0.s8 %v1102
        %v1104 = vlaneseq
        %v1105 = vshrl.u32 %v1104, 7
        %v1106 = vsub.s32 %v1103, %v1105
        %v1107 = vrot.slane %v1093, %v1106
        %v1108 = vcombine.low %v1075, %v1087
        %v1109 = vcombine.high %v1075, %v1087
        %v1111 = vunpack.c.l.s4 1983009808
        %v1112 = vunpack.c.0.s8 %v1111
        %v1113 = vlaneseq
        %v1114 = vshrl.u32 %v1113, 7
        %v1115 = vsub.s32 %v1112, %v1114
        %v1116 = vrot.slane %v1108, %v1115
        %v1118 = vunpack.c.l.s4 1983009808
        %v1119 = vunpack.c.0.s8 %v1118
        %v1120 = vlaneseq
        %v1121 = vshrl.u32 %v1120, 7
        %v1122 = vsub.s32 %v1119, %v1121
        %v1123 = vrot.slane %v1109, %v1122
        %v1124 = vcombine.low %v1100, %v1116
        %v1125 = vcombine.high %v1100, %v1116
        %v1127 = vunpack.c.l.s4 1934713408
        %v1128 = vunpack.c.0.s8 %v1127
        %v1129 = vlaneseq
        %v1130 = vshrl.u32 %v1129, 7
        %v1131 = vsub.s32 %v1128, %v1130
        %v1132 = vrot.slane %v1124, %v1131
        %v1134 = vunpack.c.l.s4 1934713408
        %v1135 = vunpack.c.0.s8 %v1134
        %v1136 = vlaneseq
        %v1137 = vshrl.u32 %v1136, 7
        %v1138 = vsub.s32 %v1135, %v1137
        %v1139 = vrot.slane %v1125, %v1138
        %v1140 = vcombine.low %v1107, %v1123
        %v1141 = vcombine.high %v1107, %v1123
        %v1143 = vunpack.c.l.s4 1934713408
        %v1144 = vunpack.c.0.s8 %v1143
        %v1145 = vlaneseq
        %v1146 = vshrl.u32 %v1145, 7
        %v1147 = vsub.s32 %v1144, %v1146
        %v1148 = vrot.slane %v1140, %v1147
        %v1150 = vunpack.c.l.s4 1934713408
        %v1151 = vunpack.c.0.s8 %v1150
        %v1152 = vlaneseq
        %v1153 = vshrl.u32 %v1152, 7
        %v1154 = vsub.s32 %v1151, %v1153
        %v1155 = vrot.slane %v1141, %v1154
        %v1156 = vcombine.high %v1132, 0.0
        %v1157 = vcombine.high %v1139, 0.0
        %v1158 = vcombine.high %v1148, 0.0
        %v1159 = vcombine.high %v1155, 0.0
        %v1160 = vcombine.low %v1009, %v1083
        %v1161 = vcombine.high %v1009, %v1083
        %v1163 = vunpack.c.l.s4 1983009808
        %v1164 = vunpack.c.0.s8 %v1163
        %v1165 = vlaneseq
        %v1166 = vshrl.u32 %v1165, 7
        %v1167 = vsub.s32 %v1164, %v1166
        %v1168 = vrot.slane %v1160, %v1167
        %v1170 = vunpack.c.l.s4 1983009808
        %v1171 = vunpack.c.0.s8 %v1170
        %v1172 = vlaneseq
        %v1173 = vshrl.u32 %v1172, 7
        %v1174 = vsub.s32 %v1171, %v1173
        %v1175 = vrot.slane %v1161, %v1174
        %v1176 = vcombine.low %v1077, %v1089
        %v1177 = vcombine.high %v1077, %v1089
        %v1179 = vunpack.c.l.s4 1983009808
        %v1180 = vunpack.c.0.s8 %v1179
        %v1181 = vlaneseq
        %v1182 = vshrl.u32 %v1181, 7
        %v1183 = vsub.s32 %v1180, %v1182
        %v1184 = vrot.slane %v1176, %v1183
        %v1186 = vunpack.c.l.s4 1983009808
        %v1187 = vunpack.c.0.s8 %v1186
        %v1188 = vlaneseq
        %v1189 = vshrl.u32 %v1188, 7
        %v1190 = vsub.s32 %v1187, %v1189
        %v1191 = vrot.slane %v1177, %v1190
        %v1192 = vcombine.low %v1168, %v1184
        %v1193 = vcombine.high %v1168, %v1184
        %v1195 = vunpack.c.l.s4 1934713408
        %v1196 = vunpack.c.0.s8 %v1195
        %v1197 = vlaneseq
        %v1198 = vshrl.u32 %v1197, 7
        %v1199 = vsub.s32 %v1196, %v1198
        %v1200 = vrot.slane %v1192, %v1199
        %v1202 = vunpack.c.l.s4 1934713408
        %v1203 = vunpack.c.0.s8 %v1202
        %v1204 = vlaneseq
        %v1205 = vshrl.u32 %v1204, 7
        %v1206 = vsub.s32 %v1203, %v1205
        %v1207 = vrot.slane %v1193, %v1206
        %v1208 = vcombine.low %v1175, %v1191
        %v1209 = vcombine.high %v1175, %v1191
        %v1211 = vunpack.c.l.s4 1934713408
        %v1212 = vunpack.c.0.s8 %v1211
        %v1213 = vlaneseq
        %v1214 = vshrl.u32 %v1213, 7
        %v1215 = vsub.s32 %v1212, %v1214
        %v1216 = vrot.slane %v1208, %v1215
        %v1218 = vunpack.c.l.s4 1934713408
        %v1219 = vunpack.c.0.s8 %v1218
        %v1220 = vlaneseq
        %v1221 = vshrl.u32 %v1220, 7
        %v1222 = vsub.s32 %v1219, %v1221
        %v1223 = vrot.slane %v1209, %v1222
        %v1224 = vcombine.high %v1200, 0.0
        %v1225 = vcombine.high %v1207, 0.0
        %v1226 = vcombine.high %v1216, 0.0
        %v1227 = vcombine.high %v1223, 0.0
        %v1228 = vcombine.low %v1132, %v1139
        %v1230 = vunpack.c.l.s4 1983009808
        %v1231 = vunpack.c.0.s8 %v1230
        %v1232 = vlaneseq
        %v1233 = vshrl.u32 %v1232, 7
        %v1234 = vsub.s32 %v1231, %v1233
        %v1235 = vrot.slane %v1228, %v1234
        %v1236 = vcombine.low %v1156, %v1157
        %v1238 = vunpack.c.l.s4 1983009808
        %v1239 = vunpack.c.0.s8 %v1238
        %v1240 = vlaneseq
        %v1241 = vshrl.u32 %v1240, 7
        %v1242 = vsub.s32 %v1239, %v1241
        %v1243 = vrot.slane %v1236, %v1242
        %v1244 = vcombine.low %v1148, %v1155
        %v1246 = vunpack.c.l.s4 1983009808
        %v1247 = vunpack.c.0.s8 %v1246
        %v1248 = vlaneseq
        %v1249 = vshrl.u32 %v1248, 7
        %v1250 = vsub.s32 %v1247, %v1249
        %v1251 = vrot.slane %v1244, %v1250
        %v1252 = vcombine.low %v1158, %v1159
        %v1254 = vunpack.c.l.s4 1983009808
        %v1255 = vunpack.c.0.s8 %v1254
        %v1256 = vlaneseq
        %v1257 = vshrl.u32 %v1256, 7
        %v1258 = vsub.s32 %v1255, %v1257
        %v1259 = vrot.slane %v1252, %v1258
        %v1260 = vcombine.low %v1235, %v1243
        %v1261 = vcombine.high %v1235, %v1243
        %v1263 = vunpack.c.l.s4 1934713408
        %v1264 = vunpack.c.0.s8 %v1263
        %v1265 = vlaneseq
        %v1266 = vshrl.u32 %v1265, 7
        %v1267 = vsub.s32 %v1264, %v1266
        %v1268 = vrot.slane %v1260, %v1267
        %v1270 = vunpack.c.l.s4 1934713408
        %v1271 = vunpack.c.0.s8 %v1270
        %v1272 = vlaneseq
        %v1273 = vshrl.u32 %v1272, 7
        %v1274 = vsub.s32 %v1271, %v1273
        %v1275 = vrot.slane %v1261, %v1274
        %v1276 = vcombine.low %v1251, %v1259
        %v1277 = vcombine.high %v1251, %v1259
        %v1279 = vunpack.c.l.s4 1934713408
        %v1280 = vunpack.c.0.s8 %v1279
        %v1281 = vlaneseq
        %v1282 = vshrl.u32 %v1281, 7
        %v1283 = vsub.s32 %v1280, %v1282
        %v1284 = vrot.slane %v1276, %v1283
        %v1286 = vunpack.c.l.s4 1934713408
        %v1287 = vunpack.c.0.s8 %v1286
        %v1288 = vlaneseq
        %v1289 = vshrl.u32 %v1288, 7
        %v1290 = vsub.s32 %v1287, %v1289
        %v1291 = vrot.slane %v1277, %v1290
        %v1292 = vcombine.low %v1268, %v1284
        %v1293 = vcombine.high %v1268, %v1284
        %v1294 = vcombine.low %v1275, %v1291
        %v1295 = vcombine.high %v1275, %v1291
        %v1296 = vcombine.low %v1200, %v1207
        %v1298 = vunpack.c.l.s4 1983009808
        %v1299 = vunpack.c.0.s8 %v1298
        %v1300 = vlaneseq
        %v1301 = vshrl.u32 %v1300, 7
        %v1302 = vsub.s32 %v1299, %v1301
        %v1303 = vrot.slane %v1296, %v1302
        %v1304 = vcombine.low %v1224, %v1225
        %v1306 = vunpack.c.l.s4 1983009808
        %v1307 = vunpack.c.0.s8 %v1306
        %v1308 = vlaneseq
        %v1309 = vshrl.u32 %v1308, 7
        %v1310 = vsub.s32 %v1307, %v1309
        %v1311 = vrot.slane %v1304, %v1310
        %v1312 = vcombine.low %v1216, %v1223
        %v1314 = vunpack.c.l.s4 1983009808
        %v1315 = vunpack.c.0.s8 %v1314
        %v1316 = vlaneseq
        %v1317 = vshrl.u32 %v1316, 7
        %v1318 = vsub.s32 %v1315, %v1317
        %v1319 = vrot.slane %v1312, %v1318
        %v1320 = vcombine.low %v1226, %v1227
        %v1322 = vunpack.c.l.s4 1983009808
        %v1323 = vunpack.c.0.s8 %v1322
        %v1324 = vlaneseq
        %v1325 = vshrl.u32 %v1324, 7
        %v1326 = vsub.s32 %v1323, %v1325
        %v1327 = vrot.slane %v1320, %v1326
        %v1328 = vcombine.low %v1303, %v1311
        %v1329 = vcombine.high %v1303, %v1311
        %v1331 = vunpack.c.l.s4 1934713408
        %v1332 = vunpack.c.0.s8 %v1331
        %v1333 = vlaneseq
        %v1334 = vshrl.u32 %v1333, 7
        %v1335 = vsub.s32 %v1332, %v1334
        %v1336 = vrot.slane %v1328, %v1335
        %v1338 = vunpack.c.l.s4 1934713408
        %v1339 = vunpack.c.0.s8 %v1338
        %v1340 = vlaneseq
        %v1341 = vshrl.u32 %v1340, 7
        %v1342 = vsub.s32 %v1339, %v1341
        %v1343 = vrot.slane %v1329, %v1342
        %v1344 = vcombine.low %v1319, %v1327
        %v1345 = vcombine.high %v1319, %v1327
        %v1347 = vunpack.c.l.s4 1934713408
        %v1348 = vunpack.c.0.s8 %v1347
        %v1349 = vlaneseq
        %v1350 = vshrl.u32 %v1349, 7
        %v1351 = vsub.s32 %v1348, %v1350
        %v1352 = vrot.slane %v1344, %v1351
        %v1354 = vunpack.c.l.s4 1934713408
        %v1355 = vunpack.c.0.s8 %v1354
        %v1356 = vlaneseq
        %v1357 = vshrl.u32 %v1356, 7
        %v1358 = vsub.s32 %v1355, %v1357
        %v1359 = vrot.slane %v1345, %v1358
        %v1360 = vcombine.low %v1336, %v1352
        %v1361 = vcombine.high %v1336, %v1352
        %v1362 = vcombine.low %v1343, %v1359
        %v1363 = vcombine.high %v1343, %v1359
        %1366 = vrot.lane.b32.xlu0 %v1007, 96
        %v1367 = vpop.permute.xlu0 %1366
        %1368 = vrot.lane.b32.xlu0 %v1011, 96
        %v1369 = vpop.permute.xlu0 %1368
        %1372 = vrot.lane.b32.xlu0 %v1007, 64
        %v1373 = vpop.permute.xlu0 %1372
        %1374 = vrot.lane.b32.xlu0 %v1011, 64
        %v1375 = vpop.permute.xlu0 %1374
        %1378 = vrot.lane.b32.xlu0 %v1007, 32
        %v1379 = vpop.permute.xlu0 %1378
        %1380 = vrot.lane.b32.xlu0 %v1011, 32
        %v1381 = vpop.permute.xlu0 %1380
        %v1384 = vcombine.low %v1007, %v1373
        %v1385 = vcombine.high %v1007, %v1373
        %v1387 = vunpack.c.l.s4 1983009808
        %v1388 = vunpack.c.0.s8 %v1387
        %v1389 = vlaneseq
        %v1390 = vshrl.u32 %v1389, 7
        %v1391 = vsub.s32 %v1388, %v1390
        %v1392 = vrot.slane %v1384, %v1391
        %v1394 = vunpack.c.l.s4 1983009808
        %v1395 = vunpack.c.0.s8 %v1394
        %v1396 = vlaneseq
        %v1397 = vshrl.u32 %v1396, 7
        %v1398 = vsub.s32 %v1395, %v1397
        %v1399 = vrot.slane %v1385, %v1398
        %v1400 = vcombine.low %v1367, %v1379
        %v1401 = vcombine.high %v1367, %v1379
        %v1403 = vunpack.c.l.s4 1983009808
        %v1404 = vunpack.c.0.s8 %v1403
        %v1405 = vlaneseq
        %v1406 = vshrl.u32 %v1405, 7
        %v1407 = vsub.s32 %v1404, %v1406
        %v1408 = vrot.slane %v1400, %v1407
        %v1410 = vunpack.c.l.s4 1983009808
        %v1411 = vunpack.c.0.s8 %v1410
        %v1412 = vlaneseq
        %v1413 = vshrl.u32 %v1412, 7
        %v1414 = vsub.s32 %v1411, %v1413
        %v1415 = vrot.slane %v1401, %v1414
        %v1416 = vcombine.low %v1392, %v1408
        %v1417 = vcombine.high %v1392, %v1408
        %v1419 = vunpack.c.l.s4 1934713408
        %v1420 = vunpack.c.0.s8 %v1419
        %v1421 = vlaneseq
        %v1422 = vshrl.u32 %v1421, 7
        %v1423 = vsub.s32 %v1420, %v1422
        %v1424 = vrot.slane %v1416, %v1423
        %v1426 = vunpack.c.l.s4 1934713408
        %v1427 = vunpack.c.0.s8 %v1426
        %v1428 = vlaneseq
        %v1429 = vshrl.u32 %v1428, 7
        %v1430 = vsub.s32 %v1427, %v1429
        %v1431 = vrot.slane %v1417, %v1430
        %v1432 = vcombine.low %v1399, %v1415
        %v1433 = vcombine.high %v1399, %v1415
        %v1435 = vunpack.c.l.s4 1934713408
        %v1436 = vunpack.c.0.s8 %v1435
        %v1437 = vlaneseq
        %v1438 = vshrl.u32 %v1437, 7
        %v1439 = vsub.s32 %v1436, %v1438
        %v1440 = vrot.slane %v1432, %v1439
        %v1442 = vunpack.c.l.s4 1934713408
        %v1443 = vunpack.c.0.s8 %v1442
        %v1444 = vlaneseq
        %v1445 = vshrl.u32 %v1444, 7
        %v1446 = vsub.s32 %v1443, %v1445
        %v1447 = vrot.slane %v1433, %v1446
        %v1448 = vcombine.high %v1424, 0.0
        %v1449 = vcombine.high %v1431, 0.0
        %v1450 = vcombine.high %v1440, 0.0
        %v1451 = vcombine.high %v1447, 0.0
        %v1452 = vcombine.low %v1011, %v1375
        %v1453 = vcombine.high %v1011, %v1375
        %v1455 = vunpack.c.l.s4 1983009808
        %v1456 = vunpack.c.0.s8 %v1455
        %v1457 = vlaneseq
        %v1458 = vshrl.u32 %v1457, 7
        %v1459 = vsub.s32 %v1456, %v1458
        %v1460 = vrot.slane %v1452, %v1459
        %v1462 = vunpack.c.l.s4 1983009808
        %v1463 = vunpack.c.0.s8 %v1462
        %v1464 = vlaneseq
        %v1465 = vshrl.u32 %v1464, 7
        %v1466 = vsub.s32 %v1463, %v1465
        %v1467 = vrot.slane %v1453, %v1466
        %v1468 = vcombine.low %v1369, %v1381
        %v1469 = vcombine.high %v1369, %v1381
        %v1471 = vunpack.c.l.s4 1983009808
        %v1472 = vunpack.c.0.s8 %v1471
        %v1473 = vlaneseq
        %v1474 = vshrl.u32 %v1473, 7
        %v1475 = vsub.s32 %v1472, %v1474
        %v1476 = vrot.slane %v1468, %v1475
        %v1478 = vunpack.c.l.s4 1983009808
        %v1479 = vunpack.c.0.s8 %v1478
        %v1480 = vlaneseq
        %v1481 = vshrl.u32 %v1480, 7
        %v1482 = vsub.s32 %v1479, %v1481
        %v1483 = vrot.slane %v1469, %v1482
        %v1484 = vcombine.low %v1460, %v1476
        %v1485 = vcombine.high %v1460, %v1476
        %v1487 = vunpack.c.l.s4 1934713408
        %v1488 = vunpack.c.0.s8 %v1487
        %v1489 = vlaneseq
        %v1490 = vshrl.u32 %v1489, 7
        %v1491 = vsub.s32 %v1488, %v1490
        %v1492 = vrot.slane %v1484, %v1491
        %v1494 = vunpack.c.l.s4 1934713408
        %v1495 = vunpack.c.0.s8 %v1494
        %v1496 = vlaneseq
        %v1497 = vshrl.u32 %v1496, 7
        %v1498 = vsub.s32 %v1495, %v1497
        %v1499 = vrot.slane %v1485, %v1498
        %v1500 = vcombine.low %v1467, %v1483
        %v1501 = vcombine.high %v1467, %v1483
        %v1503 = vunpack.c.l.s4 1934713408
        %v1504 = vunpack.c.0.s8 %v1503
        %v1505 = vlaneseq
        %v1506 = vshrl.u32 %v1505, 7
        %v1507 = vsub.s32 %v1504, %v1506
        %v1508 = vrot.slane %v1500, %v1507
        %v1510 = vunpack.c.l.s4 1934713408
        %v1511 = vunpack.c.0.s8 %v1510
        %v1512 = vlaneseq
        %v1513 = vshrl.u32 %v1512, 7
        %v1514 = vsub.s32 %v1511, %v1513
        %v1515 = vrot.slane %v1501, %v1514
        %v1516 = vcombine.high %v1492, 0.0
        %v1517 = vcombine.high %v1499, 0.0
        %v1518 = vcombine.high %v1508, 0.0
        %v1519 = vcombine.high %v1515, 0.0
        %v1520 = vcombine.low %v1424, %v1431
        %v1522 = vunpack.c.l.s4 1983009808
        %v1523 = vunpack.c.0.s8 %v1522
        %v1524 = vlaneseq
        %v1525 = vshrl.u32 %v1524, 7
        %v1526 = vsub.s32 %v1523, %v1525
        %v1527 = vrot.slane %v1520, %v1526
        %v1528 = vcombine.low %v1448, %v1449
        %v1530 = vunpack.c.l.s4 1983009808
        %v1531 = vunpack.c.0.s8 %v1530
        %v1532 = vlaneseq
        %v1533 = vshrl.u32 %v1532, 7
        %v1534 = vsub.s32 %v1531, %v1533
        %v1535 = vrot.slane %v1528, %v1534
        %v1536 = vcombine.low %v1440, %v1447
        %v1538 = vunpack.c.l.s4 1983009808
        %v1539 = vunpack.c.0.s8 %v1538
        %v1540 = vlaneseq
        %v1541 = vshrl.u32 %v1540, 7
        %v1542 = vsub.s32 %v1539, %v1541
        %v1543 = vrot.slane %v1536, %v1542
        %v1544 = vcombine.low %v1450, %v1451
        %v1546 = vunpack.c.l.s4 1983009808
        %v1547 = vunpack.c.0.s8 %v1546
        %v1548 = vlaneseq
        %v1549 = vshrl.u32 %v1548, 7
        %v1550 = vsub.s32 %v1547, %v1549
        %v1551 = vrot.slane %v1544, %v1550
        %v1552 = vcombine.low %v1527, %v1535
        %v1553 = vcombine.high %v1527, %v1535
        %v1555 = vunpack.c.l.s4 1934713408
        %v1556 = vunpack.c.0.s8 %v1555
        %v1557 = vlaneseq
        %v1558 = vshrl.u32 %v1557, 7
        %v1559 = vsub.s32 %v1556, %v1558
        %v1560 = vrot.slane %v1552, %v1559
        %v1562 = vunpack.c.l.s4 1934713408
        %v1563 = vunpack.c.0.s8 %v1562
        %v1564 = vlaneseq
        %v1565 = vshrl.u32 %v1564, 7
        %v1566 = vsub.s32 %v1563, %v1565
        %v1567 = vrot.slane %v1553, %v1566
        %v1568 = vcombine.low %v1543, %v1551
        %v1569 = vcombine.high %v1543, %v1551
        %v1571 = vunpack.c.l.s4 1934713408
        %v1572 = vunpack.c.0.s8 %v1571
        %v1573 = vlaneseq
        %v1574 = vshrl.u32 %v1573, 7
        %v1575 = vsub.s32 %v1572, %v1574
        %v1576 = vrot.slane %v1568, %v1575
        %v1578 = vunpack.c.l.s4 1934713408
        %v1579 = vunpack.c.0.s8 %v1578
        %v1580 = vlaneseq
        %v1581 = vshrl.u32 %v1580, 7
        %v1582 = vsub.s32 %v1579, %v1581
        %v1583 = vrot.slane %v1569, %v1582
        %v1584 = vcombine.low %v1560, %v1576
        %v1585 = vcombine.high %v1560, %v1576
        %v1586 = vcombine.low %v1567, %v1583
        %v1587 = vcombine.high %v1567, %v1583
        %v1588 = vcombine.low %v1492, %v1499
        %v1590 = vunpack.c.l.s4 1983009808
        %v1591 = vunpack.c.0.s8 %v1590
        %v1592 = vlaneseq
        %v1593 = vshrl.u32 %v1592, 7
        %v1594 = vsub.s32 %v1591, %v1593
        %v1595 = vrot.slane %v1588, %v1594
        %v1596 = vcombine.low %v1516, %v1517
        %v1598 = vunpack.c.l.s4 1983009808
        %v1599 = vunpack.c.0.s8 %v1598
        %v1600 = vlaneseq
        %v1601 = vshrl.u32 %v1600, 7
        %v1602 = vsub.s32 %v1599, %v1601
        %v1603 = vrot.slane %v1596, %v1602
        %v1604 = vcombine.low %v1508, %v1515
        %v1606 = vunpack.c.l.s4 1983009808
        %v1607 = vunpack.c.0.s8 %v1606
        %v1608 = vlaneseq
        %v1609 = vshrl.u32 %v1608, 7
        %v1610 = vsub.s32 %v1607, %v1609
        %v1611 = vrot.slane %v1604, %v1610
        %v1612 = vcombine.low %v1518, %v1519
        %v1614 = vunpack.c.l.s4 1983009808
        %v1615 = vunpack.c.0.s8 %v1614
        %v1616 = vlaneseq
        %v1617 = vshrl.u32 %v1616, 7
        %v1618 = vsub.s32 %v1615, %v1617
        %v1619 = vrot.slane %v1612, %v1618
        %v1620 = vcombine.low %v1595, %v1603
        %v1621 = vcombine.high %v1595, %v1603
        %v1623 = vunpack.c.l.s4 1934713408
        %v1624 = vunpack.c.0.s8 %v1623
        %v1625 = vlaneseq
        %v1626 = vshrl.u32 %v1625, 7
        %v1627 = vsub.s32 %v1624, %v1626
        %v1628 = vrot.slane %v1620, %v1627
        %v1630 = vunpack.c.l.s4 1934713408
        %v1631 = vunpack.c.0.s8 %v1630
        %v1632 = vlaneseq
        %v1633 = vshrl.u32 %v1632, 7
        %v1634 = vsub.s32 %v1631, %v1633
        %v1635 = vrot.slane %v1621, %v1634
        %v1636 = vcombine.low %v1611, %v1619
        %v1637 = vcombine.high %v1611, %v1619
        %v1639 = vunpack.c.l.s4 1934713408
        %v1640 = vunpack.c.0.s8 %v1639
        %v1641 = vlaneseq
        %v1642 = vshrl.u32 %v1641, 7
        %v1643 = vsub.s32 %v1640, %v1642
        %v1644 = vrot.slane %v1636, %v1643
        %v1646 = vunpack.c.l.s4 1934713408
        %v1647 = vunpack.c.0.s8 %v1646
        %v1648 = vlaneseq
        %v1649 = vshrl.u32 %v1648, 7
        %v1650 = vsub.s32 %v1647, %v1649
        %v1651 = vrot.slane %v1637, %v1650
        %v1652 = vcombine.low %v1628, %v1644
        %v1653 = vcombine.high %v1628, %v1644
        %v1654 = vcombine.low %v1635, %v1651
        %v1655 = vcombine.high %v1635, %v1651
        %1658 = vrot.lane.b32.xlu0 %v1058, 96
        %v1659 = vpop.permute.xlu0 %1658
        %1660 = vrot.lane.b32.xlu0 %v1061, 96
        %v1661 = vpop.permute.xlu0 %1660
        %1664 = vrot.lane.b32.xlu0 %v1058, 64
        %v1665 = vpop.permute.xlu0 %1664
        %1666 = vrot.lane.b32.xlu0 %v1061, 64
        %v1667 = vpop.permute.xlu0 %1666
        %1670 = vrot.lane.b32.xlu0 %v1058, 32
        %v1671 = vpop.permute.xlu0 %1670
        %1672 = vrot.lane.b32.xlu0 %v1061, 32
        %v1673 = vpop.permute.xlu0 %1672
        %v1676 = vcombine.low %v1058, %v1665
        %v1677 = vcombine.high %v1058, %v1665
        %v1679 = vunpack.c.l.s4 1983009808
        %v1680 = vunpack.c.0.s8 %v1679
        %v1681 = vlaneseq
        %v1682 = vshrl.u32 %v1681, 7
        %v1683 = vsub.s32 %v1680, %v1682
        %v1684 = vrot.slane %v1676, %v1683
        %v1686 = vunpack.c.l.s4 1983009808
        %v1687 = vunpack.c.0.s8 %v1686
        %v1688 = vlaneseq
        %v1689 = vshrl.u32 %v1688, 7
        %v1690 = vsub.s32 %v1687, %v1689
        %v1691 = vrot.slane %v1677, %v1690
        %v1692 = vcombine.low %v1659, %v1671
        %v1693 = vcombine.high %v1659, %v1671
        %v1695 = vunpack.c.l.s4 1983009808
        %v1696 = vunpack.c.0.s8 %v1695
        %v1697 = vlaneseq
        %v1698 = vshrl.u32 %v1697, 7
        %v1699 = vsub.s32 %v1696, %v1698
        %v1700 = vrot.slane %v1692, %v1699
        %v1702 = vunpack.c.l.s4 1983009808
        %v1703 = vunpack.c.0.s8 %v1702
        %v1704 = vlaneseq
        %v1705 = vshrl.u32 %v1704, 7
        %v1706 = vsub.s32 %v1703, %v1705
        %v1707 = vrot.slane %v1693, %v1706
        %v1708 = vcombine.low %v1684, %v1700
        %v1709 = vcombine.high %v1684, %v1700
        %v1711 = vunpack.c.l.s4 1934713408
        %v1712 = vunpack.c.0.s8 %v1711
        %v1713 = vlaneseq
        %v1714 = vshrl.u32 %v1713, 7
        %v1715 = vsub.s32 %v1712, %v1714
        %v1716 = vrot.slane %v1708, %v1715
        %v1718 = vunpack.c.l.s4 1934713408
        %v1719 = vunpack.c.0.s8 %v1718
        %v1720 = vlaneseq
        %v1721 = vshrl.u32 %v1720, 7
        %v1722 = vsub.s32 %v1719, %v1721
        %v1723 = vrot.slane %v1709, %v1722
        %v1724 = vcombine.low %v1691, %v1707
        %v1725 = vcombine.high %v1691, %v1707
        %v1727 = vunpack.c.l.s4 1934713408
        %v1728 = vunpack.c.0.s8 %v1727
        %v1729 = vlaneseq
        %v1730 = vshrl.u32 %v1729, 7
        %v1731 = vsub.s32 %v1728, %v1730
        %v1732 = vrot.slane %v1724, %v1731
        %v1734 = vunpack.c.l.s4 1934713408
        %v1735 = vunpack.c.0.s8 %v1734
        %v1736 = vlaneseq
        %v1737 = vshrl.u32 %v1736, 7
        %v1738 = vsub.s32 %v1735, %v1737
        %v1739 = vrot.slane %v1725, %v1738
        %v1740 = vcombine.high %v1716, 0.0
        %v1741 = vcombine.high %v1723, 0.0
        %v1742 = vcombine.high %v1732, 0.0
        %v1743 = vcombine.high %v1739, 0.0
        %v1744 = vcombine.low %v1061, %v1667
        %v1745 = vcombine.high %v1061, %v1667
        %v1747 = vunpack.c.l.s4 1983009808
        %v1748 = vunpack.c.0.s8 %v1747
        %v1749 = vlaneseq
        %v1750 = vshrl.u32 %v1749, 7
        %v1751 = vsub.s32 %v1748, %v1750
        %v1752 = vrot.slane %v1744, %v1751
        %v1754 = vunpack.c.l.s4 1983009808
        %v1755 = vunpack.c.0.s8 %v1754
        %v1756 = vlaneseq
        %v1757 = vshrl.u32 %v1756, 7
        %v1758 = vsub.s32 %v1755, %v1757
        %v1759 = vrot.slane %v1745, %v1758
        %v1760 = vcombine.low %v1661, %v1673
        %v1761 = vcombine.high %v1661, %v1673
        %v1763 = vunpack.c.l.s4 1983009808
        %v1764 = vunpack.c.0.s8 %v1763
        %v1765 = vlaneseq
        %v1766 = vshrl.u32 %v1765, 7
        %v1767 = vsub.s32 %v1764, %v1766
        %v1768 = vrot.slane %v1760, %v1767
        %v1770 = vunpack.c.l.s4 1983009808
        %v1771 = vunpack.c.0.s8 %v1770
        %v1772 = vlaneseq
        %v1773 = vshrl.u32 %v1772, 7
        %v1774 = vsub.s32 %v1771, %v1773
        %v1775 = vrot.slane %v1761, %v1774
        %v1776 = vcombine.low %v1752, %v1768
        %v1777 = vcombine.high %v1752, %v1768
        %v1779 = vunpack.c.l.s4 1934713408
        %v1780 = vunpack.c.0.s8 %v1779
        %v1781 = vlaneseq
        %v1782 = vshrl.u32 %v1781, 7
        %v1783 = vsub.s32 %v1780, %v1782
        %v1784 = vrot.slane %v1776, %v1783
        %v1786 = vunpack.c.l.s4 1934713408
        %v1787 = vunpack.c.0.s8 %v1786
        %v1788 = vlaneseq
        %v1789 = vshrl.u32 %v1788, 7
        %v1790 = vsub.s32 %v1787, %v1789
        %v1791 = vrot.slane %v1777, %v1790
        %v1792 = vcombine.low %v1759, %v1775
        %v1793 = vcombine.high %v1759, %v1775
        %v1795 = vunpack.c.l.s4 1934713408
        %v1796 = vunpack.c.0.s8 %v1795
        %v1797 = vlaneseq
        %v1798 = vshrl.u32 %v1797, 7
        %v1799 = vsub.s32 %v1796, %v1798
        %v1800 = vrot.slane %v1792, %v1799
        %v1802 = vunpack.c.l.s4 1934713408
        %v1803 = vunpack.c.0.s8 %v1802
        %v1804 = vlaneseq
        %v1805 = vshrl.u32 %v1804, 7
        %v1806 = vsub.s32 %v1803, %v1805
        %v1807 = vrot.slane %v1793, %v1806
        %v1808 = vcombine.high %v1784, 0.0
        %v1809 = vcombine.high %v1791, 0.0
        %v1810 = vcombine.high %v1800, 0.0
        %v1811 = vcombine.high %v1807, 0.0
        %v1812 = vcombine.low %v1716, %v1723
        %v1814 = vunpack.c.l.s4 1983009808
        %v1815 = vunpack.c.0.s8 %v1814
        %v1816 = vlaneseq
        %v1817 = vshrl.u32 %v1816, 7
        %v1818 = vsub.s32 %v1815, %v1817
        %v1819 = vrot.slane %v1812, %v1818
        %v1820 = vcombine.low %v1740, %v1741
        %v1822 = vunpack.c.l.s4 1983009808
        %v1823 = vunpack.c.0.s8 %v1822
        %v1824 = vlaneseq
        %v1825 = vshrl.u32 %v1824, 7
        %v1826 = vsub.s32 %v1823, %v1825
        %v1827 = vrot.slane %v1820, %v1826
        %v1828 = vcombine.low %v1732, %v1739
        %v1830 = vunpack.c.l.s4 1983009808
        %v1831 = vunpack.c.0.s8 %v1830
        %v1832 = vlaneseq
        %v1833 = vshrl.u32 %v1832, 7
        %v1834 = vsub.s32 %v1831, %v1833
        %v1835 = vrot.slane %v1828, %v1834
        %v1836 = vcombine.low %v1742, %v1743
        %v1838 = vunpack.c.l.s4 1983009808
        %v1839 = vunpack.c.0.s8 %v1838
        %v1840 = vlaneseq
        %v1841 = vshrl.u32 %v1840, 7
        %v1842 = vsub.s32 %v1839, %v1841
        %v1843 = vrot.slane %v1836, %v1842
        %v1844 = vcombine.low %v1819, %v1827
        %v1845 = vcombine.high %v1819, %v1827
        %v1847 = vunpack.c.l.s4 1934713408
        %v1848 = vunpack.c.0.s8 %v1847
        %v1849 = vlaneseq
        %v1850 = vshrl.u32 %v1849, 7
        %v1851 = vsub.s32 %v1848, %v1850
        %v1852 = vrot.slane %v1844, %v1851
        %v1854 = vunpack.c.l.s4 1934713408
        %v1855 = vunpack.c.0.s8 %v1854
        %v1856 = vlaneseq
        %v1857 = vshrl.u32 %v1856, 7
        %v1858 = vsub.s32 %v1855, %v1857
        %v1859 = vrot.slane %v1845, %v1858
        %v1860 = vcombine.low %v1835, %v1843
        %v1861 = vcombine.high %v1835, %v1843
        %v1863 = vunpack.c.l.s4 1934713408
        %v1864 = vunpack.c.0.s8 %v1863
        %v1865 = vlaneseq
        %v1866 = vshrl.u32 %v1865, 7
        %v1867 = vsub.s32 %v1864, %v1866
        %v1868 = vrot.slane %v1860, %v1867
        %v1870 = vunpack.c.l.s4 1934713408
        %v1871 = vunpack.c.0.s8 %v1870
        %v1872 = vlaneseq
        %v1873 = vshrl.u32 %v1872, 7
        %v1874 = vsub.s32 %v1871, %v1873
        %v1875 = vrot.slane %v1861, %v1874
        %v1876 = vcombine.low %v1852, %v1868
        %v1877 = vcombine.high %v1852, %v1868
        %v1878 = vcombine.low %v1859, %v1875
        %v1879 = vcombine.high %v1859, %v1875
        %v1880 = vcombine.low %v1784, %v1791
        %v1882 = vunpack.c.l.s4 1983009808
        %v1883 = vunpack.c.0.s8 %v1882
        %v1884 = vlaneseq
        %v1885 = vshrl.u32 %v1884, 7
        %v1886 = vsub.s32 %v1883, %v1885
        %v1887 = vrot.slane %v1880, %v1886
        %v1888 = vcombine.low %v1808, %v1809
        %v1890 = vunpack.c.l.s4 1983009808
        %v1891 = vunpack.c.0.s8 %v1890
        %v1892 = vlaneseq
        %v1893 = vshrl.u32 %v1892, 7
        %v1894 = vsub.s32 %v1891, %v1893
        %v1895 = vrot.slane %v1888, %v1894
        %v1896 = vcombine.low %v1800, %v1807
        %v1898 = vunpack.c.l.s4 1983009808
        %v1899 = vunpack.c.0.s8 %v1898
        %v1900 = vlaneseq
        %v1901 = vshrl.u32 %v1900, 7
        %v1902 = vsub.s32 %v1899, %v1901
        %v1903 = vrot.slane %v1896, %v1902
        %v1904 = vcombine.low %v1810, %v1811
        %v1906 = vunpack.c.l.s4 1983009808
        %v1907 = vunpack.c.0.s8 %v1906
        %v1908 = vlaneseq
        %v1909 = vshrl.u32 %v1908, 7
        %v1910 = vsub.s32 %v1907, %v1909
        %v1911 = vrot.slane %v1904, %v1910
        %v1912 = vcombine.low %v1887, %v1895
        %v1913 = vcombine.high %v1887, %v1895
        %v1915 = vunpack.c.l.s4 1934713408
        %v1916 = vunpack.c.0.s8 %v1915
        %v1917 = vlaneseq
        %v1918 = vshrl.u32 %v1917, 7
        %v1919 = vsub.s32 %v1916, %v1918
        %v1920 = vrot.slane %v1912, %v1919
        %v1922 = vunpack.c.l.s4 1934713408
        %v1923 = vunpack.c.0.s8 %v1922
        %v1924 = vlaneseq
        %v1925 = vshrl.u32 %v1924, 7
        %v1926 = vsub.s32 %v1923, %v1925
        %v1927 = vrot.slane %v1913, %v1926
        %v1928 = vcombine.low %v1903, %v1911
        %v1929 = vcombine.high %v1903, %v1911
        %v1931 = vunpack.c.l.s4 1934713408
        %v1932 = vunpack.c.0.s8 %v1931
        %v1933 = vlaneseq
        %v1934 = vshrl.u32 %v1933, 7
        %v1935 = vsub.s32 %v1932, %v1934
        %v1936 = vrot.slane %v1928, %v1935
        %v1938 = vunpack.c.l.s4 1934713408
        %v1939 = vunpack.c.0.s8 %v1938
        %v1940 = vlaneseq
        %v1941 = vshrl.u32 %v1940, 7
        %v1942 = vsub.s32 %v1939, %v1941
        %v1943 = vrot.slane %v1929, %v1942
        %v1944 = vcombine.low %v1920, %v1936
        %v1945 = vcombine.high %v1920, %v1936
        %v1946 = vcombine.low %v1927, %v1943
        %v1947 = vcombine.high %v1927, %v1943
        %v1948 = vsub.f32 1.0, %v790
        %v1949 = vmul.f32 %v1948, -1e+09
        %v1950 = vpack.c.bf16 %v1360, %v1292
        %v1951 = vpack.c.bf16 %v1361, %v1293
        %v1952 = vpack.c.bf16 %v1362, %v1294
        %v1953 = vpack.c.bf16 %v1363, %v1295
        %v1954 = vpack.c.bf16 %v1652, %v1584
        %v1955 = vpack.c.bf16 %v1653, %v1585
        %v1956 = vpack.c.bf16 %v1654, %v1586
        %v1957 = vpack.c.bf16 %v1655, %v1587
        %vm1958 = vcmask 261120
        %v1960 = vsel %vm1958, %v1950, 0
        %v1963 = vsel %vm1958, %v1954, 0
        %1965 = vmatprep.subr.bf16.mxu0 0
        %1966 = vmatpush1.bf16.xpose.msra.mxu0 %v1963
        %1967 = vmatprep.subr.bf16.mxu0 0
        %1968 = vmatpush1.bf16.xpose.msra.mxu0 0
        %1969 = vmatprep.subr.bf16.mxu0 0
        %1970 = vmatpush1.bf16.xpose.msra.mxu0 0
        %1971 = vmatprep.subr.bf16.mxu0 0
        %1972 = vmatpush1.bf16.xpose.msra.mxu0 0
        %1973 = vmatprep.subr.bf16.mxu0 0
        %1974 = vmatpush1.bf16.xpose.msra.mxu0 0
        %1975 = vmatprep.subr.bf16.mxu0 0
        %1976 = vmatpush1.bf16.xpose.msra.mxu0 0
        %1977 = vmatprep.subr.bf16.mxu0 0
        %1978 = vmatpush1.bf16.xpose.msra.mxu0 0
        %1979 = vmatprep.subr.bf16.mxu0 0
        %1980 = vmatpush1.bf16.xpose.msra.mxu0 0
        %1981 = vmatprep.subr.bf16.mxu0 0
        %1982 = vmatpush1.bf16.xpose.msra.mxu0 0
        %1983 = vmatprep.subr.bf16.mxu0 0
        %1984 = vmatpush1.bf16.xpose.msra.mxu0 0
        %1985 = vmatprep.subr.bf16.mxu0 0
        %1986 = vmatpush1.bf16.xpose.msra.mxu0 0
        %1987 = vmatprep.subr.bf16.mxu0 0
        %1988 = vmatpush1.bf16.xpose.msra.mxu0 0
        %1989 = vmatprep.subr.bf16.mxu0 0
        %1990 = vmatpush1.bf16.xpose.msra.mxu0 0
        %1991 = vmatprep.subr.bf16.mxu0 0
        %1992 = vmatpush1.bf16.xpose.msra.mxu0 0
        %1993 = vmatprep.subr.bf16.mxu0 0
        %1994 = vmatpush1.bf16.xpose.msra.mxu0 0
        %1995 = vmatprep.subr.bf16.mxu0 0
        %1996 = vmatpush1.bf16.xpose.msra.mxu0 0
        %1997 = vmatprep.mubr.bf16.mxu0 0
        %1998 = vmatmul.mubr.bf16.gmra.mrb[0].mxu0 %v1960
        %v1999 = vpop.f32.mrb[0].mxu0
        %v2000 = vadd.f32 0.0, %v1999
        %v2001 = vpop.f32.mrb[0].mxu0
        %v2002 = vpop.f32.mrb[0].mxu0
        %v2003 = vadd.f32 0.0, %v2002
        %v2004 = vpop.f32.mrb[0].mxu0
        %2005 = vdwg.mxu0
        %v2007 = vsel %vm1958, %v1951, 0
        %v2010 = vsel %vm1958, %v1955, 0
        %2012 = vmatprep.subr.bf16.mxu0 0
        %2013 = vmatpush1.bf16.xpose.msra.mxu0 %v2010
        %2014 = vmatprep.subr.bf16.mxu0 0
        %2015 = vmatpush1.bf16.xpose.msra.mxu0 0
        %2016 = vmatprep.subr.bf16.mxu0 0
        %2017 = vmatpush1.bf16.xpose.msra.mxu0 0
        %2018 = vmatprep.subr.bf16.mxu0 0
        %2019 = vmatpush1.bf16.xpose.msra.mxu0 0
        %2020 = vmatprep.subr.bf16.mxu0 0
        %2021 = vmatpush1.bf16.xpose.msra.mxu0 0
        %2022 = vmatprep.subr.bf16.mxu0 0
        %2023 = vmatpush1.bf16.xpose.msra.mxu0 0
        %2024 = vmatprep.subr.bf16.mxu0 0
        %2025 = vmatpush1.bf16.xpose.msra.mxu0 0
        %2026 = vmatprep.subr.bf16.mxu0 0
        %2027 = vmatpush1.bf16.xpose.msra.mxu0 0
        %2028 = vmatprep.subr.bf16.mxu0 0
        %2029 = vmatpush1.bf16.xpose.msra.mxu0 0
        %2030 = vmatprep.subr.bf16.mxu0 0
        %2031 = vmatpush1.bf16.xpose.msra.mxu0 0
        %2032 = vmatprep.subr.bf16.mxu0 0
        %2033 = vmatpush1.bf16.xpose.msra.mxu0 0
        %2034 = vmatprep.subr.bf16.mxu0 0
        %2035 = vmatpush1.bf16.xpose.msra.mxu0 0
        %2036 = vmatprep.subr.bf16.mxu0 0
        %2037 = vmatpush1.bf16.xpose.msra.mxu0 0
        %2038 = vmatprep.subr.bf16.mxu0 0
        %2039 = vmatpush1.bf16.xpose.msra.mxu0 0
        %2040 = vmatprep.subr.bf16.mxu0 0
        %2041 = vmatpush1.bf16.xpose.msra.mxu0 0
        %2042 = vmatprep.subr.bf16.mxu0 0
        %2043 = vmatpush1.bf16.xpose.msra.mxu0 0
        %2044 = vmatprep.mubr.bf16.mxu0 0
        %2045 = vmatmul.mubr.bf16.gmra.mrb[0].mxu0 %v2007
        %v2046 = vpop.f32.mrb[0].mxu0
        %v2047 = vadd.f32 0.0, %v2046
        %v2048 = vpop.f32.mrb[0].mxu0
        %v2049 = vpop.f32.mrb[0].mxu0
        %v2050 = vadd.f32 0.0, %v2049
        %v2051 = vpop.f32.mrb[0].mxu0
        %2052 = vdwg.mxu0
        %v2054 = vsel %vm1958, %v1952, 0
        %v2057 = vsel %vm1958, %v1956, 0
        %2059 = vmatprep.subr.bf16.mxu0 0
        %2060 = vmatpush1.bf16.xpose.msra.mxu0 %v2057
        %2061 = vmatprep.subr.bf16.mxu0 0
        %2062 = vmatpush1.bf16.xpose.msra.mxu0 0
        %2063 = vmatprep.subr.bf16.mxu0 0
        %2064 = vmatpush1.bf16.xpose.msra.mxu0 0
        %2065 = vmatprep.subr.bf16.mxu0 0
        %2066 = vmatpush1.bf16.xpose.msra.mxu0 0
        %2067 = vmatprep.subr.bf16.mxu0 0
        %2068 = vmatpush1.bf16.xpose.msra.mxu0 0
        %2069 = vmatprep.subr.bf16.mxu0 0
        %2070 = vmatpush1.bf16.xpose.msra.mxu0 0
        %2071 = vmatprep.subr.bf16.mxu0 0
        %2072 = vmatpush1.bf16.xpose.msra.mxu0 0
        %2073 = vmatprep.subr.bf16.mxu0 0
        %2074 = vmatpush1.bf16.xpose.msra.mxu0 0
        %2075 = vmatprep.subr.bf16.mxu0 0
        %2076 = vmatpush1.bf16.xpose.msra.mxu0 0
        %2077 = vmatprep.subr.bf16.mxu0 0
        %2078 = vmatpush1.bf16.xpose.msra.mxu0 0
        %2079 = vmatprep.subr.bf16.mxu0 0
        %2080 = vmatpush1.bf16.xpose.msra.mxu0 0
        %2081 = vmatprep.subr.bf16.mxu0 0
        %2082 = vmatpush1.bf16.xpose.msra.mxu0 0
        %2083 = vmatprep.subr.bf16.mxu0 0
        %2084 = vmatpush1.bf16.xpose.msra.mxu0 0
        %2085 = vmatprep.subr.bf16.mxu0 0
        %2086 = vmatpush1.bf16.xpose.msra.mxu0 0
        %2087 = vmatprep.subr.bf16.mxu0 0
        %2088 = vmatpush1.bf16.xpose.msra.mxu0 0
        %2089 = vmatprep.subr.bf16.mxu0 0
        %2090 = vmatpush1.bf16.xpose.msra.mxu0 0
        %2091 = vmatprep.mubr.bf16.mxu0 0
        %2092 = vmatmul.mubr.bf16.gmra.mrb[0].mxu0 %v2054
        %v2093 = vpop.f32.mrb[0].mxu0
        %v2094 = vadd.f32 0.0, %v2093
        %v2095 = vpop.f32.mrb[0].mxu0
        %v2096 = vpop.f32.mrb[0].mxu0
        %v2097 = vadd.f32 0.0, %v2096
        %v2098 = vpop.f32.mrb[0].mxu0
        %2099 = vdwg.mxu0
        %v2101 = vsel %vm1958, %v1953, 0
        %v2104 = vsel %vm1958, %v1957, 0
        %2106 = vmatprep.subr.bf16.mxu0 0
        %2107 = vmatpush1.bf16.xpose.msra.mxu0 %v2104
        %2108 = vmatprep.subr.bf16.mxu0 0
        %2109 = vmatpush1.bf16.xpose.msra.mxu0 0
        %2110 = vmatprep.subr.bf16.mxu0 0
        %2111 = vmatpush1.bf16.xpose.msra.mxu0 0
        %2112 = vmatprep.subr.bf16.mxu0 0
        %2113 = vmatpush1.bf16.xpose.msra.mxu0 0
        %2114 = vmatprep.subr.bf16.mxu0 0
        %2115 = vmatpush1.bf16.xpose.msra.mxu0 0
        %2116 = vmatprep.subr.bf16.mxu0 0
        %2117 = vmatpush1.bf16.xpose.msra.mxu0 0
        %2118 = vmatprep.subr.bf16.mxu0 0
        %2119 = vmatpush1.bf16.xpose.msra.mxu0 0
        %2120 = vmatprep.subr.bf16.mxu0 0
        %2121 = vmatpush1.bf16.xpose.msra.mxu0 0
        %2122 = vmatprep.subr.bf16.mxu0 0
        %2123 = vmatpush1.bf16.xpose.msra.mxu0 0
        %2124 = vmatprep.subr.bf16.mxu0 0
        %2125 = vmatpush1.bf16.xpose.msra.mxu0 0
        %2126 = vmatprep.subr.bf16.mxu0 0
        %2127 = vmatpush1.bf16.xpose.msra.mxu0 0
        %2128 = vmatprep.subr.bf16.mxu0 0
        %2129 = vmatpush1.bf16.xpose.msra.mxu0 0
        %2130 = vmatprep.subr.bf16.mxu0 0
        %2131 = vmatpush1.bf16.xpose.msra.mxu0 0
        %2132 = vmatprep.subr.bf16.mxu0 0
        %2133 = vmatpush1.bf16.xpose.msra.mxu0 0
        %2134 = vmatprep.subr.bf16.mxu0 0
        %2135 = vmatpush1.bf16.xpose.msra.mxu0 0
        %2136 = vmatprep.subr.bf16.mxu0 0
        %2137 = vmatpush1.bf16.xpose.msra.mxu0 0
        %2138 = vmatprep.mubr.bf16.mxu0 0
        %2139 = vmatmul.mubr.bf16.gmra.mrb[0].mxu0 %v2101
        %v2140 = vpop.f32.mrb[0].mxu0
        %v2141 = vadd.f32 0.0, %v2140
        %v2142 = vpop.f32.mrb[0].mxu0
        %v2143 = vpop.f32.mrb[0].mxu0
        %v2144 = vadd.f32 0.0, %v2143
        %v2145 = vpop.f32.mrb[0].mxu0
        %2146 = vdwg.mxu0
        %v2147 = vmul.f32 %v2000, 0.17677669
        %v2148 = vmul.f32 %v2003, 0.17677669
        %v2149 = vmul.f32 %v2047, 0.17677669
        %v2150 = vmul.f32 %v2050, 0.17677669
        %v2151 = vmul.f32 %v2094, 0.17677669
        %v2152 = vmul.f32 %v2097, 0.17677669
        %v2153 = vmul.f32 %v2141, 0.17677669
        %v2154 = vmul.f32 %v2144, 0.17677669
        %v2155 = vlaneseq
        %v2156 = vshrl.u32 %v2155, 7
        %v2157 = vsub.s32 0, %v2156
        %v2158 = vrot.slane %v1949, %v2157
        %v2159 = vadd.f32 %v2147, %v2158
        %v2160 = vadd.f32 %v2148, %v2158
        %v2161 = vadd.f32 %v2149, %v2158
        %v2162 = vadd.f32 %v2150, %v2158
        %v2163 = vadd.f32 %v2151, %v2158
        %v2164 = vadd.f32 %v2152, %v2158
        %v2165 = vadd.f32 %v2153, %v2158
        %v2166 = vadd.f32 %v2154, %v2158
        %vm2167 = vcmask 130048
        %v2168 = vsel %vm2167, %v2159, -inf
        %2169 = vmax.xlane.f32.xlu0 %v2168
        %v2170 = vpop.xlane.xlu0 %2169
        %v2171 = vsel %vm2167, %v2160, -inf
        %2172 = vmax.xlane.f32.xlu0 %v2171
        %v2173 = vpop.xlane.xlu0 %2172
        %v2174 = vsel %vm2167, %v2161, -inf
        %2175 = vmax.xlane.f32.xlu0 %v2174
        %v2176 = vpop.xlane.xlu0 %2175
        %v2177 = vsel %vm2167, %v2162, -inf
        %2178 = vmax.xlane.f32.xlu0 %v2177
        %v2179 = vpop.xlane.xlu0 %2178
        %v2180 = vsel %vm2167, %v2163, -inf
        %2181 = vmax.xlane.f32.xlu0 %v2180
        %v2182 = vpop.xlane.xlu0 %2181
        %v2183 = vsel %vm2167, %v2164, -inf
        %2184 = vmax.xlane.f32.xlu0 %v2183
        %v2185 = vpop.xlane.xlu0 %2184
        %v2186 = vsel %vm2167, %v2165, -inf
        %2187 = vmax.xlane.f32.xlu0 %v2186
        %v2188 = vpop.xlane.xlu0 %2187
        %v2189 = vsel %vm2167, %v2166, -inf
        %2190 = vmax.xlane.f32.xlu0 %v2189
        %v2191 = vpop.xlane.xlu0 %2190
        %v2192 = vsub.f32 %v2159, %v2170
        %v2193 = vsub.f32 %v2160, %v2173
        %v2194 = vsub.f32 %v2161, %v2176
        %v2195 = vsub.f32 %v2162, %v2179
        %v2196 = vsub.f32 %v2163, %v2182
        %v2197 = vsub.f32 %v2164, %v2185
        %v2198 = vsub.f32 %v2165, %v2188
        %v2199 = vsub.f32 %v2166, %v2191
        %v2200 = vmul.f32 %v2192, 1.442695
        %v2201 = vpow.pop %v2200
        %v2202 = vmul.f32 %v2193, 1.442695
        %v2203 = vpow.pop %v2202
        %v2204 = vmul.f32 %v2194, 1.442695
        %v2205 = vpow.pop %v2204
        %v2206 = vmul.f32 %v2195, 1.442695
        %v2207 = vpow.pop %v2206
        %v2208 = vmul.f32 %v2196, 1.442695
        %v2209 = vpow.pop %v2208
        %v2210 = vmul.f32 %v2197, 1.442695
        %v2211 = vpow.pop %v2210
        %v2212 = vmul.f32 %v2198, 1.442695
        %v2213 = vpow.pop %v2212
        %v2214 = vmul.f32 %v2199, 1.442695
        %v2215 = vpow.pop %v2214
        %v2216 = vsel %vm2167, %v2201, 0.0
        %2217 = vadd.xlane.f32.xlu0 %v2216
        %v2218 = vpop.xlane.xlu0 %2217
        %v2219 = vsel %vm2167, %v2203, 0.0
        %2220 = vadd.xlane.f32.xlu0 %v2219
        %v2221 = vpop.xlane.xlu0 %2220
        %v2222 = vsel %vm2167, %v2205, 0.0
        %2223 = vadd.xlane.f32.xlu0 %v2222
        %v2224 = vpop.xlane.xlu0 %2223
        %v2225 = vsel %vm2167, %v2207, 0.0
        %2226 = vadd.xlane.f32.xlu0 %v2225
        %v2227 = vpop.xlane.xlu0 %2226
        %v2228 = vsel %vm2167, %v2209, 0.0
        %2229 = vadd.xlane.f32.xlu0 %v2228
        %v2230 = vpop.xlane.xlu0 %2229
        %v2231 = vsel %vm2167, %v2211, 0.0
        %2232 = vadd.xlane.f32.xlu0 %v2231
        %v2233 = vpop.xlane.xlu0 %2232
        %v2234 = vsel %vm2167, %v2213, 0.0
        %2235 = vadd.xlane.f32.xlu0 %v2234
        %v2236 = vpop.xlane.xlu0 %2235
        %v2237 = vsel %vm2167, %v2215, 0.0
        %2238 = vadd.xlane.f32.xlu0 %v2237
        %v2239 = vpop.xlane.xlu0 %2238
        %v2240 = vrcp.pop %v2218
        %v2241 = vrcp.pop %v2221
        %v2242 = vrcp.pop %v2224
        %v2243 = vrcp.pop %v2227
        %v2244 = vrcp.pop %v2230
        %v2245 = vrcp.pop %v2233
        %v2246 = vrcp.pop %v2236
        %v2247 = vrcp.pop %v2239
        %v2248 = vmul.f32 %v2201, %v2240
        %v2249 = vmul.f32 %v2203, %v2241
        %v2250 = vmul.f32 %v2205, %v2242
        %v2251 = vmul.f32 %v2207, %v2243
        %v2252 = vmul.f32 %v2209, %v2244
        %v2253 = vmul.f32 %v2211, %v2245
        %v2254 = vmul.f32 %v2213, %v2246
        %v2255 = vmul.f32 %v2215, %v2247
        %v2256 = vpack.c.bf16 %v2249, %v2248
        %v2257 = vpack.c.bf16 %v2251, %v2250
        %v2258 = vpack.c.bf16 %v2253, %v2252
        %v2259 = vpack.c.bf16 %v2255, %v2254
        %v2260 = vpack.c.bf16 %v1944, %v1876
        %v2261 = vpack.c.bf16 %v1945, %v1877
        %v2262 = vpack.c.bf16 %v1946, %v1878
        %v2263 = vpack.c.bf16 %v1947, %v1879
        %v2265 = vsel %vm2167, %v2256, 0
        %2267 = vmatprep.subr.bf16.mxu0 0
        %2268 = vmatpush1.bf16.msra.mxu0 %v2260
        %2269 = vmatprep.subr.bf16.mxu0 0
        %2270 = vmatpush1.bf16.msra.mxu0 0
        %2271 = vmatprep.subr.bf16.mxu0 0
        %2272 = vmatpush1.bf16.msra.mxu0 0
        %2273 = vmatprep.subr.bf16.mxu0 0
        %2274 = vmatpush1.bf16.msra.mxu0 0
        %2275 = vmatprep.subr.bf16.mxu0 0
        %2276 = vmatpush1.bf16.msra.mxu0 0
        %2277 = vmatprep.subr.bf16.mxu0 0
        %2278 = vmatpush1.bf16.msra.mxu0 0
        %2279 = vmatprep.subr.bf16.mxu0 0
        %2280 = vmatpush1.bf16.msra.mxu0 0
        %2281 = vmatprep.subr.bf16.mxu0 0
        %2282 = vmatpush1.bf16.msra.mxu0 0
        %2283 = vmatprep.subr.bf16.mxu0 0
        %2284 = vmatpush1.bf16.msra.mxu0 0
        %2285 = vmatprep.subr.bf16.mxu0 0
        %2286 = vmatpush1.bf16.msra.mxu0 0
        %2287 = vmatprep.subr.bf16.mxu0 0
        %2288 = vmatpush1.bf16.msra.mxu0 0
        %2289 = vmatprep.subr.bf16.mxu0 0
        %2290 = vmatpush1.bf16.msra.mxu0 0
        %2291 = vmatprep.subr.bf16.mxu0 0
        %2292 = vmatpush1.bf16.msra.mxu0 0
        %2293 = vmatprep.subr.bf16.mxu0 0
        %2294 = vmatpush1.bf16.msra.mxu0 0
        %2295 = vmatprep.subr.bf16.mxu0 0
        %2296 = vmatpush1.bf16.msra.mxu0 0
        %2297 = vmatprep.subr.bf16.mxu0 0
        %2298 = vmatpush1.bf16.msra.mxu0 0
        %2299 = vmatprep.mubr.bf16.mxu0 0
        %2300 = vmatmul.mubr.bf16.gmra.mrb[0].mxu0 %v2265
        %v2301 = vpop.f32.mrb[0].mxu0
        %v2302 = vadd.f32 0.0, %v2301
        %v2303 = vpop.f32.mrb[0].mxu0
        %v2304 = vpop.f32.mrb[0].mxu0
        %v2305 = vadd.f32 0.0, %v2304
        %v2306 = vpop.f32.mrb[0].mxu0
        %2307 = vdwg.mxu0
        %v2309 = vsel %vm2167, %v2257, 0
        %2311 = vmatprep.subr.bf16.mxu0 0
        %2312 = vmatpush1.bf16.msra.mxu0 %v2261
        %2313 = vmatprep.subr.bf16.mxu0 0
        %2314 = vmatpush1.bf16.msra.mxu0 0
        %2315 = vmatprep.subr.bf16.mxu0 0
        %2316 = vmatpush1.bf16.msra.mxu0 0
        %2317 = vmatprep.subr.bf16.mxu0 0
        %2318 = vmatpush1.bf16.msra.mxu0 0
        %2319 = vmatprep.subr.bf16.mxu0 0
        %2320 = vmatpush1.bf16.msra.mxu0 0
        %2321 = vmatprep.subr.bf16.mxu0 0
        %2322 = vmatpush1.bf16.msra.mxu0 0
        %2323 = vmatprep.subr.bf16.mxu0 0
        %2324 = vmatpush1.bf16.msra.mxu0 0
        %2325 = vmatprep.subr.bf16.mxu0 0
        %2326 = vmatpush1.bf16.msra.mxu0 0
        %2327 = vmatprep.subr.bf16.mxu0 0
        %2328 = vmatpush1.bf16.msra.mxu0 0
        %2329 = vmatprep.subr.bf16.mxu0 0
        %2330 = vmatpush1.bf16.msra.mxu0 0
        %2331 = vmatprep.subr.bf16.mxu0 0
        %2332 = vmatpush1.bf16.msra.mxu0 0
        %2333 = vmatprep.subr.bf16.mxu0 0
        %2334 = vmatpush1.bf16.msra.mxu0 0
        %2335 = vmatprep.subr.bf16.mxu0 0
        %2336 = vmatpush1.bf16.msra.mxu0 0
        %2337 = vmatprep.subr.bf16.mxu0 0
        %2338 = vmatpush1.bf16.msra.mxu0 0
        %2339 = vmatprep.subr.bf16.mxu0 0
        %2340 = vmatpush1.bf16.msra.mxu0 0
        %2341 = vmatprep.subr.bf16.mxu0 0
        %2342 = vmatpush1.bf16.msra.mxu0 0
        %2343 = vmatprep.mubr.bf16.mxu0 0
        %2344 = vmatmul.mubr.bf16.gmra.mrb[0].mxu0 %v2309
        %v2345 = vpop.f32.mrb[0].mxu0
        %v2346 = vadd.f32 0.0, %v2345
        %v2347 = vpop.f32.mrb[0].mxu0
        %v2348 = vpop.f32.mrb[0].mxu0
        %v2349 = vadd.f32 0.0, %v2348
        %v2350 = vpop.f32.mrb[0].mxu0
        %2351 = vdwg.mxu0
        %v2353 = vsel %vm2167, %v2258, 0
        %2355 = vmatprep.subr.bf16.mxu0 0
        %2356 = vmatpush1.bf16.msra.mxu0 %v2262
        %2357 = vmatprep.subr.bf16.mxu0 0
        %2358 = vmatpush1.bf16.msra.mxu0 0
        %2359 = vmatprep.subr.bf16.mxu0 0
        %2360 = vmatpush1.bf16.msra.mxu0 0
        %2361 = vmatprep.subr.bf16.mxu0 0
        %2362 = vmatpush1.bf16.msra.mxu0 0
        %2363 = vmatprep.subr.bf16.mxu0 0
        %2364 = vmatpush1.bf16.msra.mxu0 0
        %2365 = vmatprep.subr.bf16.mxu0 0
        %2366 = vmatpush1.bf16.msra.mxu0 0
        %2367 = vmatprep.subr.bf16.mxu0 0
        %2368 = vmatpush1.bf16.msra.mxu0 0
        %2369 = vmatprep.subr.bf16.mxu0 0
        %2370 = vmatpush1.bf16.msra.mxu0 0
        %2371 = vmatprep.subr.bf16.mxu0 0
        %2372 = vmatpush1.bf16.msra.mxu0 0
        %2373 = vmatprep.subr.bf16.mxu0 0
        %2374 = vmatpush1.bf16.msra.mxu0 0
        %2375 = vmatprep.subr.bf16.mxu0 0
        %2376 = vmatpush1.bf16.msra.mxu0 0
        %2377 = vmatprep.subr.bf16.mxu0 0
        %2378 = vmatpush1.bf16.msra.mxu0 0
        %2379 = vmatprep.subr.bf16.mxu0 0
        %2380 = vmatpush1.bf16.msra.mxu0 0
        %2381 = vmatprep.subr.bf16.mxu0 0
        %2382 = vmatpush1.bf16.msra.mxu0 0
        %2383 = vmatprep.subr.bf16.mxu0 0
        %2384 = vmatpush1.bf16.msra.mxu0 0
        %2385 = vmatprep.subr.bf16.mxu0 0
        %2386 = vmatpush1.bf16.msra.mxu0 0
        %2387 = vmatprep.mubr.bf16.mxu0 0
        %2388 = vmatmul.mubr.bf16.gmra.mrb[0].mxu0 %v2353
        %v2389 = vpop.f32.mrb[0].mxu0
        %v2390 = vadd.f32 0.0, %v2389
        %v2391 = vpop.f32.mrb[0].mxu0
        %v2392 = vpop.f32.mrb[0].mxu0
        %v2393 = vadd.f32 0.0, %v2392
        %v2394 = vpop.f32.mrb[0].mxu0
        %2395 = vdwg.mxu0
        %v2397 = vsel %vm2167, %v2259, 0
        %2399 = vmatprep.subr.bf16.mxu0 0
        %2400 = vmatpush1.bf16.msra.mxu0 %v2263
        %2401 = vmatprep.subr.bf16.mxu0 0
        %2402 = vmatpush1.bf16.msra.mxu0 0
        %2403 = vmatprep.subr.bf16.mxu0 0
        %2404 = vmatpush1.bf16.msra.mxu0 0
        %2405 = vmatprep.subr.bf16.mxu0 0
        %2406 = vmatpush1.bf16.msra.mxu0 0
        %2407 = vmatprep.subr.bf16.mxu0 0
        %2408 = vmatpush1.bf16.msra.mxu0 0
        %2409 = vmatprep.subr.bf16.mxu0 0
        %2410 = vmatpush1.bf16.msra.mxu0 0
        %2411 = vmatprep.subr.bf16.mxu0 0
        %2412 = vmatpush1.bf16.msra.mxu0 0
        %2413 = vmatprep.subr.bf16.mxu0 0
        %2414 = vmatpush1.bf16.msra.mxu0 0
        %2415 = vmatprep.subr.bf16.mxu0 0
        %2416 = vmatpush1.bf16.msra.mxu0 0
        %2417 = vmatprep.subr.bf16.mxu0 0
        %2418 = vmatpush1.bf16.msra.mxu0 0
        %2419 = vmatprep.subr.bf16.mxu0 0
        %2420 = vmatpush1.bf16.msra.mxu0 0
        %2421 = vmatprep.subr.bf16.mxu0 0
        %2422 = vmatpush1.bf16.msra.mxu0 0
        %2423 = vmatprep.subr.bf16.mxu0 0
        %2424 = vmatpush1.bf16.msra.mxu0 0
        %2425 = vmatprep.subr.bf16.mxu0 0
        %2426 = vmatpush1.bf16.msra.mxu0 0
        %2427 = vmatprep.subr.bf16.mxu0 0
        %2428 = vmatpush1.bf16.msra.mxu0 0
        %2429 = vmatprep.subr.bf16.mxu0 0
        %2430 = vmatpush1.bf16.msra.mxu0 0
        %2431 = vmatprep.mubr.bf16.mxu0 0
        %2432 = vmatmul.mubr.bf16.gmra.mrb[0].mxu0 %v2397
        %v2433 = vpop.f32.mrb[0].mxu0
        %v2434 = vadd.f32 0.0, %v2433
        %v2435 = vpop.f32.mrb[0].mxu0
        %v2436 = vpop.f32.mrb[0].mxu0
        %v2437 = vadd.f32 0.0, %v2436
        %v2438 = vpop.f32.mrb[0].mxu0
        %2439 = vdwg.mxu0
        %v2440 = vcombine.low %v2302, %v2390
        %v2441 = vcombine.high %v2302, %v2390
        %v2443 = vunpack.c.l.s4 1983009808
        %v2444 = vunpack.c.0.s8 %v2443
        %v2445 = vlaneseq
        %v2446 = vshrl.u32 %v2445, 7
        %v2447 = vsub.s32 %v2444, %v2446
        %v2448 = vrot.slane %v2440, %v2447
        %v2450 = vunpack.c.l.s4 1983009808
        %v2451 = vunpack.c.0.s8 %v2450
        %v2452 = vlaneseq
        %v2453 = vshrl.u32 %v2452, 7
        %v2454 = vsub.s32 %v2451, %v2453
        %v2455 = vrot.slane %v2441, %v2454
        %v2456 = vcombine.low %v2346, %v2434
        %v2457 = vcombine.high %v2346, %v2434
        %v2459 = vunpack.c.l.s4 1983009808
        %v2460 = vunpack.c.0.s8 %v2459
        %v2461 = vlaneseq
        %v2462 = vshrl.u32 %v2461, 7
        %v2463 = vsub.s32 %v2460, %v2462
        %v2464 = vrot.slane %v2456, %v2463
        %v2466 = vunpack.c.l.s4 1983009808
        %v2467 = vunpack.c.0.s8 %v2466
        %v2468 = vlaneseq
        %v2469 = vshrl.u32 %v2468, 7
        %v2470 = vsub.s32 %v2467, %v2469
        %v2471 = vrot.slane %v2457, %v2470
        %v2472 = vcombine.low %v2448, %v2464
        %v2473 = vcombine.high %v2448, %v2464
        %v2475 = vunpack.c.l.s4 1934713408
        %v2476 = vunpack.c.0.s8 %v2475
        %v2477 = vlaneseq
        %v2478 = vshrl.u32 %v2477, 7
        %v2479 = vsub.s32 %v2476, %v2478
        %v2480 = vrot.slane %v2472, %v2479
        %v2482 = vunpack.c.l.s4 1934713408
        %v2483 = vunpack.c.0.s8 %v2482
        %v2484 = vlaneseq
        %v2485 = vshrl.u32 %v2484, 7
        %v2486 = vsub.s32 %v2483, %v2485
        %v2487 = vrot.slane %v2473, %v2486
        %v2488 = vcombine.low %v2455, %v2471
        %v2489 = vcombine.high %v2455, %v2471
        %v2491 = vunpack.c.l.s4 1934713408
        %v2492 = vunpack.c.0.s8 %v2491
        %v2493 = vlaneseq
        %v2494 = vshrl.u32 %v2493, 7
        %v2495 = vsub.s32 %v2492, %v2494
        %v2496 = vrot.slane %v2488, %v2495
        %v2498 = vunpack.c.l.s4 1934713408
        %v2499 = vunpack.c.0.s8 %v2498
        %v2500 = vlaneseq
        %v2501 = vshrl.u32 %v2500, 7
        %v2502 = vsub.s32 %v2499, %v2501
        %v2503 = vrot.slane %v2489, %v2502
        %v2504 = vcombine.high %v2480, 0.0
        %v2505 = vcombine.high %v2487, 0.0
        %v2506 = vcombine.high %v2496, 0.0
        %v2507 = vcombine.high %v2503, 0.0
        %v2508 = vcombine.low %v2305, %v2393
        %v2509 = vcombine.high %v2305, %v2393
        %v2511 = vunpack.c.l.s4 1983009808
        %v2512 = vunpack.c.0.s8 %v2511
        %v2513 = vlaneseq
        %v2514 = vshrl.u32 %v2513, 7
        %v2515 = vsub.s32 %v2512, %v2514
        %v2516 = vrot.slane %v2508, %v2515
        %v2518 = vunpack.c.l.s4 1983009808
        %v2519 = vunpack.c.0.s8 %v2518
        %v2520 = vlaneseq
        %v2521 = vshrl.u32 %v2520, 7
        %v2522 = vsub.s32 %v2519, %v2521
        %v2523 = vrot.slane %v2509, %v2522
        %v2524 = vcombine.low %v2349, %v2437
        %v2525 = vcombine.high %v2349, %v2437
        %v2527 = vunpack.c.l.s4 1983009808
        %v2528 = vunpack.c.0.s8 %v2527
        %v2529 = vlaneseq
        %v2530 = vshrl.u32 %v2529, 7
        %v2531 = vsub.s32 %v2528, %v2530
        %v2532 = vrot.slane %v2524, %v2531
        %v2534 = vunpack.c.l.s4 1983009808
        %v2535 = vunpack.c.0.s8 %v2534
        %v2536 = vlaneseq
        %v2537 = vshrl.u32 %v2536, 7
        %v2538 = vsub.s32 %v2535, %v2537
        %v2539 = vrot.slane %v2525, %v2538
        %v2540 = vcombine.low %v2516, %v2532
        %v2541 = vcombine.high %v2516, %v2532
        %v2543 = vunpack.c.l.s4 1934713408
        %v2544 = vunpack.c.0.s8 %v2543
        %v2545 = vlaneseq
        %v2546 = vshrl.u32 %v2545, 7
        %v2547 = vsub.s32 %v2544, %v2546
        %v2548 = vrot.slane %v2540, %v2547
        %v2550 = vunpack.c.l.s4 1934713408
        %v2551 = vunpack.c.0.s8 %v2550
        %v2552 = vlaneseq
        %v2553 = vshrl.u32 %v2552, 7
        %v2554 = vsub.s32 %v2551, %v2553
        %v2555 = vrot.slane %v2541, %v2554
        %v2556 = vcombine.low %v2523, %v2539
        %v2557 = vcombine.high %v2523, %v2539
        %v2559 = vunpack.c.l.s4 1934713408
        %v2560 = vunpack.c.0.s8 %v2559
        %v2561 = vlaneseq
        %v2562 = vshrl.u32 %v2561, 7
        %v2563 = vsub.s32 %v2560, %v2562
        %v2564 = vrot.slane %v2556, %v2563
        %v2566 = vunpack.c.l.s4 1934713408
        %v2567 = vunpack.c.0.s8 %v2566
        %v2568 = vlaneseq
        %v2569 = vshrl.u32 %v2568, 7
        %v2570 = vsub.s32 %v2567, %v2569
        %v2571 = vrot.slane %v2557, %v2570
        %v2572 = vcombine.high %v2548, 0.0
        %v2573 = vcombine.high %v2555, 0.0
        %v2574 = vcombine.high %v2564, 0.0
        %v2575 = vcombine.high %v2571, 0.0
        %v2576 = vcombine.low %v2480, %v2487
        %v2578 = vunpack.c.l.s4 1983009808
        %v2579 = vunpack.c.0.s8 %v2578
        %v2580 = vlaneseq
        %v2581 = vshrl.u32 %v2580, 7
        %v2582 = vsub.s32 %v2579, %v2581
        %v2583 = vrot.slane %v2576, %v2582
        %v2584 = vcombine.low %v2504, %v2505
        %v2586 = vunpack.c.l.s4 1983009808
        %v2587 = vunpack.c.0.s8 %v2586
        %v2588 = vlaneseq
        %v2589 = vshrl.u32 %v2588, 7
        %v2590 = vsub.s32 %v2587, %v2589
        %v2591 = vrot.slane %v2584, %v2590
        %v2592 = vcombine.low %v2496, %v2503
        %v2594 = vunpack.c.l.s4 1983009808
        %v2595 = vunpack.c.0.s8 %v2594
        %v2596 = vlaneseq
        %v2597 = vshrl.u32 %v2596, 7
        %v2598 = vsub.s32 %v2595, %v2597
        %v2599 = vrot.slane %v2592, %v2598
        %v2600 = vcombine.low %v2506, %v2507
        %v2602 = vunpack.c.l.s4 1983009808
        %v2603 = vunpack.c.0.s8 %v2602
        %v2604 = vlaneseq
        %v2605 = vshrl.u32 %v2604, 7
        %v2606 = vsub.s32 %v2603, %v2605
        %v2607 = vrot.slane %v2600, %v2606
        %v2608 = vcombine.low %v2583, %v2591
        %v2609 = vcombine.high %v2583, %v2591
        %v2611 = vunpack.c.l.s4 1934713408
        %v2612 = vunpack.c.0.s8 %v2611
        %v2613 = vlaneseq
        %v2614 = vshrl.u32 %v2613, 7
        %v2615 = vsub.s32 %v2612, %v2614
        %v2616 = vrot.slane %v2608, %v2615
        %v2618 = vunpack.c.l.s4 1934713408
        %v2619 = vunpack.c.0.s8 %v2618
        %v2620 = vlaneseq
        %v2621 = vshrl.u32 %v2620, 7
        %v2622 = vsub.s32 %v2619, %v2621
        %v2623 = vrot.slane %v2609, %v2622
        %v2624 = vcombine.low %v2599, %v2607
        %v2625 = vcombine.high %v2599, %v2607
        %v2627 = vunpack.c.l.s4 1934713408
        %v2628 = vunpack.c.0.s8 %v2627
        %v2629 = vlaneseq
        %v2630 = vshrl.u32 %v2629, 7
        %v2631 = vsub.s32 %v2628, %v2630
        %v2632 = vrot.slane %v2624, %v2631
        %v2634 = vunpack.c.l.s4 1934713408
        %v2635 = vunpack.c.0.s8 %v2634
        %v2636 = vlaneseq
        %v2637 = vshrl.u32 %v2636, 7
        %v2638 = vsub.s32 %v2635, %v2637
        %v2639 = vrot.slane %v2625, %v2638
        %v2640 = vcombine.low %v2616, %v2632
        %v2641 = vcombine.high %v2616, %v2632
        %v2642 = vcombine.low %v2623, %v2639
        %v2643 = vcombine.high %v2623, %v2639
        %v2644 = vcombine.low %v2548, %v2555
        %v2646 = vunpack.c.l.s4 1983009808
        %v2647 = vunpack.c.0.s8 %v2646
        %v2648 = vlaneseq
        %v2649 = vshrl.u32 %v2648, 7
        %v2650 = vsub.s32 %v2647, %v2649
        %v2651 = vrot.slane %v2644, %v2650
        %v2652 = vcombine.low %v2572, %v2573
        %v2654 = vunpack.c.l.s4 1983009808
        %v2655 = vunpack.c.0.s8 %v2654
        %v2656 = vlaneseq
        %v2657 = vshrl.u32 %v2656, 7
        %v2658 = vsub.s32 %v2655, %v2657
        %v2659 = vrot.slane %v2652, %v2658
        %v2660 = vcombine.low %v2564, %v2571
        %v2662 = vunpack.c.l.s4 1983009808
        %v2663 = vunpack.c.0.s8 %v2662
        %v2664 = vlaneseq
        %v2665 = vshrl.u32 %v2664, 7
        %v2666 = vsub.s32 %v2663, %v2665
        %v2667 = vrot.slane %v2660, %v2666
        %v2668 = vcombine.low %v2574, %v2575
        %v2670 = vunpack.c.l.s4 1983009808
        %v2671 = vunpack.c.0.s8 %v2670
        %v2672 = vlaneseq
        %v2673 = vshrl.u32 %v2672, 7
        %v2674 = vsub.s32 %v2671, %v2673
        %v2675 = vrot.slane %v2668, %v2674
        %v2676 = vcombine.low %v2651, %v2659
        %v2677 = vcombine.high %v2651, %v2659
        %v2679 = vunpack.c.l.s4 1934713408
        %v2680 = vunpack.c.0.s8 %v2679
        %v2681 = vlaneseq
        %v2682 = vshrl.u32 %v2681, 7
        %v2683 = vsub.s32 %v2680, %v2682
        %v2684 = vrot.slane %v2676, %v2683
        %v2686 = vunpack.c.l.s4 1934713408
        %v2687 = vunpack.c.0.s8 %v2686
        %v2688 = vlaneseq
        %v2689 = vshrl.u32 %v2688, 7
        %v2690 = vsub.s32 %v2687, %v2689
        %v2691 = vrot.slane %v2677, %v2690
        %v2692 = vcombine.low %v2667, %v2675
        %v2693 = vcombine.high %v2667, %v2675
        %v2695 = vunpack.c.l.s4 1934713408
        %v2696 = vunpack.c.0.s8 %v2695
        %v2697 = vlaneseq
        %v2698 = vshrl.u32 %v2697, 7
        %v2699 = vsub.s32 %v2696, %v2698
        %v2700 = vrot.slane %v2692, %v2699
        %v2702 = vunpack.c.l.s4 1934713408
        %v2703 = vunpack.c.0.s8 %v2702
        %v2704 = vlaneseq
        %v2705 = vshrl.u32 %v2704, 7
        %v2706 = vsub.s32 %v2703, %v2705
        %v2707 = vrot.slane %v2693, %v2706
        %v2708 = vcombine.low %v2684, %v2700
        %v2709 = vcombine.high %v2684, %v2700
        %v2710 = vcombine.low %v2691, %v2707
        %v2711 = vcombine.high %v2691, %v2707
        %2714 = vrot.lane.b32.xlu0 %v2641, 32
        %v2715 = vpop.permute.xlu0 %2714
        %2716 = vrot.lane.b32.xlu0 %v2709, 32
        %v2717 = vpop.permute.xlu0 %2716
        %2722 = vrot.lane.b32.xlu0 %v2642, 64
        %v2723 = vpop.permute.xlu0 %2722
        %2724 = vrot.lane.b32.xlu0 %v2710, 64
        %v2725 = vpop.permute.xlu0 %2724
        %2730 = vrot.lane.b32.xlu0 %v2643, 96
        %v2731 = vpop.permute.xlu0 %2730
        %2732 = vrot.lane.b32.xlu0 %v2711, 96
        %v2733 = vpop.permute.xlu0 %2732
        %v2736 = vsel %vm1958, %v2640, %v2715
        %v2737 = vsel %vm1958, %v2708, %v2717
        %vm2738 = vcmask 523264
        %v2739 = vsel %vm2738, %v2736, %v2723
        %v2740 = vsel %vm2738, %v2737, %v2725
        %vm2741 = vcmask 785408
        %v2742 = vsel %vm2741, %v2739, %v2731
        %v2743 = vsel %vm2741, %v2740, %v2733
        %2746 = vrot.lane.b32.xlu0 %v1015, 96
        %v2747 = vpop.permute.xlu0 %2746
        %2748 = vrot.lane.b32.xlu0 %v1019, 96
        %v2749 = vpop.permute.xlu0 %2748
        %2752 = vrot.lane.b32.xlu0 %v1015, 64
        %v2753 = vpop.permute.xlu0 %2752
        %2754 = vrot.lane.b32.xlu0 %v1019, 64
        %v2755 = vpop.permute.xlu0 %2754
        %2758 = vrot.lane.b32.xlu0 %v1015, 32
        %v2759 = vpop.permute.xlu0 %2758
        %2760 = vrot.lane.b32.xlu0 %v1019, 32
        %v2761 = vpop.permute.xlu0 %2760
        %v2764 = vcombine.low %v1015, %v2753
        %v2765 = vcombine.high %v1015, %v2753
        %v2767 = vunpack.c.l.s4 1983009808
        %v2768 = vunpack.c.0.s8 %v2767
        %v2769 = vlaneseq
        %v2770 = vshrl.u32 %v2769, 7
        %v2771 = vsub.s32 %v2768, %v2770
        %v2772 = vrot.slane %v2764, %v2771
        %v2774 = vunpack.c.l.s4 1983009808
        %v2775 = vunpack.c.0.s8 %v2774
        %v2776 = vlaneseq
        %v2777 = vshrl.u32 %v2776, 7
        %v2778 = vsub.s32 %v2775, %v2777
        %v2779 = vrot.slane %v2765, %v2778
        %v2780 = vcombine.low %v2747, %v2759
        %v2781 = vcombine.high %v2747, %v2759
        %v2783 = vunpack.c.l.s4 1983009808
        %v2784 = vunpack.c.0.s8 %v2783
        %v2785 = vlaneseq
        %v2786 = vshrl.u32 %v2785, 7
        %v2787 = vsub.s32 %v2784, %v2786
        %v2788 = vrot.slane %v2780, %v2787
        %v2790 = vunpack.c.l.s4 1983009808
        %v2791 = vunpack.c.0.s8 %v2790
        %v2792 = vlaneseq
        %v2793 = vshrl.u32 %v2792, 7
        %v2794 = vsub.s32 %v2791, %v2793
        %v2795 = vrot.slane %v2781, %v2794
        %v2796 = vcombine.low %v2772, %v2788
        %v2797 = vcombine.high %v2772, %v2788
        %v2799 = vunpack.c.l.s4 1934713408
        %v2800 = vunpack.c.0.s8 %v2799
        %v2801 = vlaneseq
        %v2802 = vshrl.u32 %v2801, 7
        %v2803 = vsub.s32 %v2800, %v2802
        %v2804 = vrot.slane %v2796, %v2803
        %v2806 = vunpack.c.l.s4 1934713408
        %v2807 = vunpack.c.0.s8 %v2806
        %v2808 = vlaneseq
        %v2809 = vshrl.u32 %v2808, 7
        %v2810 = vsub.s32 %v2807, %v2809
        %v2811 = vrot.slane %v2797, %v2810
        %v2812 = vcombine.low %v2779, %v2795
        %v2813 = vcombine.high %v2779, %v2795
        %v2815 = vunpack.c.l.s4 1934713408
        %v2816 = vunpack.c.0.s8 %v2815
        %v2817 = vlaneseq
        %v2818 = vshrl.u32 %v2817, 7
        %v2819 = vsub.s32 %v2816, %v2818
        %v2820 = vrot.slane %v2812, %v2819
        %v2822 = vunpack.c.l.s4 1934713408
        %v2823 = vunpack.c.0.s8 %v2822
        %v2824 = vlaneseq
        %v2825 = vshrl.u32 %v2824, 7
        %v2826 = vsub.s32 %v2823, %v2825
        %v2827 = vrot.slane %v2813, %v2826
        %v2828 = vcombine.high %v2804, 0.0
        %v2829 = vcombine.high %v2811, 0.0
        %v2830 = vcombine.high %v2820, 0.0
        %v2831 = vcombine.high %v2827, 0.0
        %v2832 = vcombine.low %v1019, %v2755
        %v2833 = vcombine.high %v1019, %v2755
        %v2835 = vunpack.c.l.s4 1983009808
        %v2836 = vunpack.c.0.s8 %v2835
        %v2837 = vlaneseq
        %v2838 = vshrl.u32 %v2837, 7
        %v2839 = vsub.s32 %v2836, %v2838
        %v2840 = vrot.slane %v2832, %v2839
        %v2842 = vunpack.c.l.s4 1983009808
        %v2843 = vunpack.c.0.s8 %v2842
        %v2844 = vlaneseq
        %v2845 = vshrl.u32 %v2844, 7
        %v2846 = vsub.s32 %v2843, %v2845
        %v2847 = vrot.slane %v2833, %v2846
        %v2848 = vcombine.low %v2749, %v2761
        %v2849 = vcombine.high %v2749, %v2761
        %v2851 = vunpack.c.l.s4 1983009808
        %v2852 = vunpack.c.0.s8 %v2851
        %v2853 = vlaneseq
        %v2854 = vshrl.u32 %v2853, 7
        %v2855 = vsub.s32 %v2852, %v2854
        %v2856 = vrot.slane %v2848, %v2855
        %v2858 = vunpack.c.l.s4 1983009808
        %v2859 = vunpack.c.0.s8 %v2858
        %v2860 = vlaneseq
        %v2861 = vshrl.u32 %v2860, 7
        %v2862 = vsub.s32 %v2859, %v2861
        %v2863 = vrot.slane %v2849, %v2862
        %v2864 = vcombine.low %v2840, %v2856
        %v2865 = vcombine.high %v2840, %v2856
        %v2867 = vunpack.c.l.s4 1934713408
        %v2868 = vunpack.c.0.s8 %v2867
        %v2869 = vlaneseq
        %v2870 = vshrl.u32 %v2869, 7
        %v2871 = vsub.s32 %v2868, %v2870
        %v2872 = vrot.slane %v2864, %v2871
        %v2874 = vunpack.c.l.s4 1934713408
        %v2875 = vunpack.c.0.s8 %v2874
        %v2876 = vlaneseq
        %v2877 = vshrl.u32 %v2876, 7
        %v2878 = vsub.s32 %v2875, %v2877
        %v2879 = vrot.slane %v2865, %v2878
        %v2880 = vcombine.low %v2847, %v2863
        %v2881 = vcombine.high %v2847, %v2863
        %v2883 = vunpack.c.l.s4 1934713408
        %v2884 = vunpack.c.0.s8 %v2883
        %v2885 = vlaneseq
        %v2886 = vshrl.u32 %v2885, 7
        %v2887 = vsub.s32 %v2884, %v2886
        %v2888 = vrot.slane %v2880, %v2887
        %v2890 = vunpack.c.l.s4 1934713408
        %v2891 = vunpack.c.0.s8 %v2890
        %v2892 = vlaneseq
        %v2893 = vshrl.u32 %v2892, 7
        %v2894 = vsub.s32 %v2891, %v2893
        %v2895 = vrot.slane %v2881, %v2894
        %v2896 = vcombine.high %v2872, 0.0
        %v2897 = vcombine.high %v2879, 0.0
        %v2898 = vcombine.high %v2888, 0.0
        %v2899 = vcombine.high %v2895, 0.0
        %v2900 = vcombine.low %v2804, %v2811
        %v2902 = vunpack.c.l.s4 1983009808
        %v2903 = vunpack.c.0.s8 %v2902
        %v2904 = vlaneseq
        %v2905 = vshrl.u32 %v2904, 7
        %v2906 = vsub.s32 %v2903, %v2905
        %v2907 = vrot.slane %v2900, %v2906
        %v2908 = vcombine.low %v2828, %v2829
        %v2910 = vunpack.c.l.s4 1983009808
        %v2911 = vunpack.c.0.s8 %v2910
        %v2912 = vlaneseq
        %v2913 = vshrl.u32 %v2912, 7
        %v2914 = vsub.s32 %v2911, %v2913
        %v2915 = vrot.slane %v2908, %v2914
        %v2916 = vcombine.low %v2820, %v2827
        %v2918 = vunpack.c.l.s4 1983009808
        %v2919 = vunpack.c.0.s8 %v2918
        %v2920 = vlaneseq
        %v2921 = vshrl.u32 %v2920, 7
        %v2922 = vsub.s32 %v2919, %v2921
        %v2923 = vrot.slane %v2916, %v2922
        %v2924 = vcombine.low %v2830, %v2831
        %v2926 = vunpack.c.l.s4 1983009808
        %v2927 = vunpack.c.0.s8 %v2926
        %v2928 = vlaneseq
        %v2929 = vshrl.u32 %v2928, 7
        %v2930 = vsub.s32 %v2927, %v2929
        %v2931 = vrot.slane %v2924, %v2930
        %v2932 = vcombine.low %v2907, %v2915
        %v2933 = vcombine.high %v2907, %v2915
        %v2935 = vunpack.c.l.s4 1934713408
        %v2936 = vunpack.c.0.s8 %v2935
        %v2937 = vlaneseq
        %v2938 = vshrl.u32 %v2937, 7
        %v2939 = vsub.s32 %v2936, %v2938
        %v2940 = vrot.slane %v2932, %v2939
        %v2942 = vunpack.c.l.s4 1934713408
        %v2943 = vunpack.c.0.s8 %v2942
        %v2944 = vlaneseq
        %v2945 = vshrl.u32 %v2944, 7
        %v2946 = vsub.s32 %v2943, %v2945
        %v2947 = vrot.slane %v2933, %v2946
        %v2948 = vcombine.low %v2923, %v2931
        %v2949 = vcombine.high %v2923, %v2931
        %v2951 = vunpack.c.l.s4 1934713408
        %v2952 = vunpack.c.0.s8 %v2951
        %v2953 = vlaneseq
        %v2954 = vshrl.u32 %v2953, 7
        %v2955 = vsub.s32 %v2952, %v2954
        %v2956 = vrot.slane %v2948, %v2955
        %v2958 = vunpack.c.l.s4 1934713408
        %v2959 = vunpack.c.0.s8 %v2958
        %v2960 = vlaneseq
        %v2961 = vshrl.u32 %v2960, 7
        %v2962 = vsub.s32 %v2959, %v2961
        %v2963 = vrot.slane %v2949, %v2962
        %v2964 = vcombine.low %v2940, %v2956
        %v2965 = vcombine.high %v2940, %v2956
        %v2966 = vcombine.low %v2947, %v2963
        %v2967 = vcombine.high %v2947, %v2963
        %v2968 = vcombine.low %v2872, %v2879
        %v2970 = vunpack.c.l.s4 1983009808
        %v2971 = vunpack.c.0.s8 %v2970
        %v2972 = vlaneseq
        %v2973 = vshrl.u32 %v2972, 7
        %v2974 = vsub.s32 %v2971, %v2973
        %v2975 = vrot.slane %v2968, %v2974
        %v2976 = vcombine.low %v2896, %v2897
        %v2978 = vunpack.c.l.s4 1983009808
        %v2979 = vunpack.c.0.s8 %v2978
        %v2980 = vlaneseq
        %v2981 = vshrl.u32 %v2980, 7
        %v2982 = vsub.s32 %v2979, %v2981
        %v2983 = vrot.slane %v2976, %v2982
        %v2984 = vcombine.low %v2888, %v2895
        %v2986 = vunpack.c.l.s4 1983009808
        %v2987 = vunpack.c.0.s8 %v2986
        %v2988 = vlaneseq
        %v2989 = vshrl.u32 %v2988, 7
        %v2990 = vsub.s32 %v2987, %v2989
        %v2991 = vrot.slane %v2984, %v2990
        %v2992 = vcombine.low %v2898, %v2899
        %v2994 = vunpack.c.l.s4 1983009808
        %v2995 = vunpack.c.0.s8 %v2994
        %v2996 = vlaneseq
        %v2997 = vshrl.u32 %v2996, 7
        %v2998 = vsub.s32 %v2995, %v2997
        %v2999 = vrot.slane %v2992, %v2998
        %v3000 = vcombine.low %v2975, %v2983
        %v3001 = vcombine.high %v2975, %v2983
        %v3003 = vunpack.c.l.s4 1934713408
        %v3004 = vunpack.c.0.s8 %v3003
        %v3005 = vlaneseq
        %v3006 = vshrl.u32 %v3005, 7
        %v3007 = vsub.s32 %v3004, %v3006
        %v3008 = vrot.slane %v3000, %v3007
        %v3010 = vunpack.c.l.s4 1934713408
        %v3011 = vunpack.c.0.s8 %v3010
        %v3012 = vlaneseq
        %v3013 = vshrl.u32 %v3012, 7
        %v3014 = vsub.s32 %v3011, %v3013
        %v3015 = vrot.slane %v3001, %v3014
        %v3016 = vcombine.low %v2991, %v2999
        %v3017 = vcombine.high %v2991, %v2999
        %v3019 = vunpack.c.l.s4 1934713408
        %v3020 = vunpack.c.0.s8 %v3019
        %v3021 = vlaneseq
        %v3022 = vshrl.u32 %v3021, 7
        %v3023 = vsub.s32 %v3020, %v3022
        %v3024 = vrot.slane %v3016, %v3023
        %v3026 = vunpack.c.l.s4 1934713408
        %v3027 = vunpack.c.0.s8 %v3026
        %v3028 = vlaneseq
        %v3029 = vshrl.u32 %v3028, 7
        %v3030 = vsub.s32 %v3027, %v3029
        %v3031 = vrot.slane %v3017, %v3030
        %v3032 = vcombine.low %v3008, %v3024
        %v3033 = vcombine.high %v3008, %v3024
        %v3034 = vcombine.low %v3015, %v3031
        %v3035 = vcombine.high %v3015, %v3031
        %3038 = vrot.lane.b32.xlu0 %v1017, 96
        %v3039 = vpop.permute.xlu0 %3038
        %3040 = vrot.lane.b32.xlu0 %v1021, 96
        %v3041 = vpop.permute.xlu0 %3040
        %3044 = vrot.lane.b32.xlu0 %v1017, 64
        %v3045 = vpop.permute.xlu0 %3044
        %3046 = vrot.lane.b32.xlu0 %v1021, 64
        %v3047 = vpop.permute.xlu0 %3046
        %3050 = vrot.lane.b32.xlu0 %v1017, 32
        %v3051 = vpop.permute.xlu0 %3050
        %3052 = vrot.lane.b32.xlu0 %v1021, 32
        %v3053 = vpop.permute.xlu0 %3052
        %v3056 = vcombine.low %v1017, %v3045
        %v3057 = vcombine.high %v1017, %v3045
        %v3059 = vunpack.c.l.s4 1983009808
        %v3060 = vunpack.c.0.s8 %v3059
        %v3061 = vlaneseq
        %v3062 = vshrl.u32 %v3061, 7
        %v3063 = vsub.s32 %v3060, %v3062
        %v3064 = vrot.slane %v3056, %v3063
        %v3066 = vunpack.c.l.s4 1983009808
        %v3067 = vunpack.c.0.s8 %v3066
        %v3068 = vlaneseq
        %v3069 = vshrl.u32 %v3068, 7
        %v3070 = vsub.s32 %v3067, %v3069
        %v3071 = vrot.slane %v3057, %v3070
        %v3072 = vcombine.low %v3039, %v3051
        %v3073 = vcombine.high %v3039, %v3051
        %v3075 = vunpack.c.l.s4 1983009808
        %v3076 = vunpack.c.0.s8 %v3075
        %v3077 = vlaneseq
        %v3078 = vshrl.u32 %v3077, 7
        %v3079 = vsub.s32 %v3076, %v3078
        %v3080 = vrot.slane %v3072, %v3079
        %v3082 = vunpack.c.l.s4 1983009808
        %v3083 = vunpack.c.0.s8 %v3082
        %v3084 = vlaneseq
        %v3085 = vshrl.u32 %v3084, 7
        %v3086 = vsub.s32 %v3083, %v3085
        %v3087 = vrot.slane %v3073, %v3086
        %v3088 = vcombine.low %v3064, %v3080
        %v3089 = vcombine.high %v3064, %v3080
        %v3091 = vunpack.c.l.s4 1934713408
        %v3092 = vunpack.c.0.s8 %v3091
        %v3093 = vlaneseq
        %v3094 = vshrl.u32 %v3093, 7
        %v3095 = vsub.s32 %v3092, %v3094
        %v3096 = vrot.slane %v3088, %v3095
        %v3098 = vunpack.c.l.s4 1934713408
        %v3099 = vunpack.c.0.s8 %v3098
        %v3100 = vlaneseq
        %v3101 = vshrl.u32 %v3100, 7
        %v3102 = vsub.s32 %v3099, %v3101
        %v3103 = vrot.slane %v3089, %v3102
        %v3104 = vcombine.low %v3071, %v3087
        %v3105 = vcombine.high %v3071, %v3087
        %v3107 = vunpack.c.l.s4 1934713408
        %v3108 = vunpack.c.0.s8 %v3107
        %v3109 = vlaneseq
        %v3110 = vshrl.u32 %v3109, 7
        %v3111 = vsub.s32 %v3108, %v3110
        %v3112 = vrot.slane %v3104, %v3111
        %v3114 = vunpack.c.l.s4 1934713408
        %v3115 = vunpack.c.0.s8 %v3114
        %v3116 = vlaneseq
        %v3117 = vshrl.u32 %v3116, 7
        %v3118 = vsub.s32 %v3115, %v3117
        %v3119 = vrot.slane %v3105, %v3118
        %v3120 = vcombine.high %v3096, 0.0
        %v3121 = vcombine.high %v3103, 0.0
        %v3122 = vcombine.high %v3112, 0.0
        %v3123 = vcombine.high %v3119, 0.0
        %v3124 = vcombine.low %v1021, %v3047
        %v3125 = vcombine.high %v1021, %v3047
        %v3127 = vunpack.c.l.s4 1983009808
        %v3128 = vunpack.c.0.s8 %v3127
        %v3129 = vlaneseq
        %v3130 = vshrl.u32 %v3129, 7
        %v3131 = vsub.s32 %v3128, %v3130
        %v3132 = vrot.slane %v3124, %v3131
        %v3134 = vunpack.c.l.s4 1983009808
        %v3135 = vunpack.c.0.s8 %v3134
        %v3136 = vlaneseq
        %v3137 = vshrl.u32 %v3136, 7
        %v3138 = vsub.s32 %v3135, %v3137
        %v3139 = vrot.slane %v3125, %v3138
        %v3140 = vcombine.low %v3041, %v3053
        %v3141 = vcombine.high %v3041, %v3053
        %v3143 = vunpack.c.l.s4 1983009808
        %v3144 = vunpack.c.0.s8 %v3143
        %v3145 = vlaneseq
        %v3146 = vshrl.u32 %v3145, 7
        %v3147 = vsub.s32 %v3144, %v3146
        %v3148 = vrot.slane %v3140, %v3147
        %v3150 = vunpack.c.l.s4 1983009808
        %v3151 = vunpack.c.0.s8 %v3150
        %v3152 = vlaneseq
        %v3153 = vshrl.u32 %v3152, 7
        %v3154 = vsub.s32 %v3151, %v3153
        %v3155 = vrot.slane %v3141, %v3154
        %v3156 = vcombine.low %v3132, %v3148
        %v3157 = vcombine.high %v3132, %v3148
        %v3159 = vunpack.c.l.s4 1934713408
        %v3160 = vunpack.c.0.s8 %v3159
        %v3161 = vlaneseq
        %v3162 = vshrl.u32 %v3161, 7
        %v3163 = vsub.s32 %v3160, %v3162
        %v3164 = vrot.slane %v3156, %v3163
        %v3166 = vunpack.c.l.s4 1934713408
        %v3167 = vunpack.c.0.s8 %v3166
        %v3168 = vlaneseq
        %v3169 = vshrl.u32 %v3168, 7
        %v3170 = vsub.s32 %v3167, %v3169
        %v3171 = vrot.slane %v3157, %v3170
        %v3172 = vcombine.low %v3139, %v3155
        %v3173 = vcombine.high %v3139, %v3155
        %v3175 = vunpack.c.l.s4 1934713408
        %v3176 = vunpack.c.0.s8 %v3175
        %v3177 = vlaneseq
        %v3178 = vshrl.u32 %v3177, 7
        %v3179 = vsub.s32 %v3176, %v3178
        %v3180 = vrot.slane %v3172, %v3179
        %v3182 = vunpack.c.l.s4 1934713408
        %v3183 = vunpack.c.0.s8 %v3182
        %v3184 = vlaneseq
        %v3185 = vshrl.u32 %v3184, 7
        %v3186 = vsub.s32 %v3183, %v3185
        %v3187 = vrot.slane %v3173, %v3186
        %v3188 = vcombine.high %v3164, 0.0
        %v3189 = vcombine.high %v3171, 0.0
        %v3190 = vcombine.high %v3180, 0.0
        %v3191 = vcombine.high %v3187, 0.0
        %v3192 = vcombine.low %v3096, %v3103
        %v3194 = vunpack.c.l.s4 1983009808
        %v3195 = vunpack.c.0.s8 %v3194
        %v3196 = vlaneseq
        %v3197 = vshrl.u32 %v3196, 7
        %v3198 = vsub.s32 %v3195, %v3197
        %v3199 = vrot.slane %v3192, %v3198
        %v3200 = vcombine.low %v3120, %v3121
        %v3202 = vunpack.c.l.s4 1983009808
        %v3203 = vunpack.c.0.s8 %v3202
        %v3204 = vlaneseq
        %v3205 = vshrl.u32 %v3204, 7
        %v3206 = vsub.s32 %v3203, %v3205
        %v3207 = vrot.slane %v3200, %v3206
        %v3208 = vcombine.low %v3112, %v3119
        %v3210 = vunpack.c.l.s4 1983009808
        %v3211 = vunpack.c.0.s8 %v3210
        %v3212 = vlaneseq
        %v3213 = vshrl.u32 %v3212, 7
        %v3214 = vsub.s32 %v3211, %v3213
        %v3215 = vrot.slane %v3208, %v3214
        %v3216 = vcombine.low %v3122, %v3123
        %v3218 = vunpack.c.l.s4 1983009808
        %v3219 = vunpack.c.0.s8 %v3218
        %v3220 = vlaneseq
        %v3221 = vshrl.u32 %v3220, 7
        %v3222 = vsub.s32 %v3219, %v3221
        %v3223 = vrot.slane %v3216, %v3222
        %v3224 = vcombine.low %v3199, %v3207
        %v3225 = vcombine.high %v3199, %v3207
        %v3227 = vunpack.c.l.s4 1934713408
        %v3228 = vunpack.c.0.s8 %v3227
        %v3229 = vlaneseq
        %v3230 = vshrl.u32 %v3229, 7
        %v3231 = vsub.s32 %v3228, %v3230
        %v3232 = vrot.slane %v3224, %v3231
        %v3234 = vunpack.c.l.s4 1934713408
        %v3235 = vunpack.c.0.s8 %v3234
        %v3236 = vlaneseq
        %v3237 = vshrl.u32 %v3236, 7
        %v3238 = vsub.s32 %v3235, %v3237
        %v3239 = vrot.slane %v3225, %v3238
        %v3240 = vcombine.low %v3215, %v3223
        %v3241 = vcombine.high %v3215, %v3223
        %v3243 = vunpack.c.l.s4 1934713408
        %v3244 = vunpack.c.0.s8 %v3243
        %v3245 = vlaneseq
        %v3246 = vshrl.u32 %v3245, 7
        %v3247 = vsub.s32 %v3244, %v3246
        %v3248 = vrot.slane %v3240, %v3247
        %v3250 = vunpack.c.l.s4 1934713408
        %v3251 = vunpack.c.0.s8 %v3250
        %v3252 = vlaneseq
        %v3253 = vshrl.u32 %v3252, 7
        %v3254 = vsub.s32 %v3251, %v3253
        %v3255 = vrot.slane %v3241, %v3254
        %v3256 = vcombine.low %v3232, %v3248
        %v3257 = vcombine.high %v3232, %v3248
        %v3258 = vcombine.low %v3239, %v3255
        %v3259 = vcombine.high %v3239, %v3255
        %v3260 = vcombine.low %v3164, %v3171
        %v3262 = vunpack.c.l.s4 1983009808
        %v3263 = vunpack.c.0.s8 %v3262
        %v3264 = vlaneseq
        %v3265 = vshrl.u32 %v3264, 7
        %v3266 = vsub.s32 %v3263, %v3265
        %v3267 = vrot.slane %v3260, %v3266
        %v3268 = vcombine.low %v3188, %v3189
        %v3270 = vunpack.c.l.s4 1983009808
        %v3271 = vunpack.c.0.s8 %v3270
        %v3272 = vlaneseq
        %v3273 = vshrl.u32 %v3272, 7
        %v3274 = vsub.s32 %v3271, %v3273
        %v3275 = vrot.slane %v3268, %v3274
        %v3276 = vcombine.low %v3180, %v3187
        %v3278 = vunpack.c.l.s4 1983009808
        %v3279 = vunpack.c.0.s8 %v3278
        %v3280 = vlaneseq
        %v3281 = vshrl.u32 %v3280, 7
        %v3282 = vsub.s32 %v3279, %v3281
        %v3283 = vrot.slane %v3276, %v3282
        %v3284 = vcombine.low %v3190, %v3191
        %v3286 = vunpack.c.l.s4 1983009808
        %v3287 = vunpack.c.0.s8 %v3286
        %v3288 = vlaneseq
        %v3289 = vshrl.u32 %v3288, 7
        %v3290 = vsub.s32 %v3287, %v3289
        %v3291 = vrot.slane %v3284, %v3290
        %v3292 = vcombine.low %v3267, %v3275
        %v3293 = vcombine.high %v3267, %v3275
        %v3295 = vunpack.c.l.s4 1934713408
        %v3296 = vunpack.c.0.s8 %v3295
        %v3297 = vlaneseq
        %v3298 = vshrl.u32 %v3297, 7
        %v3299 = vsub.s32 %v3296, %v3298
        %v3300 = vrot.slane %v3292, %v3299
        %v3302 = vunpack.c.l.s4 1934713408
        %v3303 = vunpack.c.0.s8 %v3302
        %v3304 = vlaneseq
        %v3305 = vshrl.u32 %v3304, 7
        %v3306 = vsub.s32 %v3303, %v3305
        %v3307 = vrot.slane %v3293, %v3306
        %v3308 = vcombine.low %v3283, %v3291
        %v3309 = vcombine.high %v3283, %v3291
        %v3311 = vunpack.c.l.s4 1934713408
        %v3312 = vunpack.c.0.s8 %v3311
        %v3313 = vlaneseq
        %v3314 = vshrl.u32 %v3313, 7
        %v3315 = vsub.s32 %v3312, %v3314
        %v3316 = vrot.slane %v3308, %v3315
        %v3318 = vunpack.c.l.s4 1934713408
        %v3319 = vunpack.c.0.s8 %v3318
        %v3320 = vlaneseq
        %v3321 = vshrl.u32 %v3320, 7
        %v3322 = vsub.s32 %v3319, %v3321
        %v3323 = vrot.slane %v3309, %v3322
        %v3324 = vcombine.low %v3300, %v3316
        %v3325 = vcombine.high %v3300, %v3316
        %v3326 = vcombine.low %v3307, %v3323
        %v3327 = vcombine.high %v3307, %v3323
        %3330 = vrot.lane.b32.xlu0 %v1066, 96
        %v3331 = vpop.permute.xlu0 %3330
        %3332 = vrot.lane.b32.xlu0 %v1069, 96
        %v3333 = vpop.permute.xlu0 %3332
        %3336 = vrot.lane.b32.xlu0 %v1066, 64
        %v3337 = vpop.permute.xlu0 %3336
        %3338 = vrot.lane.b32.xlu0 %v1069, 64
        %v3339 = vpop.permute.xlu0 %3338
        %3342 = vrot.lane.b32.xlu0 %v1066, 32
        %v3343 = vpop.permute.xlu0 %3342
        %3344 = vrot.lane.b32.xlu0 %v1069, 32
        %v3345 = vpop.permute.xlu0 %3344
        %v3348 = vcombine.low %v1066, %v3337
        %v3349 = vcombine.high %v1066, %v3337
        %v3351 = vunpack.c.l.s4 1983009808
        %v3352 = vunpack.c.0.s8 %v3351
        %v3353 = vlaneseq
        %v3354 = vshrl.u32 %v3353, 7
        %v3355 = vsub.s32 %v3352, %v3354
        %v3356 = vrot.slane %v3348, %v3355
        %v3358 = vunpack.c.l.s4 1983009808
        %v3359 = vunpack.c.0.s8 %v3358
        %v3360 = vlaneseq
        %v3361 = vshrl.u32 %v3360, 7
        %v3362 = vsub.s32 %v3359, %v3361
        %v3363 = vrot.slane %v3349, %v3362
        %v3364 = vcombine.low %v3331, %v3343
        %v3365 = vcombine.high %v3331, %v3343
        %v3367 = vunpack.c.l.s4 1983009808
        %v3368 = vunpack.c.0.s8 %v3367
        %v3369 = vlaneseq
        %v3370 = vshrl.u32 %v3369, 7
        %v3371 = vsub.s32 %v3368, %v3370
        %v3372 = vrot.slane %v3364, %v3371
        %v3374 = vunpack.c.l.s4 1983009808
        %v3375 = vunpack.c.0.s8 %v3374
        %v3376 = vlaneseq
        %v3377 = vshrl.u32 %v3376, 7
        %v3378 = vsub.s32 %v3375, %v3377
        %v3379 = vrot.slane %v3365, %v3378
        %v3380 = vcombine.low %v3356, %v3372
        %v3381 = vcombine.high %v3356, %v3372
        %v3383 = vunpack.c.l.s4 1934713408
        %v3384 = vunpack.c.0.s8 %v3383
        %v3385 = vlaneseq
        %v3386 = vshrl.u32 %v3385, 7
        %v3387 = vsub.s32 %v3384, %v3386
        %v3388 = vrot.slane %v3380, %v3387
        %v3390 = vunpack.c.l.s4 1934713408
        %v3391 = vunpack.c.0.s8 %v3390
        %v3392 = vlaneseq
        %v3393 = vshrl.u32 %v3392, 7
        %v3394 = vsub.s32 %v3391, %v3393
        %v3395 = vrot.slane %v3381, %v3394
        %v3396 = vcombine.low %v3363, %v3379
        %v3397 = vcombine.high %v3363, %v3379
        %v3399 = vunpack.c.l.s4 1934713408
        %v3400 = vunpack.c.0.s8 %v3399
        %v3401 = vlaneseq
        %v3402 = vshrl.u32 %v3401, 7
        %v3403 = vsub.s32 %v3400, %v3402
        %v3404 = vrot.slane %v3396, %v3403
        %v3406 = vunpack.c.l.s4 1934713408
        %v3407 = vunpack.c.0.s8 %v3406
        %v3408 = vlaneseq
        %v3409 = vshrl.u32 %v3408, 7
        %v3410 = vsub.s32 %v3407, %v3409
        %v3411 = vrot.slane %v3397, %v3410
        %v3412 = vcombine.high %v3388, 0.0
        %v3413 = vcombine.high %v3395, 0.0
        %v3414 = vcombine.high %v3404, 0.0
        %v3415 = vcombine.high %v3411, 0.0
        %v3416 = vcombine.low %v1069, %v3339
        %v3417 = vcombine.high %v1069, %v3339
        %v3419 = vunpack.c.l.s4 1983009808
        %v3420 = vunpack.c.0.s8 %v3419
        %v3421 = vlaneseq
        %v3422 = vshrl.u32 %v3421, 7
        %v3423 = vsub.s32 %v3420, %v3422
        %v3424 = vrot.slane %v3416, %v3423
        %v3426 = vunpack.c.l.s4 1983009808
        %v3427 = vunpack.c.0.s8 %v3426
        %v3428 = vlaneseq
        %v3429 = vshrl.u32 %v3428, 7
        %v3430 = vsub.s32 %v3427, %v3429
        %v3431 = vrot.slane %v3417, %v3430
        %v3432 = vcombine.low %v3333, %v3345
        %v3433 = vcombine.high %v3333, %v3345
        %v3435 = vunpack.c.l.s4 1983009808
        %v3436 = vunpack.c.0.s8 %v3435
        %v3437 = vlaneseq
        %v3438 = vshrl.u32 %v3437, 7
        %v3439 = vsub.s32 %v3436, %v3438
        %v3440 = vrot.slane %v3432, %v3439
        %v3442 = vunpack.c.l.s4 1983009808
        %v3443 = vunpack.c.0.s8 %v3442
        %v3444 = vlaneseq
        %v3445 = vshrl.u32 %v3444, 7
        %v3446 = vsub.s32 %v3443, %v3445
        %v3447 = vrot.slane %v3433, %v3446
        %v3448 = vcombine.low %v3424, %v3440
        %v3449 = vcombine.high %v3424, %v3440
        %v3451 = vunpack.c.l.s4 1934713408
        %v3452 = vunpack.c.0.s8 %v3451
        %v3453 = vlaneseq
        %v3454 = vshrl.u32 %v3453, 7
        %v3455 = vsub.s32 %v3452, %v3454
        %v3456 = vrot.slane %v3448, %v3455
        %v3458 = vunpack.c.l.s4 1934713408
        %v3459 = vunpack.c.0.s8 %v3458
        %v3460 = vlaneseq
        %v3461 = vshrl.u32 %v3460, 7
        %v3462 = vsub.s32 %v3459, %v3461
        %v3463 = vrot.slane %v3449, %v3462
        %v3464 = vcombine.low %v3431, %v3447
        %v3465 = vcombine.high %v3431, %v3447
        %v3467 = vunpack.c.l.s4 1934713408
        %v3468 = vunpack.c.0.s8 %v3467
        %v3469 = vlaneseq
        %v3470 = vshrl.u32 %v3469, 7
        %v3471 = vsub.s32 %v3468, %v3470
        %v3472 = vrot.slane %v3464, %v3471
        %v3474 = vunpack.c.l.s4 1934713408
        %v3475 = vunpack.c.0.s8 %v3474
        %v3476 = vlaneseq
        %v3477 = vshrl.u32 %v3476, 7
        %v3478 = vsub.s32 %v3475, %v3477
        %v3479 = vrot.slane %v3465, %v3478
        %v3480 = vcombine.high %v3456, 0.0
        %v3481 = vcombine.high %v3463, 0.0
        %v3482 = vcombine.high %v3472, 0.0
        %v3483 = vcombine.high %v3479, 0.0
        %v3484 = vcombine.low %v3388, %v3395
        %v3486 = vunpack.c.l.s4 1983009808
        %v3487 = vunpack.c.0.s8 %v3486
        %v3488 = vlaneseq
        %v3489 = vshrl.u32 %v3488, 7
        %v3490 = vsub.s32 %v3487, %v3489
        %v3491 = vrot.slane %v3484, %v3490
        %v3492 = vcombine.low %v3412, %v3413
        %v3494 = vunpack.c.l.s4 1983009808
        %v3495 = vunpack.c.0.s8 %v3494
        %v3496 = vlaneseq
        %v3497 = vshrl.u32 %v3496, 7
        %v3498 = vsub.s32 %v3495, %v3497
        %v3499 = vrot.slane %v3492, %v3498
        %v3500 = vcombine.low %v3404, %v3411
        %v3502 = vunpack.c.l.s4 1983009808
        %v3503 = vunpack.c.0.s8 %v3502
        %v3504 = vlaneseq
        %v3505 = vshrl.u32 %v3504, 7
        %v3506 = vsub.s32 %v3503, %v3505
        %v3507 = vrot.slane %v3500, %v3506
        %v3508 = vcombine.low %v3414, %v3415
        %v3510 = vunpack.c.l.s4 1983009808
        %v3511 = vunpack.c.0.s8 %v3510
        %v3512 = vlaneseq
        %v3513 = vshrl.u32 %v3512, 7
        %v3514 = vsub.s32 %v3511, %v3513
        %v3515 = vrot.slane %v3508, %v3514
        %v3516 = vcombine.low %v3491, %v3499
        %v3517 = vcombine.high %v3491, %v3499
        %v3519 = vunpack.c.l.s4 1934713408
        %v3520 = vunpack.c.0.s8 %v3519
        %v3521 = vlaneseq
        %v3522 = vshrl.u32 %v3521, 7
        %v3523 = vsub.s32 %v3520, %v3522
        %v3524 = vrot.slane %v3516, %v3523
        %v3526 = vunpack.c.l.s4 1934713408
        %v3527 = vunpack.c.0.s8 %v3526
        %v3528 = vlaneseq
        %v3529 = vshrl.u32 %v3528, 7
        %v3530 = vsub.s32 %v3527, %v3529
        %v3531 = vrot.slane %v3517, %v3530
        %v3532 = vcombine.low %v3507, %v3515
        %v3533 = vcombine.high %v3507, %v3515
        %v3535 = vunpack.c.l.s4 1934713408
        %v3536 = vunpack.c.0.s8 %v3535
        %v3537 = vlaneseq
        %v3538 = vshrl.u32 %v3537, 7
        %v3539 = vsub.s32 %v3536, %v3538
        %v3540 = vrot.slane %v3532, %v3539
        %v3542 = vunpack.c.l.s4 1934713408
        %v3543 = vunpack.c.0.s8 %v3542
        %v3544 = vlaneseq
        %v3545 = vshrl.u32 %v3544, 7
        %v3546 = vsub.s32 %v3543, %v3545
        %v3547 = vrot.slane %v3533, %v3546
        %v3548 = vcombine.low %v3524, %v3540
        %v3549 = vcombine.high %v3524, %v3540
        %v3550 = vcombine.low %v3531, %v3547
        %v3551 = vcombine.high %v3531, %v3547
        %v3552 = vcombine.low %v3456, %v3463
        %v3554 = vunpack.c.l.s4 1983009808
        %v3555 = vunpack.c.0.s8 %v3554
        %v3556 = vlaneseq
        %v3557 = vshrl.u32 %v3556, 7
        %v3558 = vsub.s32 %v3555, %v3557
        %v3559 = vrot.slane %v3552, %v3558
        %v3560 = vcombine.low %v3480, %v3481
        %v3562 = vunpack.c.l.s4 1983009808
        %v3563 = vunpack.c.0.s8 %v3562
        %v3564 = vlaneseq
        %v3565 = vshrl.u32 %v3564, 7
        %v3566 = vsub.s32 %v3563, %v3565
        %v3567 = vrot.slane %v3560, %v3566
        %v3568 = vcombine.low %v3472, %v3479
        %v3570 = vunpack.c.l.s4 1983009808
        %v3571 = vunpack.c.0.s8 %v3570
        %v3572 = vlaneseq
        %v3573 = vshrl.u32 %v3572, 7
        %v3574 = vsub.s32 %v3571, %v3573
        %v3575 = vrot.slane %v3568, %v3574
        %v3576 = vcombine.low %v3482, %v3483
        %v3578 = vunpack.c.l.s4 1983009808
        %v3579 = vunpack.c.0.s8 %v3578
        %v3580 = vlaneseq
        %v3581 = vshrl.u32 %v3580, 7
        %v3582 = vsub.s32 %v3579, %v3581
        %v3583 = vrot.slane %v3576, %v3582
        %v3584 = vcombine.low %v3559, %v3567
        %v3585 = vcombine.high %v3559, %v3567
        %v3587 = vunpack.c.l.s4 1934713408
        %v3588 = vunpack.c.0.s8 %v3587
        %v3589 = vlaneseq
        %v3590 = vshrl.u32 %v3589, 7
        %v3591 = vsub.s32 %v3588, %v3590
        %v3592 = vrot.slane %v3584, %v3591
        %v3594 = vunpack.c.l.s4 1934713408
        %v3595 = vunpack.c.0.s8 %v3594
        %v3596 = vlaneseq
        %v3597 = vshrl.u32 %v3596, 7
        %v3598 = vsub.s32 %v3595, %v3597
        %v3599 = vrot.slane %v3585, %v3598
        %v3600 = vcombine.low %v3575, %v3583
        %v3601 = vcombine.high %v3575, %v3583
        %v3603 = vunpack.c.l.s4 1934713408
        %v3604 = vunpack.c.0.s8 %v3603
        %v3605 = vlaneseq
        %v3606 = vshrl.u32 %v3605, 7
        %v3607 = vsub.s32 %v3604, %v3606
        %v3608 = vrot.slane %v3600, %v3607
        %v3610 = vunpack.c.l.s4 1934713408
        %v3611 = vunpack.c.0.s8 %v3610
        %v3612 = vlaneseq
        %v3613 = vshrl.u32 %v3612, 7
        %v3614 = vsub.s32 %v3611, %v3613
        %v3615 = vrot.slane %v3601, %v3614
        %v3616 = vcombine.low %v3592, %v3608
        %v3617 = vcombine.high %v3592, %v3608
        %v3618 = vcombine.low %v3599, %v3615
        %v3619 = vcombine.high %v3599, %v3615
        %v3620 = vpack.c.bf16 %v3032, %v2964
        %v3621 = vpack.c.bf16 %v3033, %v2965
        %v3622 = vpack.c.bf16 %v3034, %v2966
        %v3623 = vpack.c.bf16 %v3035, %v2967
        %v3624 = vpack.c.bf16 %v3324, %v3256
        %v3625 = vpack.c.bf16 %v3325, %v3257
        %v3626 = vpack.c.bf16 %v3326, %v3258
        %v3627 = vpack.c.bf16 %v3327, %v3259
        %v3629 = vsel %vm1958, %v3620, 0
        %v3632 = vsel %vm1958, %v3624, 0
        %3634 = vmatprep.subr.bf16.mxu0 0
        %3635 = vmatpush1.bf16.xpose.msra.mxu0 %v3632
        %3636 = vmatprep.subr.bf16.mxu0 0
        %3637 = vmatpush1.bf16.xpose.msra.mxu0 0
        %3638 = vmatprep.subr.bf16.mxu0 0
        %3639 = vmatpush1.bf16.xpose.msra.mxu0 0
        %3640 = vmatprep.subr.bf16.mxu0 0
        %3641 = vmatpush1.bf16.xpose.msra.mxu0 0
        %3642 = vmatprep.subr.bf16.mxu0 0
        %3643 = vmatpush1.bf16.xpose.msra.mxu0 0
        %3644 = vmatprep.subr.bf16.mxu0 0
        %3645 = vmatpush1.bf16.xpose.msra.mxu0 0
        %3646 = vmatprep.subr.bf16.mxu0 0
        %3647 = vmatpush1.bf16.xpose.msra.mxu0 0
        %3648 = vmatprep.subr.bf16.mxu0 0
        %3649 = vmatpush1.bf16.xpose.msra.mxu0 0
        %3650 = vmatprep.subr.bf16.mxu0 0
        %3651 = vmatpush1.bf16.xpose.msra.mxu0 0
        %3652 = vmatprep.subr.bf16.mxu0 0
        %3653 = vmatpush1.bf16.xpose.msra.mxu0 0
        %3654 = vmatprep.subr.bf16.mxu0 0
        %3655 = vmatpush1.bf16.xpose.msra.mxu0 0
        %3656 = vmatprep.subr.bf16.mxu0 0
        %3657 = vmatpush1.bf16.xpose.msra.mxu0 0
        %3658 = vmatprep.subr.bf16.mxu0 0
        %3659 = vmatpush1.bf16.xpose.msra.mxu0 0
        %3660 = vmatprep.subr.bf16.mxu0 0
        %3661 = vmatpush1.bf16.xpose.msra.mxu0 0
        %3662 = vmatprep.subr.bf16.mxu0 0
        %3663 = vmatpush1.bf16.xpose.msra.mxu0 0
        %3664 = vmatprep.subr.bf16.mxu0 0
        %3665 = vmatpush1.bf16.xpose.msra.mxu0 0
        %3666 = vmatprep.mubr.bf16.mxu0 0
        %3667 = vmatmul.mubr.bf16.gmra.mrb[0].mxu0 %v3629
        %v3668 = vpop.f32.mrb[0].mxu0
        %v3669 = vadd.f32 0.0, %v3668
        %v3670 = vpop.f32.mrb[0].mxu0
        %v3671 = vpop.f32.mrb[0].mxu0
        %v3672 = vadd.f32 0.0, %v3671
        %v3673 = vpop.f32.mrb[0].mxu0
        %3674 = vdwg.mxu0
        %v3676 = vsel %vm1958, %v3621, 0
        %v3679 = vsel %vm1958, %v3625, 0
        %3681 = vmatprep.subr.bf16.mxu0 0
        %3682 = vmatpush1.bf16.xpose.msra.mxu0 %v3679
        %3683 = vmatprep.subr.bf16.mxu0 0
        %3684 = vmatpush1.bf16.xpose.msra.mxu0 0
        %3685 = vmatprep.subr.bf16.mxu0 0
        %3686 = vmatpush1.bf16.xpose.msra.mxu0 0
        %3687 = vmatprep.subr.bf16.mxu0 0
        %3688 = vmatpush1.bf16.xpose.msra.mxu0 0
        %3689 = vmatprep.subr.bf16.mxu0 0
        %3690 = vmatpush1.bf16.xpose.msra.mxu0 0
        %3691 = vmatprep.subr.bf16.mxu0 0
        %3692 = vmatpush1.bf16.xpose.msra.mxu0 0
        %3693 = vmatprep.subr.bf16.mxu0 0
        %3694 = vmatpush1.bf16.xpose.msra.mxu0 0
        %3695 = vmatprep.subr.bf16.mxu0 0
        %3696 = vmatpush1.bf16.xpose.msra.mxu0 0
        %3697 = vmatprep.subr.bf16.mxu0 0
        %3698 = vmatpush1.bf16.xpose.msra.mxu0 0
        %3699 = vmatprep.subr.bf16.mxu0 0
        %3700 = vmatpush1.bf16.xpose.msra.mxu0 0
        %3701 = vmatprep.subr.bf16.mxu0 0
        %3702 = vmatpush1.bf16.xpose.msra.mxu0 0
        %3703 = vmatprep.subr.bf16.mxu0 0
        %3704 = vmatpush1.bf16.xpose.msra.mxu0 0
        %3705 = vmatprep.subr.bf16.mxu0 0
        %3706 = vmatpush1.bf16.xpose.msra.mxu0 0
        %3707 = vmatprep.subr.bf16.mxu0 0
        %3708 = vmatpush1.bf16.xpose.msra.mxu0 0
        %3709 = vmatprep.subr.bf16.mxu0 0
        %3710 = vmatpush1.bf16.xpose.msra.mxu0 0
        %3711 = vmatprep.subr.bf16.mxu0 0
        %3712 = vmatpush1.bf16.xpose.msra.mxu0 0
        %3713 = vmatprep.mubr.bf16.mxu0 0
        %3714 = vmatmul.mubr.bf16.gmra.mrb[0].mxu0 %v3676
        %v3715 = vpop.f32.mrb[0].mxu0
        %v3716 = vadd.f32 0.0, %v3715
        %v3717 = vpop.f32.mrb[0].mxu0
        %v3718 = vpop.f32.mrb[0].mxu0
        %v3719 = vadd.f32 0.0, %v3718
        %v3720 = vpop.f32.mrb[0].mxu0
        %3721 = vdwg.mxu0
        %v3723 = vsel %vm1958, %v3622, 0
        %v3726 = vsel %vm1958, %v3626, 0
        %3728 = vmatprep.subr.bf16.mxu0 0
        %3729 = vmatpush1.bf16.xpose.msra.mxu0 %v3726
        %3730 = vmatprep.subr.bf16.mxu0 0
        %3731 = vmatpush1.bf16.xpose.msra.mxu0 0
        %3732 = vmatprep.subr.bf16.mxu0 0
        %3733 = vmatpush1.bf16.xpose.msra.mxu0 0
        %3734 = vmatprep.subr.bf16.mxu0 0
        %3735 = vmatpush1.bf16.xpose.msra.mxu0 0
        %3736 = vmatprep.subr.bf16.mxu0 0
        %3737 = vmatpush1.bf16.xpose.msra.mxu0 0
        %3738 = vmatprep.subr.bf16.mxu0 0
        %3739 = vmatpush1.bf16.xpose.msra.mxu0 0
        %3740 = vmatprep.subr.bf16.mxu0 0
        %3741 = vmatpush1.bf16.xpose.msra.mxu0 0
        %3742 = vmatprep.subr.bf16.mxu0 0
        %3743 = vmatpush1.bf16.xpose.msra.mxu0 0
        %3744 = vmatprep.subr.bf16.mxu0 0
        %3745 = vmatpush1.bf16.xpose.msra.mxu0 0
        %3746 = vmatprep.subr.bf16.mxu0 0
        %3747 = vmatpush1.bf16.xpose.msra.mxu0 0
        %3748 = vmatprep.subr.bf16.mxu0 0
        %3749 = vmatpush1.bf16.xpose.msra.mxu0 0
        %3750 = vmatprep.subr.bf16.mxu0 0
        %3751 = vmatpush1.bf16.xpose.msra.mxu0 0
        %3752 = vmatprep.subr.bf16.mxu0 0
        %3753 = vmatpush1.bf16.xpose.msra.mxu0 0
        %3754 = vmatprep.subr.bf16.mxu0 0
        %3755 = vmatpush1.bf16.xpose.msra.mxu0 0
        %3756 = vmatprep.subr.bf16.mxu0 0
        %3757 = vmatpush1.bf16.xpose.msra.mxu0 0
        %3758 = vmatprep.subr.bf16.mxu0 0
        %3759 = vmatpush1.bf16.xpose.msra.mxu0 0
        %3760 = vmatprep.mubr.bf16.mxu0 0
        %3761 = vmatmul.mubr.bf16.gmra.mrb[0].mxu0 %v3723
        %v3762 = vpop.f32.mrb[0].mxu0
        %v3763 = vadd.f32 0.0, %v3762
        %v3764 = vpop.f32.mrb[0].mxu0
        %v3765 = vpop.f32.mrb[0].mxu0
        %v3766 = vadd.f32 0.0, %v3765
        %v3767 = vpop.f32.mrb[0].mxu0
        %3768 = vdwg.mxu0
        %v3770 = vsel %vm1958, %v3623, 0
        %v3773 = vsel %vm1958, %v3627, 0
        %3775 = vmatprep.subr.bf16.mxu0 0
        %3776 = vmatpush1.bf16.xpose.msra.mxu0 %v3773
        %3777 = vmatprep.subr.bf16.mxu0 0
        %3778 = vmatpush1.bf16.xpose.msra.mxu0 0
        %3779 = vmatprep.subr.bf16.mxu0 0
        %3780 = vmatpush1.bf16.xpose.msra.mxu0 0
        %3781 = vmatprep.subr.bf16.mxu0 0
        %3782 = vmatpush1.bf16.xpose.msra.mxu0 0
        %3783 = vmatprep.subr.bf16.mxu0 0
        %3784 = vmatpush1.bf16.xpose.msra.mxu0 0
        %3785 = vmatprep.subr.bf16.mxu0 0
        %3786 = vmatpush1.bf16.xpose.msra.mxu0 0
        %3787 = vmatprep.subr.bf16.mxu0 0
        %3788 = vmatpush1.bf16.xpose.msra.mxu0 0
        %3789 = vmatprep.subr.bf16.mxu0 0
        %3790 = vmatpush1.bf16.xpose.msra.mxu0 0
        %3791 = vmatprep.subr.bf16.mxu0 0
        %3792 = vmatpush1.bf16.xpose.msra.mxu0 0
        %3793 = vmatprep.subr.bf16.mxu0 0
        %3794 = vmatpush1.bf16.xpose.msra.mxu0 0
        %3795 = vmatprep.subr.bf16.mxu0 0
        %3796 = vmatpush1.bf16.xpose.msra.mxu0 0
        %3797 = vmatprep.subr.bf16.mxu0 0
        %3798 = vmatpush1.bf16.xpose.msra.mxu0 0
        %3799 = vmatprep.subr.bf16.mxu0 0
        %3800 = vmatpush1.bf16.xpose.msra.mxu0 0
        %3801 = vmatprep.subr.bf16.mxu0 0
        %3802 = vmatpush1.bf16.xpose.msra.mxu0 0
        %3803 = vmatprep.subr.bf16.mxu0 0
        %3804 = vmatpush1.bf16.xpose.msra.mxu0 0
        %3805 = vmatprep.subr.bf16.mxu0 0
        %3806 = vmatpush1.bf16.xpose.msra.mxu0 0
        %3807 = vmatprep.mubr.bf16.mxu0 0
        %3808 = vmatmul.mubr.bf16.gmra.mrb[0].mxu0 %v3770
        %v3809 = vpop.f32.mrb[0].mxu0
        %v3810 = vadd.f32 0.0, %v3809
        %v3811 = vpop.f32.mrb[0].mxu0
        %v3812 = vpop.f32.mrb[0].mxu0
        %v3813 = vadd.f32 0.0, %v3812
        %v3814 = vpop.f32.mrb[0].mxu0
        %3815 = vdwg.mxu0
        %v3816 = vmul.f32 %v3669, 0.17677669
        %v3817 = vmul.f32 %v3672, 0.17677669
        %v3818 = vmul.f32 %v3716, 0.17677669
        %v3819 = vmul.f32 %v3719, 0.17677669
        %v3820 = vmul.f32 %v3763, 0.17677669
        %v3821 = vmul.f32 %v3766, 0.17677669
        %v3822 = vmul.f32 %v3810, 0.17677669
        %v3823 = vmul.f32 %v3813, 0.17677669
        %v3824 = vlaneseq
        %v3825 = vshrl.u32 %v3824, 7
        %v3826 = vsub.s32 1, %v3825
        %v3827 = vrot.slane %v1949, %v3826
        %v3828 = vadd.f32 %v3816, %v3827
        %v3829 = vadd.f32 %v3817, %v3827
        %v3830 = vadd.f32 %v3818, %v3827
        %v3831 = vadd.f32 %v3819, %v3827
        %v3832 = vadd.f32 %v3820, %v3827
        %v3833 = vadd.f32 %v3821, %v3827
        %v3834 = vadd.f32 %v3822, %v3827
        %v3835 = vadd.f32 %v3823, %v3827
        %v3836 = vsel %vm2167, %v3828, -inf
        %3837 = vmax.xlane.f32.xlu0 %v3836
        %v3838 = vpop.xlane.xlu0 %3837
        %v3839 = vsel %vm2167, %v3829, -inf
        %3840 = vmax.xlane.f32.xlu0 %v3839
        %v3841 = vpop.xlane.xlu0 %3840
        %v3842 = vsel %vm2167, %v3830, -inf
        %3843 = vmax.xlane.f32.xlu0 %v3842
        %v3844 = vpop.xlane.xlu0 %3843
        %v3845 = vsel %vm2167, %v3831, -inf
        %3846 = vmax.xlane.f32.xlu0 %v3845
        %v3847 = vpop.xlane.xlu0 %3846
        %v3848 = vsel %vm2167, %v3832, -inf
        %3849 = vmax.xlane.f32.xlu0 %v3848
        %v3850 = vpop.xlane.xlu0 %3849
        %v3851 = vsel %vm2167, %v3833, -inf
        %3852 = vmax.xlane.f32.xlu0 %v3851
        %v3853 = vpop.xlane.xlu0 %3852
        %v3854 = vsel %vm2167, %v3834, -inf
        %3855 = vmax.xlane.f32.xlu0 %v3854
        %v3856 = vpop.xlane.xlu0 %3855
        %v3857 = vsel %vm2167, %v3835, -inf
        %3858 = vmax.xlane.f32.xlu0 %v3857
        %v3859 = vpop.xlane.xlu0 %3858
        %v3860 = vsub.f32 %v3828, %v3838
        %v3861 = vsub.f32 %v3829, %v3841
        %v3862 = vsub.f32 %v3830, %v3844
        %v3863 = vsub.f32 %v3831, %v3847
        %v3864 = vsub.f32 %v3832, %v3850
        %v3865 = vsub.f32 %v3833, %v3853
        %v3866 = vsub.f32 %v3834, %v3856
        %v3867 = vsub.f32 %v3835, %v3859
        %v3868 = vmul.f32 %v3860, 1.442695
        %v3869 = vpow.pop %v3868
        %v3870 = vmul.f32 %v3861, 1.442695
        %v3871 = vpow.pop %v3870
        %v3872 = vmul.f32 %v3862, 1.442695
        %v3873 = vpow.pop %v3872
        %v3874 = vmul.f32 %v3863, 1.442695
        %v3875 = vpow.pop %v3874
        %v3876 = vmul.f32 %v3864, 1.442695
        %v3877 = vpow.pop %v3876
        %v3878 = vmul.f32 %v3865, 1.442695
        %v3879 = vpow.pop %v3878
        %v3880 = vmul.f32 %v3866, 1.442695
        %v3881 = vpow.pop %v3880
        %v3882 = vmul.f32 %v3867, 1.442695
        %v3883 = vpow.pop %v3882
        %v3884 = vsel %vm2167, %v3869, 0.0
        %3885 = vadd.xlane.f32.xlu0 %v3884
        %v3886 = vpop.xlane.xlu0 %3885
        %v3887 = vsel %vm2167, %v3871, 0.0
        %3888 = vadd.xlane.f32.xlu0 %v3887
        %v3889 = vpop.xlane.xlu0 %3888
        %v3890 = vsel %vm2167, %v3873, 0.0
        %3891 = vadd.xlane.f32.xlu0 %v3890
        %v3892 = vpop.xlane.xlu0 %3891
        %v3893 = vsel %vm2167, %v3875, 0.0
        %3894 = vadd.xlane.f32.xlu0 %v3893
        %v3895 = vpop.xlane.xlu0 %3894
        %v3896 = vsel %vm2167, %v3877, 0.0
        %3897 = vadd.xlane.f32.xlu0 %v3896
        %v3898 = vpop.xlane.xlu0 %3897
        %v3899 = vsel %vm2167, %v3879, 0.0
        %3900 = vadd.xlane.f32.xlu0 %v3899
        %v3901 = vpop.xlane.xlu0 %3900
        %v3902 = vsel %vm2167, %v3881, 0.0
        %3903 = vadd.xlane.f32.xlu0 %v3902
        %v3904 = vpop.xlane.xlu0 %3903
        %v3905 = vsel %vm2167, %v3883, 0.0
        %3906 = vadd.xlane.f32.xlu0 %v3905
        %v3907 = vpop.xlane.xlu0 %3906
        %v3908 = vrcp.pop %v3886
        %v3909 = vrcp.pop %v3889
        %v3910 = vrcp.pop %v3892
        %v3911 = vrcp.pop %v3895
        %v3912 = vrcp.pop %v3898
        %v3913 = vrcp.pop %v3901
        %v3914 = vrcp.pop %v3904
        %v3915 = vrcp.pop %v3907
        %v3916 = vmul.f32 %v3869, %v3908
        %v3917 = vmul.f32 %v3871, %v3909
        %v3918 = vmul.f32 %v3873, %v3910
        %v3919 = vmul.f32 %v3875, %v3911
        %v3920 = vmul.f32 %v3877, %v3912
        %v3921 = vmul.f32 %v3879, %v3913
        %v3922 = vmul.f32 %v3881, %v3914
        %v3923 = vmul.f32 %v3883, %v3915
        %v3924 = vpack.c.bf16 %v3917, %v3916
        %v3925 = vpack.c.bf16 %v3919, %v3918
        %v3926 = vpack.c.bf16 %v3921, %v3920
        %v3927 = vpack.c.bf16 %v3923, %v3922
        %v3928 = vpack.c.bf16 %v3616, %v3548
        %v3929 = vpack.c.bf16 %v3617, %v3549
        %v3930 = vpack.c.bf16 %v3618, %v3550
        %v3931 = vpack.c.bf16 %v3619, %v3551
        %v3933 = vsel %vm2167, %v3924, 0
        %3935 = vmatprep.subr.bf16.mxu0 0
        %3936 = vmatpush1.bf16.msra.mxu0 %v3928
        %3937 = vmatprep.subr.bf16.mxu0 0
        %3938 = vmatpush1.bf16.msra.mxu0 0
        %3939 = vmatprep.subr.bf16.mxu0 0
        %3940 = vmatpush1.bf16.msra.mxu0 0
        %3941 = vmatprep.subr.bf16.mxu0 0
        %3942 = vmatpush1.bf16.msra.mxu0 0
        %3943 = vmatprep.subr.bf16.mxu0 0
        %3944 = vmatpush1.bf16.msra.mxu0 0
        %3945 = vmatprep.subr.bf16.mxu0 0
        %3946 = vmatpush1.bf16.msra.mxu0 0
        %3947 = vmatprep.subr.bf16.mxu0 0
        %3948 = vmatpush1.bf16.msra.mxu0 0
        %3949 = vmatprep.subr.bf16.mxu0 0
        %3950 = vmatpush1.bf16.msra.mxu0 0
        %3951 = vmatprep.subr.bf16.mxu0 0
        %3952 = vmatpush1.bf16.msra.mxu0 0
        %3953 = vmatprep.subr.bf16.mxu0 0
        %3954 = vmatpush1.bf16.msra.mxu0 0
        %3955 = vmatprep.subr.bf16.mxu0 0
        %3956 = vmatpush1.bf16.msra.mxu0 0
        %3957 = vmatprep.subr.bf16.mxu0 0
        %3958 = vmatpush1.bf16.msra.mxu0 0
        %3959 = vmatprep.subr.bf16.mxu0 0
        %3960 = vmatpush1.bf16.msra.mxu0 0
        %3961 = vmatprep.subr.bf16.mxu0 0
        %3962 = vmatpush1.bf16.msra.mxu0 0
        %3963 = vmatprep.subr.bf16.mxu0 0
        %3964 = vmatpush1.bf16.msra.mxu0 0
        %3965 = vmatprep.subr.bf16.mxu0 0
        %3966 = vmatpush1.bf16.msra.mxu0 0
        %3967 = vmatprep.mubr.bf16.mxu0 0
        %3968 = vmatmul.mubr.bf16.gmra.mrb[0].mxu0 %v3933
        %v3969 = vpop.f32.mrb[0].mxu0
        %v3970 = vadd.f32 0.0, %v3969
        %v3971 = vpop.f32.mrb[0].mxu0
        %v3972 = vpop.f32.mrb[0].mxu0
        %v3973 = vadd.f32 0.0, %v3972
        %v3974 = vpop.f32.mrb[0].mxu0
        %3975 = vdwg.mxu0
        %v3977 = vsel %vm2167, %v3925, 0
        %3979 = vmatprep.subr.bf16.mxu0 0
        %3980 = vmatpush1.bf16.msra.mxu0 %v3929
        %3981 = vmatprep.subr.bf16.mxu0 0
        %3982 = vmatpush1.bf16.msra.mxu0 0
        %3983 = vmatprep.subr.bf16.mxu0 0
        %3984 = vmatpush1.bf16.msra.mxu0 0
        %3985 = vmatprep.subr.bf16.mxu0 0
        %3986 = vmatpush1.bf16.msra.mxu0 0
        %3987 = vmatprep.subr.bf16.mxu0 0
        %3988 = vmatpush1.bf16.msra.mxu0 0
        %3989 = vmatprep.subr.bf16.mxu0 0
        %3990 = vmatpush1.bf16.msra.mxu0 0
        %3991 = vmatprep.subr.bf16.mxu0 0
        %3992 = vmatpush1.bf16.msra.mxu0 0
        %3993 = vmatprep.subr.bf16.mxu0 0
        %3994 = vmatpush1.bf16.msra.mxu0 0
        %3995 = vmatprep.subr.bf16.mxu0 0
        %3996 = vmatpush1.bf16.msra.mxu0 0
        %3997 = vmatprep.subr.bf16.mxu0 0
        %3998 = vmatpush1.bf16.msra.mxu0 0
        %3999 = vmatprep.subr.bf16.mxu0 0
        %4000 = vmatpush1.bf16.msra.mxu0 0
        %4001 = vmatprep.subr.bf16.mxu0 0
        %4002 = vmatpush1.bf16.msra.mxu0 0
        %4003 = vmatprep.subr.bf16.mxu0 0
        %4004 = vmatpush1.bf16.msra.mxu0 0
        %4005 = vmatprep.subr.bf16.mxu0 0
        %4006 = vmatpush1.bf16.msra.mxu0 0
        %4007 = vmatprep.subr.bf16.mxu0 0
        %4008 = vmatpush1.bf16.msra.mxu0 0
        %4009 = vmatprep.subr.bf16.mxu0 0
        %4010 = vmatpush1.bf16.msra.mxu0 0
        %4011 = vmatprep.mubr.bf16.mxu0 0
        %4012 = vmatmul.mubr.bf16.gmra.mrb[0].mxu0 %v3977
        %v4013 = vpop.f32.mrb[0].mxu0
        %v4014 = vadd.f32 0.0, %v4013
        %v4015 = vpop.f32.mrb[0].mxu0
        %v4016 = vpop.f32.mrb[0].mxu0
        %v4017 = vadd.f32 0.0, %v4016
        %v4018 = vpop.f32.mrb[0].mxu0
        %4019 = vdwg.mxu0
        %v4021 = vsel %vm2167, %v3926, 0
        %4023 = vmatprep.subr.bf16.mxu0 0
        %4024 = vmatpush1.bf16.msra.mxu0 %v3930
        %4025 = vmatprep.subr.bf16.mxu0 0
        %4026 = vmatpush1.bf16.msra.mxu0 0
        %4027 = vmatprep.subr.bf16.mxu0 0
        %4028 = vmatpush1.bf16.msra.mxu0 0
        %4029 = vmatprep.subr.bf16.mxu0 0
        %4030 = vmatpush1.bf16.msra.mxu0 0
        %4031 = vmatprep.subr.bf16.mxu0 0
        %4032 = vmatpush1.bf16.msra.mxu0 0
        %4033 = vmatprep.subr.bf16.mxu0 0
        %4034 = vmatpush1.bf16.msra.mxu0 0
        %4035 = vmatprep.subr.bf16.mxu0 0
        %4036 = vmatpush1.bf16.msra.mxu0 0
        %4037 = vmatprep.subr.bf16.mxu0 0
        %4038 = vmatpush1.bf16.msra.mxu0 0
        %4039 = vmatprep.subr.bf16.mxu0 0
        %4040 = vmatpush1.bf16.msra.mxu0 0
        %4041 = vmatprep.subr.bf16.mxu0 0
        %4042 = vmatpush1.bf16.msra.mxu0 0
        %4043 = vmatprep.subr.bf16.mxu0 0
        %4044 = vmatpush1.bf16.msra.mxu0 0
        %4045 = vmatprep.subr.bf16.mxu0 0
        %4046 = vmatpush1.bf16.msra.mxu0 0
        %4047 = vmatprep.subr.bf16.mxu0 0
        %4048 = vmatpush1.bf16.msra.mxu0 0
        %4049 = vmatprep.subr.bf16.mxu0 0
        %4050 = vmatpush1.bf16.msra.mxu0 0
        %4051 = vmatprep.subr.bf16.mxu0 0
        %4052 = vmatpush1.bf16.msra.mxu0 0
        %4053 = vmatprep.subr.bf16.mxu0 0
        %4054 = vmatpush1.bf16.msra.mxu0 0
        %4055 = vmatprep.mubr.bf16.mxu0 0
        %4056 = vmatmul.mubr.bf16.gmra.mrb[0].mxu0 %v4021
        %v4057 = vpop.f32.mrb[0].mxu0
        %v4058 = vadd.f32 0.0, %v4057
        %v4059 = vpop.f32.mrb[0].mxu0
        %v4060 = vpop.f32.mrb[0].mxu0
        %v4061 = vadd.f32 0.0, %v4060
        %v4062 = vpop.f32.mrb[0].mxu0
        %4063 = vdwg.mxu0
        %v4065 = vsel %vm2167, %v3927, 0
        %4067 = vmatprep.subr.bf16.mxu0 0
        %4068 = vmatpush1.bf16.msra.mxu0 %v3931
        %4069 = vmatprep.subr.bf16.mxu0 0
        %4070 = vmatpush1.bf16.msra.mxu0 0
        %4071 = vmatprep.subr.bf16.mxu0 0
        %4072 = vmatpush1.bf16.msra.mxu0 0
        %4073 = vmatprep.subr.bf16.mxu0 0
        %4074 = vmatpush1.bf16.msra.mxu0 0
        %4075 = vmatprep.subr.bf16.mxu0 0
        %4076 = vmatpush1.bf16.msra.mxu0 0
        %4077 = vmatprep.subr.bf16.mxu0 0
        %4078 = vmatpush1.bf16.msra.mxu0 0
        %4079 = vmatprep.subr.bf16.mxu0 0
        %4080 = vmatpush1.bf16.msra.mxu0 0
        %4081 = vmatprep.subr.bf16.mxu0 0
        %4082 = vmatpush1.bf16.msra.mxu0 0
        %4083 = vmatprep.subr.bf16.mxu0 0
        %4084 = vmatpush1.bf16.msra.mxu0 0
        %4085 = vmatprep.subr.bf16.mxu0 0
        %4086 = vmatpush1.bf16.msra.mxu0 0
        %4087 = vmatprep.subr.bf16.mxu0 0
        %4088 = vmatpush1.bf16.msra.mxu0 0
        %4089 = vmatprep.subr.bf16.mxu0 0
        %4090 = vmatpush1.bf16.msra.mxu0 0
        %4091 = vmatprep.subr.bf16.mxu0 0
        %4092 = vmatpush1.bf16.msra.mxu0 0
        %4093 = vmatprep.subr.bf16.mxu0 0
        %4094 = vmatpush1.bf16.msra.mxu0 0
        %4095 = vmatprep.subr.bf16.mxu0 0
        %4096 = vmatpush1.bf16.msra.mxu0 0
        %4097 = vmatprep.subr.bf16.mxu0 0
        %4098 = vmatpush1.bf16.msra.mxu0 0
        %4099 = vmatprep.mubr.bf16.mxu0 0
        %4100 = vmatmul.mubr.bf16.gmra.mrb[0].mxu0 %v4065
        %v4101 = vpop.f32.mrb[0].mxu0
        %v4102 = vadd.f32 0.0, %v4101
        %v4103 = vpop.f32.mrb[0].mxu0
        %v4104 = vpop.f32.mrb[0].mxu0
        %v4105 = vadd.f32 0.0, %v4104
        %v4106 = vpop.f32.mrb[0].mxu0
        %4107 = vdwg.mxu0
        %v4108 = vcombine.low %v3970, %v4058
        %v4109 = vcombine.high %v3970, %v4058
        %v4111 = vunpack.c.l.s4 1983009808
        %v4112 = vunpack.c.0.s8 %v4111
        %v4113 = vlaneseq
        %v4114 = vshrl.u32 %v4113, 7
        %v4115 = vsub.s32 %v4112, %v4114
        %v4116 = vrot.slane %v4108, %v4115
        %v4118 = vunpack.c.l.s4 1983009808
        %v4119 = vunpack.c.0.s8 %v4118
        %v4120 = vlaneseq
        %v4121 = vshrl.u32 %v4120, 7
        %v4122 = vsub.s32 %v4119, %v4121
        %v4123 = vrot.slane %v4109, %v4122
        %v4124 = vcombine.low %v4014, %v4102
        %v4125 = vcombine.high %v4014, %v4102
        %v4127 = vunpack.c.l.s4 1983009808
        %v4128 = vunpack.c.0.s8 %v4127
        %v4129 = vlaneseq
        %v4130 = vshrl.u32 %v4129, 7
        %v4131 = vsub.s32 %v4128, %v4130
        %v4132 = vrot.slane %v4124, %v4131
        %v4134 = vunpack.c.l.s4 1983009808
        %v4135 = vunpack.c.0.s8 %v4134
        %v4136 = vlaneseq
        %v4137 = vshrl.u32 %v4136, 7
        %v4138 = vsub.s32 %v4135, %v4137
        %v4139 = vrot.slane %v4125, %v4138
        %v4140 = vcombine.low %v4116, %v4132
        %v4141 = vcombine.high %v4116, %v4132
        %v4143 = vunpack.c.l.s4 1934713408
        %v4144 = vunpack.c.0.s8 %v4143
        %v4145 = vlaneseq
        %v4146 = vshrl.u32 %v4145, 7
        %v4147 = vsub.s32 %v4144, %v4146
        %v4148 = vrot.slane %v4140, %v4147
        %v4150 = vunpack.c.l.s4 1934713408
        %v4151 = vunpack.c.0.s8 %v4150
        %v4152 = vlaneseq
        %v4153 = vshrl.u32 %v4152, 7
        %v4154 = vsub.s32 %v4151, %v4153
        %v4155 = vrot.slane %v4141, %v4154
        %v4156 = vcombine.low %v4123, %v4139
        %v4157 = vcombine.high %v4123, %v4139
        %v4159 = vunpack.c.l.s4 1934713408
        %v4160 = vunpack.c.0.s8 %v4159
        %v4161 = vlaneseq
        %v4162 = vshrl.u32 %v4161, 7
        %v4163 = vsub.s32 %v4160, %v4162
        %v4164 = vrot.slane %v4156, %v4163
        %v4166 = vunpack.c.l.s4 1934713408
        %v4167 = vunpack.c.0.s8 %v4166
        %v4168 = vlaneseq
        %v4169 = vshrl.u32 %v4168, 7
        %v4170 = vsub.s32 %v4167, %v4169
        %v4171 = vrot.slane %v4157, %v4170
        %v4172 = vcombine.high %v4148, 0.0
        %v4173 = vcombine.high %v4155, 0.0
        %v4174 = vcombine.high %v4164, 0.0
        %v4175 = vcombine.high %v4171, 0.0
        %v4176 = vcombine.low %v3973, %v4061
        %v4177 = vcombine.high %v3973, %v4061
        %v4179 = vunpack.c.l.s4 1983009808
        %v4180 = vunpack.c.0.s8 %v4179
        %v4181 = vlaneseq
        %v4182 = vshrl.u32 %v4181, 7
        %v4183 = vsub.s32 %v4180, %v4182
        %v4184 = vrot.slane %v4176, %v4183
        %v4186 = vunpack.c.l.s4 1983009808
        %v4187 = vunpack.c.0.s8 %v4186
        %v4188 = vlaneseq
        %v4189 = vshrl.u32 %v4188, 7
        %v4190 = vsub.s32 %v4187, %v4189
        %v4191 = vrot.slane %v4177, %v4190
        %v4192 = vcombine.low %v4017, %v4105
        %v4193 = vcombine.high %v4017, %v4105
        %v4195 = vunpack.c.l.s4 1983009808
        %v4196 = vunpack.c.0.s8 %v4195
        %v4197 = vlaneseq
        %v4198 = vshrl.u32 %v4197, 7
        %v4199 = vsub.s32 %v4196, %v4198
        %v4200 = vrot.slane %v4192, %v4199
        %v4202 = vunpack.c.l.s4 1983009808
        %v4203 = vunpack.c.0.s8 %v4202
        %v4204 = vlaneseq
        %v4205 = vshrl.u32 %v4204, 7
        %v4206 = vsub.s32 %v4203, %v4205
        %v4207 = vrot.slane %v4193, %v4206
        %v4208 = vcombine.low %v4184, %v4200
        %v4209 = vcombine.high %v4184, %v4200
        %v4211 = vunpack.c.l.s4 1934713408
        %v4212 = vunpack.c.0.s8 %v4211
        %v4213 = vlaneseq
        %v4214 = vshrl.u32 %v4213, 7
        %v4215 = vsub.s32 %v4212, %v4214
        %v4216 = vrot.slane %v4208, %v4215
        %v4218 = vunpack.c.l.s4 1934713408
        %v4219 = vunpack.c.0.s8 %v4218
        %v4220 = vlaneseq
        %v4221 = vshrl.u32 %v4220, 7
        %v4222 = vsub.s32 %v4219, %v4221
        %v4223 = vrot.slane %v4209, %v4222
        %v4224 = vcombine.low %v4191, %v4207
        %v4225 = vcombine.high %v4191, %v4207
        %v4227 = vunpack.c.l.s4 1934713408
        %v4228 = vunpack.c.0.s8 %v4227
        %v4229 = vlaneseq
        %v4230 = vshrl.u32 %v4229, 7
        %v4231 = vsub.s32 %v4228, %v4230
        %v4232 = vrot.slane %v4224, %v4231
        %v4234 = vunpack.c.l.s4 1934713408
        %v4235 = vunpack.c.0.s8 %v4234
        %v4236 = vlaneseq
        %v4237 = vshrl.u32 %v4236, 7
        %v4238 = vsub.s32 %v4235, %v4237
        %v4239 = vrot.slane %v4225, %v4238
        %v4240 = vcombine.high %v4216, 0.0
        %v4241 = vcombine.high %v4223, 0.0
        %v4242 = vcombine.high %v4232, 0.0
        %v4243 = vcombine.high %v4239, 0.0
        %v4244 = vcombine.low %v4148, %v4155
        %v4246 = vunpack.c.l.s4 1983009808
        %v4247 = vunpack.c.0.s8 %v4246
        %v4248 = vlaneseq
        %v4249 = vshrl.u32 %v4248, 7
        %v4250 = vsub.s32 %v4247, %v4249
        %v4251 = vrot.slane %v4244, %v4250
        %v4252 = vcombine.low %v4172, %v4173
        %v4254 = vunpack.c.l.s4 1983009808
        %v4255 = vunpack.c.0.s8 %v4254
        %v4256 = vlaneseq
        %v4257 = vshrl.u32 %v4256, 7
        %v4258 = vsub.s32 %v4255, %v4257
        %v4259 = vrot.slane %v4252, %v4258
        %v4260 = vcombine.low %v4164, %v4171
        %v4262 = vunpack.c.l.s4 1983009808
        %v4263 = vunpack.c.0.s8 %v4262
        %v4264 = vlaneseq
        %v4265 = vshrl.u32 %v4264, 7
        %v4266 = vsub.s32 %v4263, %v4265
        %v4267 = vrot.slane %v4260, %v4266
        %v4268 = vcombine.low %v4174, %v4175
        %v4270 = vunpack.c.l.s4 1983009808
        %v4271 = vunpack.c.0.s8 %v4270
        %v4272 = vlaneseq
        %v4273 = vshrl.u32 %v4272, 7
        %v4274 = vsub.s32 %v4271, %v4273
        %v4275 = vrot.slane %v4268, %v4274
        %v4276 = vcombine.low %v4251, %v4259
        %v4277 = vcombine.high %v4251, %v4259
        %v4279 = vunpack.c.l.s4 1934713408
        %v4280 = vunpack.c.0.s8 %v4279
        %v4281 = vlaneseq
        %v4282 = vshrl.u32 %v4281, 7
        %v4283 = vsub.s32 %v4280, %v4282
        %v4284 = vrot.slane %v4276, %v4283
        %v4286 = vunpack.c.l.s4 1934713408
        %v4287 = vunpack.c.0.s8 %v4286
        %v4288 = vlaneseq
        %v4289 = vshrl.u32 %v4288, 7
        %v4290 = vsub.s32 %v4287, %v4289
        %v4291 = vrot.slane %v4277, %v4290
        %v4292 = vcombine.low %v4267, %v4275
        %v4293 = vcombine.high %v4267, %v4275
        %v4295 = vunpack.c.l.s4 1934713408
        %v4296 = vunpack.c.0.s8 %v4295
        %v4297 = vlaneseq
        %v4298 = vshrl.u32 %v4297, 7
        %v4299 = vsub.s32 %v4296, %v4298
        %v4300 = vrot.slane %v4292, %v4299
        %v4302 = vunpack.c.l.s4 1934713408
        %v4303 = vunpack.c.0.s8 %v4302
        %v4304 = vlaneseq
        %v4305 = vshrl.u32 %v4304, 7
        %v4306 = vsub.s32 %v4303, %v4305
        %v4307 = vrot.slane %v4293, %v4306
        %v4308 = vcombine.low %v4284, %v4300
        %v4309 = vcombine.high %v4284, %v4300
        %v4310 = vcombine.low %v4291, %v4307
        %v4311 = vcombine.high %v4291, %v4307
        %v4312 = vcombine.low %v4216, %v4223
        %v4314 = vunpack.c.l.s4 1983009808
        %v4315 = vunpack.c.0.s8 %v4314
        %v4316 = vlaneseq
        %v4317 = vshrl.u32 %v4316, 7
        %v4318 = vsub.s32 %v4315, %v4317
        %v4319 = vrot.slane %v4312, %v4318
        %v4320 = vcombine.low %v4240, %v4241
        %v4322 = vunpack.c.l.s4 1983009808
        %v4323 = vunpack.c.0.s8 %v4322
        %v4324 = vlaneseq
        %v4325 = vshrl.u32 %v4324, 7
        %v4326 = vsub.s32 %v4323, %v4325
        %v4327 = vrot.slane %v4320, %v4326
        %v4328 = vcombine.low %v4232, %v4239
        %v4330 = vunpack.c.l.s4 1983009808
        %v4331 = vunpack.c.0.s8 %v4330
        %v4332 = vlaneseq
        %v4333 = vshrl.u32 %v4332, 7
        %v4334 = vsub.s32 %v4331, %v4333
        %v4335 = vrot.slane %v4328, %v4334
        %v4336 = vcombine.low %v4242, %v4243
        %v4338 = vunpack.c.l.s4 1983009808
        %v4339 = vunpack.c.0.s8 %v4338
        %v4340 = vlaneseq
        %v4341 = vshrl.u32 %v4340, 7
        %v4342 = vsub.s32 %v4339, %v4341
        %v4343 = vrot.slane %v4336, %v4342
        %v4344 = vcombine.low %v4319, %v4327
        %v4345 = vcombine.high %v4319, %v4327
        %v4347 = vunpack.c.l.s4 1934713408
        %v4348 = vunpack.c.0.s8 %v4347
        %v4349 = vlaneseq
        %v4350 = vshrl.u32 %v4349, 7
        %v4351 = vsub.s32 %v4348, %v4350
        %v4352 = vrot.slane %v4344, %v4351
        %v4354 = vunpack.c.l.s4 1934713408
        %v4355 = vunpack.c.0.s8 %v4354
        %v4356 = vlaneseq
        %v4357 = vshrl.u32 %v4356, 7
        %v4358 = vsub.s32 %v4355, %v4357
        %v4359 = vrot.slane %v4345, %v4358
        %v4360 = vcombine.low %v4335, %v4343
        %v4361 = vcombine.high %v4335, %v4343
        %v4363 = vunpack.c.l.s4 1934713408
        %v4364 = vunpack.c.0.s8 %v4363
        %v4365 = vlaneseq
        %v4366 = vshrl.u32 %v4365, 7
        %v4367 = vsub.s32 %v4364, %v4366
        %v4368 = vrot.slane %v4360, %v4367
        %v4370 = vunpack.c.l.s4 1934713408
        %v4371 = vunpack.c.0.s8 %v4370
        %v4372 = vlaneseq
        %v4373 = vshrl.u32 %v4372, 7
        %v4374 = vsub.s32 %v4371, %v4373
        %v4375 = vrot.slane %v4361, %v4374
        %v4376 = vcombine.low %v4352, %v4368
        %v4377 = vcombine.high %v4352, %v4368
        %v4378 = vcombine.low %v4359, %v4375
        %v4379 = vcombine.high %v4359, %v4375
        %4382 = vrot.lane.b32.xlu0 %v4309, 32
        %v4383 = vpop.permute.xlu0 %4382
        %4384 = vrot.lane.b32.xlu0 %v4377, 32
        %v4385 = vpop.permute.xlu0 %4384
        %4390 = vrot.lane.b32.xlu0 %v4310, 64
        %v4391 = vpop.permute.xlu0 %4390
        %4392 = vrot.lane.b32.xlu0 %v4378, 64
        %v4393 = vpop.permute.xlu0 %4392
        %4398 = vrot.lane.b32.xlu0 %v4311, 96
        %v4399 = vpop.permute.xlu0 %4398
        %4400 = vrot.lane.b32.xlu0 %v4379, 96
        %v4401 = vpop.permute.xlu0 %4400
        %v4404 = vsel %vm1958, %v4308, %v4383
        %v4405 = vsel %vm1958, %v4376, %v4385
        %v4406 = vsel %vm2738, %v4404, %v4391
        %v4407 = vsel %vm2738, %v4405, %v4393
        %v4408 = vsel %vm2741, %v4406, %v4399
        %v4409 = vsel %vm2741, %v4407, %v4401
        %v4410 = vpack.c.bf16 %v2743, %v2742
        %v4411 = vpack.c.bf16 %v4409, %v4408
        %v4412 = vld [vmem:[%s678] sm:$0xf]
        %v4413 = vld [vmem:[%s678 + $0x4] sm:$0xf]
        %v4414 = vld [vmem:[%s678 + $0x8] sm:$0xf]
        %v4415 = vld [vmem:[%s678 + $0xc] sm:$0xf]
        %v4416 = vld [vmem:[%s678 + $0x10] sm:$0xf]
        %v4417 = vld [vmem:[%s678 + $0x14] sm:$0xf]
        %v4418 = vld [vmem:[%s678 + $0x18] sm:$0xf]
        %v4419 = vld [vmem:[%s678 + $0x1c] sm:$0xf]
        %v4420 = vld [vmem:[%s678 + $0x20] sm:$0xf]
        %v4421 = vld [vmem:[%s678 + $0x24] sm:$0xf]
        %v4422 = vld [vmem:[%s678 + $0x28] sm:$0xf]
        %v4423 = vld [vmem:[%s678 + $0x2c] sm:$0xf]
        %v4424 = vld [vmem:[%s678 + $0x30] sm:$0xf]
        %v4425 = vld [vmem:[%s678 + $0x34] sm:$0xf]
        %v4426 = vld [vmem:[%s678 + $0x38] sm:$0xf]
        %v4427 = vld [vmem:[%s678 + $0x3c] sm:$0xf]
        %v4428 = vld [vmem:[%s681] sm:$0x1]
        %v4430 = vlaneseq
        %v4431 = vshrl.u32 %v4430, 7
        %v4432 = vsub.s32 0, %v4431
        %v4433 = vrot.slane %v4428, %v4432
        %v4451 = vunpack.c.l.b16 %v4412
        %v4452 = vunpack.c.l.b16 %v4413
        %v4453 = vunpack.c.l.b16 %v4414
        %v4454 = vunpack.c.l.b16 %v4415
        %v4455 = vunpack.c.l.b16 %v4416
        %v4456 = vunpack.c.l.b16 %v4417
        %v4457 = vunpack.c.l.b16 %v4418
        %v4458 = vunpack.c.l.b16 %v4419
        %v4459 = vunpack.c.l.b16 %v4420
        %v4460 = vunpack.c.l.b16 %v4421
        %v4461 = vunpack.c.l.b16 %v4422
        %v4462 = vunpack.c.l.b16 %v4423
        %v4463 = vunpack.c.l.b16 %v4424
        %v4464 = vunpack.c.l.b16 %v4425
        %v4465 = vunpack.c.l.b16 %v4426
        %v4466 = vunpack.c.l.b16 %v4427
        %v4467 = vpack.c.b16 %v4452, %v4451
        %v4468 = vpack.c.b16 %v4454, %v4453
        %v4469 = vpack.c.b16 %v4456, %v4455
        %v4470 = vpack.c.b16 %v4458, %v4457
        %v4471 = vpack.c.b16 %v4460, %v4459
        %v4472 = vpack.c.b16 %v4462, %v4461
        %v4473 = vpack.c.b16 %v4464, %v4463
        %v4474 = vpack.c.b16 %v4466, %v4465
        %4483 = vmatprep.subr.bf16.mxu0 0
        %4484 = vmatpush1.bf16.msra.mxu0 %v4467
        %4485 = vmatprep.subr.bf16.mxu0 0
        %4486 = vmatpush1.bf16.msra.mxu0 %v4468
        %4487 = vmatprep.subr.bf16.mxu0 0
        %4488 = vmatpush1.bf16.msra.mxu0 %v4469
        %4489 = vmatprep.subr.bf16.mxu0 0
        %4490 = vmatpush1.bf16.msra.mxu0 %v4470
        %4491 = vmatprep.subr.bf16.mxu0 0
        %4492 = vmatpush1.bf16.msra.mxu0 %v4471
        %4493 = vmatprep.subr.bf16.mxu0 0
        %4494 = vmatpush1.bf16.msra.mxu0 %v4472
        %4495 = vmatprep.subr.bf16.mxu0 0
        %4496 = vmatpush1.bf16.msra.mxu0 %v4473
        %4497 = vmatprep.subr.bf16.mxu0 0
        %4498 = vmatpush1.bf16.msra.mxu0 %v4474
        %4499 = vmatprep.subr.bf16.mxu0 0
        %4500 = vmatpush1.bf16.msra.mxu0 0
        %4501 = vmatprep.subr.bf16.mxu0 0
        %4502 = vmatpush1.bf16.msra.mxu0 0
        %4503 = vmatprep.subr.bf16.mxu0 0
        %4504 = vmatpush1.bf16.msra.mxu0 0
        %4505 = vmatprep.subr.bf16.mxu0 0
        %4506 = vmatpush1.bf16.msra.mxu0 0
        %4507 = vmatprep.subr.bf16.mxu0 0
        %4508 = vmatpush1.bf16.msra.mxu0 0
        %4509 = vmatprep.subr.bf16.mxu0 0
        %4510 = vmatpush1.bf16.msra.mxu0 0
        %4511 = vmatprep.subr.bf16.mxu0 0
        %4512 = vmatpush1.bf16.msra.mxu0 0
        %4513 = vmatprep.subr.bf16.mxu0 0
        %4514 = vmatpush1.bf16.msra.mxu0 0
        %4515 = vmatprep.mubr.bf16.mxu0 0
        %4516 = vmatmul.mubr.bf16.gmra.mrb[0].mxu0 %v4410
        %v4517 = vpop.f32.mrb[0].mxu0
        %v4518 = vadd.f32 %v4433, %v4517
        %v4519 = vpop.f32.mrb[0].mxu0
        %v4520 = vpop.f32.mrb[0].mxu0
        %v4521 = vadd.f32 %v4433, %v4520
        %v4522 = vpop.f32.mrb[0].mxu0
        %4523 = vmatprep.mubr.bf16.mxu0 0
        %4524 = vmatmul.mubr.bf16.gmra.mrb[0].mxu0 %v4411
        %v4525 = vpop.f32.mrb[0].mxu0
        %v4526 = vadd.f32 %v4433, %v4525
        %v4527 = vpop.f32.mrb[0].mxu0
        %v4528 = vpop.f32.mrb[0].mxu0
        %v4529 = vadd.f32 %v4433, %v4528
        %v4530 = vpop.f32.mrb[0].mxu0
        %4531 = vdwg.mxu0
        %v4532 = vadd.f32 %v786, %v4518
        %v4533 = vadd.f32 %v787, %v4521
        %v4534 = vadd.f32 %v788, %v4526
        %v4535 = vadd.f32 %v789, %v4529
        %v4536 = vld [vmem:[%s684] sm:$0x1]
        %v4537 = vld [vmem:[%s687] sm:$0x1]
        %4538 = vadd.xlane.f32.xlu0 %v4532
        %v4539 = vpop.xlane.xlu0 %4538
        %4540 = vadd.xlane.f32.xlu0 %v4533
        %v4541 = vpop.xlane.xlu0 %4540
        %4542 = vadd.xlane.f32.xlu0 %v4534
        %v4543 = vpop.xlane.xlu0 %4542
        %4544 = vadd.xlane.f32.xlu0 %v4535
        %v4545 = vpop.xlane.xlu0 %4544
        %v4546 = vrcp.pop 128.0
        %v4547 = vmul.f32 %v4539, %v4546
        %v4548 = vmul.f32 %v4541, %v4546
        %v4549 = vmul.f32 %v4543, %v4546
        %v4550 = vmul.f32 %v4545, %v4546
        %v4551 = vsub.f32 %v4532, %v4547
        %v4552 = vsub.f32 %v4533, %v4548
        %v4553 = vsub.f32 %v4534, %v4549
        %v4554 = vsub.f32 %v4535, %v4550
        %v4555 = vmul.f32 %v4551, %v4551
        %v4556 = vmul.f32 %v4552, %v4552
        %v4557 = vmul.f32 %v4553, %v4553
        %v4558 = vmul.f32 %v4554, %v4554
        %4559 = vadd.xlane.f32.xlu0 %v4555
        %v4560 = vpop.xlane.xlu0 %4559
        %4561 = vadd.xlane.f32.xlu0 %v4556
        %v4562 = vpop.xlane.xlu0 %4561
        %4563 = vadd.xlane.f32.xlu0 %v4557
        %v4564 = vpop.xlane.xlu0 %4563
        %4565 = vadd.xlane.f32.xlu0 %v4558
        %v4566 = vpop.xlane.xlu0 %4565
        %v4567 = vmul.f32 %v4560, %v4546
        %v4568 = vmul.f32 %v4562, %v4546
        %v4569 = vmul.f32 %v4564, %v4546
        %v4570 = vmul.f32 %v4566, %v4546
        %v4571 = vadd.f32 %v4567, 1e-12
        %v4572 = vadd.f32 %v4568, 1e-12
        %v4573 = vadd.f32 %v4569, 1e-12
        %v4574 = vadd.f32 %v4570, 1e-12
        %v4575 = vrsqrt.pop %v4571
        %v4576 = vrsqrt.pop %v4572
        %v4577 = vrsqrt.pop %v4573
        %v4578 = vrsqrt.pop %v4574
        %v4579 = vmul.f32 %v4551, %v4575
        %v4580 = vmul.f32 %v4552, %v4576
        %v4581 = vmul.f32 %v4553, %v4577
        %v4582 = vmul.f32 %v4554, %v4578
        %v4584 = vlaneseq
        %v4585 = vshrl.u32 %v4584, 7
        %v4586 = vsub.s32 0, %v4585
        %v4587 = vrot.slane %v4536, %v4586
        %v4589 = vmul.f32 %v4579, %v4587
        %v4590 = vmul.f32 %v4580, %v4587
        %v4591 = vmul.f32 %v4581, %v4587
        %v4592 = vmul.f32 %v4582, %v4587
        %v4594 = vlaneseq
        %v4595 = vshrl.u32 %v4594, 7
        %v4596 = vsub.s32 0, %v4595
        %v4597 = vrot.slane %v4537, %v4596
        %v4599 = vadd.f32 %v4589, %v4597
        %v4600 = vadd.f32 %v4590, %v4597
        %v4601 = vadd.f32 %v4591, %v4597
        %v4602 = vadd.f32 %v4592, %v4597
        %v4603 = vpack.c.bf16 %v4600, %v4599
        %v4604 = vpack.c.bf16 %v4602, %v4601
        %v4605 = vld [vmem:[%s692] sm:$0xff]
        %v4606 = vld [vmem:[%s692 + $0x8] sm:$0xff]
        %v4607 = vld [vmem:[%s692 + $0x10] sm:$0xff]
        %v4608 = vld [vmem:[%s692 + $0x18] sm:$0xff]
        %v4609 = vld [vmem:[%s692 + $0x20] sm:$0xff]
        %v4610 = vld [vmem:[%s692 + $0x28] sm:$0xff]
        %v4611 = vld [vmem:[%s692 + $0x30] sm:$0xff]
        %v4612 = vld [vmem:[%s692 + $0x38] sm:$0xff]
        %v4613 = vld [vmem:[%s692 + $0x40] sm:$0xff]
        %v4614 = vld [vmem:[%s692 + $0x48] sm:$0xff]
        %v4615 = vld [vmem:[%s692 + $0x50] sm:$0xff]
        %v4616 = vld [vmem:[%s692 + $0x58] sm:$0xff]
        %v4617 = vld [vmem:[%s692 + $0x60] sm:$0xff]
        %v4618 = vld [vmem:[%s692 + $0x68] sm:$0xff]
        %v4619 = vld [vmem:[%s692 + $0x70] sm:$0xff]
        %v4620 = vld [vmem:[%s692 + $0x78] sm:$0xff]
        %v4621 = vld [vmem:[%s696] sm:$0x3]
        %v4623 = vlaneseq
        %v4624 = vshrl.u32 %v4623, 7
        %v4625 = vsub.s32 0, %v4624
        %v4626 = vrot.slane %v4621, %v4625
        %v4627 = vlaneseq
        %v4628 = vshrl.u32 %v4627, 7
        %v4629 = vsub.s32 1, %v4628
        %v4630 = vrot.slane %v4621, %v4629
        %v4649 = vunpack.c.l.b16 %v4605
        %v4650 = vunpack.c.h.b16 %v4605
        %v4651 = vunpack.c.l.b16 %v4606
        %v4652 = vunpack.c.h.b16 %v4606
        %v4653 = vunpack.c.l.b16 %v4607
        %v4654 = vunpack.c.h.b16 %v4607
        %v4655 = vunpack.c.l.b16 %v4608
        %v4656 = vunpack.c.h.b16 %v4608
        %v4657 = vunpack.c.l.b16 %v4609
        %v4658 = vunpack.c.h.b16 %v4609
        %v4659 = vunpack.c.l.b16 %v4610
        %v4660 = vunpack.c.h.b16 %v4610
        %v4661 = vunpack.c.l.b16 %v4611
        %v4662 = vunpack.c.h.b16 %v4611
        %v4663 = vunpack.c.l.b16 %v4612
        %v4664 = vunpack.c.h.b16 %v4612
        %v4665 = vunpack.c.l.b16 %v4613
        %v4666 = vunpack.c.h.b16 %v4613
        %v4667 = vunpack.c.l.b16 %v4614
        %v4668 = vunpack.c.h.b16 %v4614
        %v4669 = vunpack.c.l.b16 %v4615
        %v4670 = vunpack.c.h.b16 %v4615
        %v4671 = vunpack.c.l.b16 %v4616
        %v4672 = vunpack.c.h.b16 %v4616
        %v4673 = vunpack.c.l.b16 %v4617
        %v4674 = vunpack.c.h.b16 %v4617
        %v4675 = vunpack.c.l.b16 %v4618
        %v4676 = vunpack.c.h.b16 %v4618
        %v4677 = vunpack.c.l.b16 %v4619
        %v4678 = vunpack.c.h.b16 %v4619
        %v4679 = vunpack.c.l.b16 %v4620
        %v4680 = vunpack.c.h.b16 %v4620
        %v4681 = vpack.c.b16 %v4651, %v4649
        %v4682 = vpack.c.b16 %v4652, %v4650
        %v4683 = vpack.c.b16 %v4655, %v4653
        %v4684 = vpack.c.b16 %v4656, %v4654
        %v4685 = vpack.c.b16 %v4659, %v4657
        %v4686 = vpack.c.b16 %v4660, %v4658
        %v4687 = vpack.c.b16 %v4663, %v4661
        %v4688 = vpack.c.b16 %v4664, %v4662
        %v4689 = vpack.c.b16 %v4667, %v4665
        %v4690 = vpack.c.b16 %v4668, %v4666
        %v4691 = vpack.c.b16 %v4671, %v4669
        %v4692 = vpack.c.b16 %v4672, %v4670
        %v4693 = vpack.c.b16 %v4675, %v4673
        %v4694 = vpack.c.b16 %v4676, %v4674
        %v4695 = vpack.c.b16 %v4679, %v4677
        %v4696 = vpack.c.b16 %v4680, %v4678
        %4713 = vmatprep.subr.bf16.mxu0 %v4682
        %4714 = vmatpush1.bf16.msra.mxu0 %v4681
        %4715 = vmatprep.subr.bf16.mxu0 %v4684
        %4716 = vmatpush1.bf16.msra.mxu0 %v4683
        %4717 = vmatprep.subr.bf16.mxu0 %v4686
        %4718 = vmatpush1.bf16.msra.mxu0 %v4685
        %4719 = vmatprep.subr.bf16.mxu0 %v4688
        %4720 = vmatpush1.bf16.msra.mxu0 %v4687
        %4721 = vmatprep.subr.bf16.mxu0 %v4690
        %4722 = vmatpush1.bf16.msra.mxu0 %v4689
        %4723 = vmatprep.subr.bf16.mxu0 %v4692
        %4724 = vmatpush1.bf16.msra.mxu0 %v4691
        %4725 = vmatprep.subr.bf16.mxu0 %v4694
        %4726 = vmatpush1.bf16.msra.mxu0 %v4693
        %4727 = vmatprep.subr.bf16.mxu0 %v4696
        %4728 = vmatpush1.bf16.msra.mxu0 %v4695
        %4729 = vmatprep.subr.bf16.mxu0 0
        %4730 = vmatpush1.bf16.msra.mxu0 0
        %4731 = vmatprep.subr.bf16.mxu0 0
        %4732 = vmatpush1.bf16.msra.mxu0 0
        %4733 = vmatprep.subr.bf16.mxu0 0
        %4734 = vmatpush1.bf16.msra.mxu0 0
        %4735 = vmatprep.subr.bf16.mxu0 0
        %4736 = vmatpush1.bf16.msra.mxu0 0
        %4737 = vmatprep.subr.bf16.mxu0 0
        %4738 = vmatpush1.bf16.msra.mxu0 0
        %4739 = vmatprep.subr.bf16.mxu0 0
        %4740 = vmatpush1.bf16.msra.mxu0 0
        %4741 = vmatprep.subr.bf16.mxu0 0
        %4742 = vmatpush1.bf16.msra.mxu0 0
        %4743 = vmatprep.subr.bf16.mxu0 0
        %4744 = vmatpush1.bf16.msra.mxu0 0
        %4745 = vmatprep.mubr.bf16.mxu0 0
        %4746 = vmatmul.mubr.bf16.gmra.mrb[0].mxu0 %v4603
        %v4747 = vpop.f32.mrb[0].mxu0
        %v4748 = vadd.f32 %v4626, %v4747
        %v4749 = vpop.f32.mrb[0].mxu0
        %v4750 = vadd.f32 %v4630, %v4749
        %v4751 = vpop.f32.mrb[0].mxu0
        %v4752 = vadd.f32 %v4626, %v4751
        %v4753 = vpop.f32.mrb[0].mxu0
        %v4754 = vadd.f32 %v4630, %v4753
        %4755 = vmatprep.mubr.bf16.mxu0 0
        %4756 = vmatmul.mubr.bf16.gmra.mrb[0].mxu0 %v4604
        %v4757 = vpop.f32.mrb[0].mxu0
        %v4758 = vadd.f32 %v4626, %v4757
        %v4759 = vpop.f32.mrb[0].mxu0
        %v4760 = vadd.f32 %v4630, %v4759
        %v4761 = vpop.f32.mrb[0].mxu0
        %v4762 = vadd.f32 %v4626, %v4761
        %v4763 = vpop.f32.mrb[0].mxu0
        %v4764 = vadd.f32 %v4630, %v4763
        %4765 = vdwg.mxu0
        %v4766 = vmul.f32 %v4748, 0.5
        %v4767 = vmul.f32 %v4750, 0.5
        %v4768 = vmul.f32 %v4752, 0.5
        %v4769 = vmul.f32 %v4754, 0.5
        %v4770 = vmul.f32 %v4758, 0.5
        %v4771 = vmul.f32 %v4760, 0.5
        %v4772 = vmul.f32 %v4762, 0.5
        %v4773 = vmul.f32 %v4764, 0.5
        %v4774 = vmul.f32 %v4748, 0.044715
        %v4775 = vmul.f32 %v4750, 0.044715
        %v4776 = vmul.f32 %v4752, 0.044715
        %v4777 = vmul.f32 %v4754, 0.044715
        %v4778 = vmul.f32 %v4758, 0.044715
        %v4779 = vmul.f32 %v4760, 0.044715
        %v4780 = vmul.f32 %v4762, 0.044715
        %v4781 = vmul.f32 %v4764, 0.044715
        %v4782 = vmul.f32 %v4774, %v4748
        %v4783 = vmul.f32 %v4775, %v4750
        %v4784 = vmul.f32 %v4776, %v4752
        %v4785 = vmul.f32 %v4777, %v4754
        %v4786 = vmul.f32 %v4778, %v4758
        %v4787 = vmul.f32 %v4779, %v4760
        %v4788 = vmul.f32 %v4780, %v4762
        %v4789 = vmul.f32 %v4781, %v4764
        %v4790 = vmul.f32 %v4782, %v4748
        %v4791 = vmul.f32 %v4783, %v4750
        %v4792 = vmul.f32 %v4784, %v4752
        %v4793 = vmul.f32 %v4785, %v4754
        %v4794 = vmul.f32 %v4786, %v4758
        %v4795 = vmul.f32 %v4787, %v4760
        %v4796 = vmul.f32 %v4788, %v4762
        %v4797 = vmul.f32 %v4789, %v4764
        %v4798 = vadd.f32 %v4748, %v4790
        %v4799 = vadd.f32 %v4750, %v4791
        %v4800 = vadd.f32 %v4752, %v4792
        %v4801 = vadd.f32 %v4754, %v4793
        %v4802 = vadd.f32 %v4758, %v4794
        %v4803 = vadd.f32 %v4760, %v4795
        %v4804 = vadd.f32 %v4762, %v4796
        %v4805 = vadd.f32 %v4764, %v4797
        %v4806 = vmul.f32 %v4798, 0.7978846
        %v4807 = vmul.f32 %v4799, 0.7978846
        %v4808 = vmul.f32 %v4800, 0.7978846
        %v4809 = vmul.f32 %v4801, 0.7978846
        %v4810 = vmul.f32 %v4802, 0.7978846
        %v4811 = vmul.f32 %v4803, 0.7978846
        %v4812 = vmul.f32 %v4804, 0.7978846
        %v4813 = vmul.f32 %v4805, 0.7978846
        %v4814 = vtanh.pop %v4806
        %v4815 = vtanh.pop %v4807
        %v4816 = vtanh.pop %v4808
        %v4817 = vtanh.pop %v4809
        %v4818 = vtanh.pop %v4810
        %v4819 = vtanh.pop %v4811
        %v4820 = vtanh.pop %v4812
        %v4821 = vtanh.pop %v4813
        %v4822 = vadd.f32 %v4814, 1.0
        %v4823 = vadd.f32 %v4815, 1.0
        %v4824 = vadd.f32 %v4816, 1.0
        %v4825 = vadd.f32 %v4817, 1.0
        %v4826 = vadd.f32 %v4818, 1.0
        %v4827 = vadd.f32 %v4819, 1.0
        %v4828 = vadd.f32 %v4820, 1.0
        %v4829 = vadd.f32 %v4821, 1.0
        %v4830 = vmul.f32 %v4766, %v4822
        %v4831 = vmul.f32 %v4767, %v4823
        %v4832 = vmul.f32 %v4768, %v4824
        %v4833 = vmul.f32 %v4769, %v4825
        %v4834 = vmul.f32 %v4770, %v4826
        %v4835 = vmul.f32 %v4771, %v4827
        %v4836 = vmul.f32 %v4772, %v4828
        %v4837 = vmul.f32 %v4773, %v4829
        %v4838 = vpack.c.bf16 %v4832, %v4830
        %v4839 = vpack.c.bf16 %v4833, %v4831
        %v4840 = vpack.c.bf16 %v4836, %v4834
        %v4841 = vpack.c.bf16 %v4837, %v4835
        %v4842 = vld [vmem:[%s580] sm:$0xf]
        %v4843 = vld [vmem:[%s580 + $0x4] sm:$0xf]
        %v4844 = vld [vmem:[%s580 + $0x8] sm:$0xf]
        %v4845 = vld [vmem:[%s580 + $0xc] sm:$0xf]
        %v4846 = vld [vmem:[%s580 + $0x10] sm:$0xf]
        %v4847 = vld [vmem:[%s580 + $0x14] sm:$0xf]
        %v4848 = vld [vmem:[%s580 + $0x18] sm:$0xf]
        %v4849 = vld [vmem:[%s580 + $0x1c] sm:$0xf]
        %v4850 = vld [vmem:[%s580 + $0x20] sm:$0xf]
        %v4851 = vld [vmem:[%s580 + $0x24] sm:$0xf]
        %v4852 = vld [vmem:[%s580 + $0x28] sm:$0xf]
        %v4853 = vld [vmem:[%s580 + $0x2c] sm:$0xf]
        %v4854 = vld [vmem:[%s580 + $0x30] sm:$0xf]
        %v4855 = vld [vmem:[%s580 + $0x34] sm:$0xf]
        %v4856 = vld [vmem:[%s580 + $0x38] sm:$0xf]
        %v4857 = vld [vmem:[%s580 + $0x3c] sm:$0xf]
        %v4858 = vld [vmem:[%s580 + $0x40] sm:$0xf]
        %v4859 = vld [vmem:[%s580 + $0x44] sm:$0xf]
        %v4860 = vld [vmem:[%s580 + $0x48] sm:$0xf]
        %v4861 = vld [vmem:[%s580 + $0x4c] sm:$0xf]
        %v4862 = vld [vmem:[%s580 + $0x50] sm:$0xf]
        %v4863 = vld [vmem:[%s580 + $0x54] sm:$0xf]
        %v4864 = vld [vmem:[%s580 + $0x58] sm:$0xf]
        %v4865 = vld [vmem:[%s580 + $0x5c] sm:$0xf]
        %v4866 = vld [vmem:[%s580 + $0x60] sm:$0xf]
        %v4867 = vld [vmem:[%s580 + $0x64] sm:$0xf]
        %v4868 = vld [vmem:[%s580 + $0x68] sm:$0xf]
        %v4869 = vld [vmem:[%s580 + $0x6c] sm:$0xf]
        %v4870 = vld [vmem:[%s580 + $0x70] sm:$0xf]
        %v4871 = vld [vmem:[%s580 + $0x74] sm:$0xf]
        %v4872 = vld [vmem:[%s580 + $0x78] sm:$0xf]
        %v4873 = vld [vmem:[%s580 + $0x7c] sm:$0xf]
        %v4874 = vld [vmem:[%s699] sm:$0x1]
        %v4876 = vlaneseq
        %v4877 = vshrl.u32 %v4876, 7
        %v4878 = vsub.s32 0, %v4877
        %v4879 = vrot.slane %v4874, %v4878
        %v4913 = vunpack.c.l.b16 %v4842
        %v4914 = vunpack.c.l.b16 %v4843
        %v4915 = vunpack.c.l.b16 %v4844
        %v4916 = vunpack.c.l.b16 %v4845
        %v4917 = vunpack.c.l.b16 %v4846
        %v4918 = vunpack.c.l.b16 %v4847
        %v4919 = vunpack.c.l.b16 %v4848
        %v4920 = vunpack.c.l.b16 %v4849
        %v4921 = vunpack.c.l.b16 %v4850
        %v4922 = vunpack.c.l.b16 %v4851
        %v4923 = vunpack.c.l.b16 %v4852
        %v4924 = vunpack.c.l.b16 %v4853
        %v4925 = vunpack.c.l.b16 %v4854
        %v4926 = vunpack.c.l.b16 %v4855
        %v4927 = vunpack.c.l.b16 %v4856
        %v4928 = vunpack.c.l.b16 %v4857
        %v4929 = vunpack.c.l.b16 %v4858
        %v4930 = vunpack.c.l.b16 %v4859
        %v4931 = vunpack.c.l.b16 %v4860
        %v4932 = vunpack.c.l.b16 %v4861
        %v4933 = vunpack.c.l.b16 %v4862
        %v4934 = vunpack.c.l.b16 %v4863
        %v4935 = vunpack.c.l.b16 %v4864
        %v4936 = vunpack.c.l.b16 %v4865
        %v4937 = vunpack.c.l.b16 %v4866
        %v4938 = vunpack.c.l.b16 %v4867
        %v4939 = vunpack.c.l.b16 %v4868
        %v4940 = vunpack.c.l.b16 %v4869
        %v4941 = vunpack.c.l.b16 %v4870
        %v4942 = vunpack.c.l.b16 %v4871
        %v4943 = vunpack.c.l.b16 %v4872
        %v4944 = vunpack.c.l.b16 %v4873
        %v4945 = vpack.c.b16 %v4914, %v4913
        %v4946 = vpack.c.b16 %v4916, %v4915
        %v4947 = vpack.c.b16 %v4918, %v4917
        %v4948 = vpack.c.b16 %v4920, %v4919
        %v4949 = vpack.c.b16 %v4922, %v4921
        %v4950 = vpack.c.b16 %v4924, %v4923
        %v4951 = vpack.c.b16 %v4926, %v4925
        %v4952 = vpack.c.b16 %v4928, %v4927
        %v4953 = vpack.c.b16 %v4930, %v4929
        %v4954 = vpack.c.b16 %v4932, %v4931
        %v4955 = vpack.c.b16 %v4934, %v4933
        %v4956 = vpack.c.b16 %v4936, %v4935
        %v4957 = vpack.c.b16 %v4938, %v4937
        %v4958 = vpack.c.b16 %v4940, %v4939
        %v4959 = vpack.c.b16 %v4942, %v4941
        %v4960 = vpack.c.b16 %v4944, %v4943
        %4977 = vmatprep.subr.bf16.mxu0 0
        %4978 = vmatpush1.bf16.msra.mxu0 %v4945
        %4979 = vmatprep.subr.bf16.mxu0 0
        %4980 = vmatpush1.bf16.msra.mxu0 %v4946
        %4981 = vmatprep.subr.bf16.mxu0 0
        %4982 = vmatpush1.bf16.msra.mxu0 %v4947
        %4983 = vmatprep.subr.bf16.mxu0 0
        %4984 = vmatpush1.bf16.msra.mxu0 %v4948
        %4985 = vmatprep.subr.bf16.mxu0 0
        %4986 = vmatpush1.bf16.msra.mxu0 %v4949
        %4987 = vmatprep.subr.bf16.mxu0 0
        %4988 = vmatpush1.bf16.msra.mxu0 %v4950
        %4989 = vmatprep.subr.bf16.mxu0 0
        %4990 = vmatpush1.bf16.msra.mxu0 %v4951
        %4991 = vmatprep.subr.bf16.mxu0 0
        %4992 = vmatpush1.bf16.msra.mxu0 %v4952
        %4993 = vmatprep.subr.bf16.mxu0 0
        %4994 = vmatpush1.bf16.msra.mxu0 %v4953
        %4995 = vmatprep.subr.bf16.mxu0 0
        %4996 = vmatpush1.bf16.msra.mxu0 %v4954
        %4997 = vmatprep.subr.bf16.mxu0 0
        %4998 = vmatpush1.bf16.msra.mxu0 %v4955
        %4999 = vmatprep.subr.bf16.mxu0 0
        %5000 = vmatpush1.bf16.msra.mxu0 %v4956
        %5001 = vmatprep.subr.bf16.mxu0 0
        %5002 = vmatpush1.bf16.msra.mxu0 %v4957
        %5003 = vmatprep.subr.bf16.mxu0 0
        %5004 = vmatpush1.bf16.msra.mxu0 %v4958
        %5005 = vmatprep.subr.bf16.mxu0 0
        %5006 = vmatpush1.bf16.msra.mxu0 %v4959
        %5007 = vmatprep.subr.bf16.mxu0 0
        %5008 = vmatpush1.bf16.msra.mxu0 %v4960
        %5009 = vmatprep.mubr.bf16.mxu0 %v4839
        %5010 = vmatmul.mubr.bf16.gmra.mrb[0].mxu0 %v4838
        %v5011 = vpop.f32.mrb[0].mxu0
        %v5012 = vadd.f32 %v4879, %v5011
        %v5013 = vpop.f32.mrb[0].mxu0
        %v5014 = vpop.f32.mrb[0].mxu0
        %v5015 = vadd.f32 %v4879, %v5014
        %v5016 = vpop.f32.mrb[0].mxu0
        %5017 = vmatprep.mubr.bf16.mxu0 %v4841
        %5018 = vmatmul.mubr.bf16.gmra.mrb[0].mxu0 %v4840
        %v5019 = vpop.f32.mrb[0].mxu0
        %v5020 = vadd.f32 %v4879, %v5019
        %v5021 = vpop.f32.mrb[0].mxu0
        %v5022 = vpop.f32.mrb[0].mxu0
        %v5023 = vadd.f32 %v4879, %v5022
        %v5024 = vpop.f32.mrb[0].mxu0
        %5025 = vdwg.mxu0
        %v5026 = vadd.f32 %v4599, %v5012
        %v5027 = vadd.f32 %v4600, %v5015
        %v5028 = vadd.f32 %v4601, %v5020
        %v5029 = vadd.f32 %v4602, %v5023
        %v5030 = vld [vmem:[%s702] sm:$0x1]
        %v5031 = vld [vmem:[%s705] sm:$0x1]
        %5032 = vadd.xlane.f32.xlu0 %v5026
        %v5033 = vpop.xlane.xlu0 %5032
        %5034 = vadd.xlane.f32.xlu0 %v5027
        %v5035 = vpop.xlane.xlu0 %5034
        %5036 = vadd.xlane.f32.xlu0 %v5028
        %v5037 = vpop.xlane.xlu0 %5036
        %5038 = vadd.xlane.f32.xlu0 %v5029
        %v5039 = vpop.xlane.xlu0 %5038
        %v5040 = vmul.f32 %v5033, %v4546
        %v5041 = vmul.f32 %v5035, %v4546
        %v5042 = vmul.f32 %v5037, %v4546
        %v5043 = vmul.f32 %v5039, %v4546
        %v5044 = vsub.f32 %v5026, %v5040
        %v5045 = vsub.f32 %v5027, %v5041
        %v5046 = vsub.f32 %v5028, %v5042
        %v5047 = vsub.f32 %v5029, %v5043
        %v5048 = vmul.f32 %v5044, %v5044
        %v5049 = vmul.f32 %v5045, %v5045
        %v5050 = vmul.f32 %v5046, %v5046
        %v5051 = vmul.f32 %v5047, %v5047
        %5052 = vadd.xlane.f32.xlu0 %v5048
        %v5053 = vpop.xlane.xlu0 %5052
        %5054 = vadd.xlane.f32.xlu0 %v5049
        %v5055 = vpop.xlane.xlu0 %5054
        %5056 = vadd.xlane.f32.xlu0 %v5050
        %v5057 = vpop.xlane.xlu0 %5056
        %5058 = vadd.xlane.f32.xlu0 %v5051
        %v5059 = vpop.xlane.xlu0 %5058
        %v5060 = vmul.f32 %v5053, %v4546
        %v5061 = vmul.f32 %v5055, %v4546
        %v5062 = vmul.f32 %v5057, %v4546
        %v5063 = vmul.f32 %v5059, %v4546
        %v5064 = vadd.f32 %v5060, 1e-12
        %v5065 = vadd.f32 %v5061, 1e-12
        %v5066 = vadd.f32 %v5062, 1e-12
        %v5067 = vadd.f32 %v5063, 1e-12
        %v5068 = vrsqrt.pop %v5064
        %v5069 = vrsqrt.pop %v5065
        %v5070 = vrsqrt.pop %v5066
        %v5071 = vrsqrt.pop %v5067
        %v5072 = vmul.f32 %v5044, %v5068
        %v5073 = vmul.f32 %v5045, %v5069
        %v5074 = vmul.f32 %v5046, %v5070
        %v5075 = vmul.f32 %v5047, %v5071
        %v5077 = vlaneseq
        %v5078 = vshrl.u32 %v5077, 7
        %v5079 = vsub.s32 0, %v5078
        %v5080 = vrot.slane %v5030, %v5079
        %v5082 = vmul.f32 %v5072, %v5080
        %v5083 = vmul.f32 %v5073, %v5080
        %v5084 = vmul.f32 %v5074, %v5080
        %v5085 = vmul.f32 %v5075, %v5080
        %v5087 = vlaneseq
        %v5088 = vshrl.u32 %v5087, 7
        %v5089 = vsub.s32 0, %v5088
        %v5090 = vrot.slane %v5031, %v5089
        %v5092 = vadd.f32 %v5082, %v5090
        %v5093 = vadd.f32 %v5083, %v5090
        %v5094 = vadd.f32 %v5084, %v5090
        %v5095 = vadd.f32 %v5085, %v5090
        %5096 = vst [vmem:[#allocation2] sm:$0xff] %v5092
        %5097 = vst [vmem:[#allocation2 + $0x8] sm:$0xff] %v5093
        %5098 = vst [vmem:[#allocation2 + $0x10] sm:$0xff] %v5094
        %5099 = vst [vmem:[#allocation2 + $0x18] sm:$0xff] %v5095
        %p5100 = scmp.eq.s32.totalorder %s31, 1
        // Predicated region
        $region93: #{bert_for_sts_forward.1} parent=83 // pred_check
          %p5101 = pneg %p5100
        $region94: #{bert_for_sts_forward.1} parent=83 // pred_check_branch
          %5103 = sbr.rel (%p5101) target = $region96
        $region95: #{bert_for_sts_forward.1} parent=83 // pred_region
          %v5105 = vsel %vm2167, %v790, 0
          %5107 = vmatprep.subr.mxu0 0.0
          %5108 = vmatpush1.msra.mxu0 %v5092
          %5109 = vmatprep.subr.mxu0 0.0
          %5110 = vmatpush1.msra.mxu0 %v5093
          %5111 = vmatprep.subr.mxu0 0.0
          %5112 = vmatpush1.msra.mxu0 0.0
          %5113 = vmatprep.subr.mxu0 0.0
          %5114 = vmatpush1.msra.mxu0 0.0
          %5115 = vmatprep.subr.mxu0 0.0
          %5116 = vmatpush1.msra.mxu0 0.0
          %5117 = vmatprep.subr.mxu0 0.0
          %5118 = vmatpush1.msra.mxu0 0.0
          %5119 = vmatprep.subr.mxu0 0.0
          %5120 = vmatpush1.msra.mxu0 0.0
          %5121 = vmatprep.subr.mxu0 0.0
          %5122 = vmatpush1.msra.mxu0 0.0
          %5123 = vmatprep.subr.mxu0 0.0
          %5124 = vmatpush1.msra.mxu0 0.0
          %5125 = vmatprep.subr.mxu0 0.0
          %5126 = vmatpush1.msra.mxu0 0.0
          %5127 = vmatprep.subr.mxu0 0.0
          %5128 = vmatpush1.msra.mxu0 0.0
          %5129 = vmatprep.subr.mxu0 0.0
          %5130 = vmatpush1.msra.mxu0 0.0
          %5131 = vmatprep.subr.mxu0 0.0
          %5132 = vmatpush1.msra.mxu0 0.0
          %5133 = vmatprep.subr.mxu0 0.0
          %5134 = vmatpush1.msra.mxu0 0.0
          %5135 = vmatprep.subr.mxu0 0.0
          %5136 = vmatpush1.msra.mxu0 0.0
          %5137 = vmatprep.subr.mxu0 0.0
          %5138 = vmatpush1.msra.mxu0 0.0
          %5139 = vmatprep.subr.mxu0 0.0
          %5140 = vmatpush1.msra.mxu0 0.0
          %5141 = vmatprep.subr.mxu0 0.0
          %5142 = vmatpush1.msra.mxu0 0.0
          %5143 = vmatprep.subr.mxu0 0.0
          %5144 = vmatpush1.msra.mxu0 0.0
          %5145 = vmatprep.subr.mxu0 0.0
          %5146 = vmatpush1.msra.mxu0 0.0
          %5147 = vmatprep.subr.mxu0 0.0
          %5148 = vmatpush1.msra.mxu0 0.0
          %5149 = vmatprep.subr.mxu0 0.0
          %5150 = vmatpush1.msra.mxu0 0.0
          %5151 = vmatprep.subr.mxu0 0.0
          %5152 = vmatpush1.msra.mxu0 0.0
          %5153 = vmatprep.subr.mxu0 0.0
          %5154 = vmatpush1.msra.mxu0 0.0
          %5155 = vmatprep.subr.mxu0 0.0
          %5156 = vmatpush1.msra.mxu0 0.0
          %5157 = vmatprep.subr.mxu0 0.0
          %5158 = vmatpush1.msra.mxu0 0.0
          %5159 = vmatprep.subr.mxu0 0.0
          %5160 = vmatpush1.msra.mxu0 0.0
          %5161 = vmatprep.subr.mxu0 0.0
          %5162 = vmatpush1.msra.mxu0 0.0
          %5163 = vmatprep.subr.mxu0 0.0
          %5164 = vmatpush1.msra.mxu0 0.0
          %5165 = vmatprep.subr.mxu0 0.0
          %5166 = vmatpush1.msra.mxu0 0.0
          %5167 = vmatprep.subr.mxu0 0.0
          %5168 = vmatpush1.msra.mxu0 0.0
          %5169 = vmatprep.subr.mxu0 0.0
          %5170 = vmatpush1.msra.mxu0 0.0
          %5171 = vmatprep.mubr.f32.mxu0 0.0
          %5172 = vmatmul.mubr.f32.gmra.mrb[0].mxu0 %v5105
          %v5173 = vpop.f32.mrb[0].mxu0
          %v5174 = vadd.f32 0.0, %v5173
          %v5175 = vpop.f32.mrb[0].mxu0
          %5176 = vdwg.mxu0
          %v5177 = vrot.slane %v790, 1
          %v5178 = vsel %vm2167, %v5177, 0
          %5180 = vmatprep.subr.mxu0 0.0
          %5181 = vmatpush1.msra.mxu0 %v5094
          %5182 = vmatprep.subr.mxu0 0.0
          %5183 = vmatpush1.msra.mxu0 %v5095
          %5184 = vmatprep.subr.mxu0 0.0
          %5185 = vmatpush1.msra.mxu0 0.0
          %5186 = vmatprep.subr.mxu0 0.0
          %5187 = vmatpush1.msra.mxu0 0.0
          %5188 = vmatprep.subr.mxu0 0.0
          %5189 = vmatpush1.msra.mxu0 0.0
          %5190 = vmatprep.subr.mxu0 0.0
          %5191 = vmatpush1.msra.mxu0 0.0
          %5192 = vmatprep.subr.mxu0 0.0
          %5193 = vmatpush1.msra.mxu0 0.0
          %5194 = vmatprep.subr.mxu0 0.0
          %5195 = vmatpush1.msra.mxu0 0.0
          %5196 = vmatprep.subr.mxu0 0.0
          %5197 = vmatpush1.msra.mxu0 0.0
          %5198 = vmatprep.subr.mxu0 0.0
          %5199 = vmatpush1.msra.mxu0 0.0
          %5200 = vmatprep.subr.mxu0 0.0
          %5201 = vmatpush1.msra.mxu0 0.0
          %5202 = vmatprep.subr.mxu0 0.0
          %5203 = vmatpush1.msra.mxu0 0.0
          %5204 = vmatprep.subr.mxu0 0.0
          %5205 = vmatpush1.msra.mxu0 0.0
          %5206 = vmatprep.subr.mxu0 0.0
          %5207 = vmatpush1.msra.mxu0 0.0
          %5208 = vmatprep.subr.mxu0 0.0
          %5209 = vmatpush1.msra.mxu0 0.0
          %5210 = vmatprep.subr.mxu0 0.0
          %5211 = vmatpush1.msra.mxu0 0.0
          %5212 = vmatprep.subr.mxu0 0.0
          %5213 = vmatpush1.msra.mxu0 0.0
          %5214 = vmatprep.subr.mxu0 0.0
          %5215 = vmatpush1.msra.mxu0 0.0
          %5216 = vmatprep.subr.mxu0 0.0
          %5217 = vmatpush1.msra.mxu0 0.0
          %5218 = vmatprep.subr.mxu0 0.0
          %5219 = vmatpush1.msra.mxu0 0.0
          %5220 = vmatprep.subr.mxu0 0.0
          %5221 = vmatpush1.msra.mxu0 0.0
          %5222 = vmatprep.subr.mxu0 0.0
          %5223 = vmatpush1.msra.mxu0 0.0
          %5224 = vmatprep.subr.mxu0 0.0
          %5225 = vmatpush1.msra.mxu0 0.0
          %5226 = vmatprep.subr.mxu0 0.0
          %5227 = vmatpush1.msra.mxu0 0.0
          %5228 = vmatprep.subr.mxu0 0.0
          %5229 = vmatpush1.msra.mxu0 0.0
          %5230 = vmatprep.subr.mxu0 0.0
          %5231 = vmatpush1.msra.mxu0 0.0
          %5232 = vmatprep.subr.mxu0 0.0
          %5233 = vmatpush1.msra.mxu0 0.0
          %5234 = vmatprep.subr.mxu0 0.0
          %5235 = vmatpush1.msra.mxu0 0.0
          %5236 = vmatprep.subr.mxu0 0.0
          %5237 = vmatpush1.msra.mxu0 0.0
          %5238 = vmatprep.subr.mxu0 0.0
          %5239 = vmatpush1.msra.mxu0 0.0
          %5240 = vmatprep.subr.mxu0 0.0
          %5241 = vmatpush1.msra.mxu0 0.0
          %5242 = vmatprep.subr.mxu0 0.0
          %5243 = vmatpush1.msra.mxu0 0.0
          %5244 = vmatprep.mubr.f32.mxu0 0.0
          %5245 = vmatmul.mubr.f32.gmra.mrb[0].mxu0 %v5178
          %v5246 = vpop.f32.mrb[0].mxu0
          %v5247 = vadd.f32 0.0, %v5246
          %v5248 = vpop.f32.mrb[0].mxu0
          %5249 = vdwg.mxu0
          %v5251 = vrot.slane %v5247, 7
          %vm5253 = vcmask 1040384
          %v5254 = vsel %vm5253, %v5174, %v5251
          %vm5255 = vcmask 123904
          %v5256 = vsel %vm5255, %v790, 0.0
          %5257 = vadd.xlane.f32.xlu0 %v5256
          %v5258 = vpop.xlane.xlu0 %5257
          %v5259 = vmax.f32 %v5258, 1e-09
          %v5260 = vrcp.pop %v5259
          %v5261 = vmul.f32 %v5254, %v5260
          %5262 = vst [vmem:[#allocation6] sm:$0x3] %v5261
        $region96: #{bert_for_sts_forward.1} parent=83 // pred_fallthru
          _
        // Predicated region
        $region97: #{bert_for_sts_forward.1} parent=83 // pred_check
          %p5263 = pneg %p440
        $region98: #{bert_for_sts_forward.1} parent=83 // pred_check_branch
          %5265 = sbr.rel (%p5263) target = $region100
        $region99: #{bert_for_sts_forward.1} parent=83 // pred_region
          %s5267 = ssub.s32 32, 32
          %5268 = vsyncadd [#allocation5], %s5267
          %s5270 = sshll.u32 [#allocation6], 4
          %s5271 = int_to_ptr.vmem [resolvable:$true] %s5270
          %5273 = dma.vmem_to_hbm [thread:$0]  %s5271, 32, %s16, [#allocation5]
        $region100: #{bert_for_sts_forward.1} parent=83 // pred_fallthru
          _
        // Predicated region
        $region101: #{bert_for_sts_forward.1} parent=83 // pred_check
          %p5274 = pneg %p440
        $region102: #{bert_for_sts_forward.1} parent=83 // pred_check_branch
          %5276 = sbr.rel (%p5274) target = $region104
        $region103: #{bert_for_sts_forward.1} parent=83 // pred_region
          %5277 = dma.done [#allocation5], 32
        $region104: #{bert_for_sts_forward.1} parent=83 // pred_fallthru
          _
      $region84: #{bert_for_sts_forward.1} parent=5 // pred_fallthru
        _
      %p5278 = scmp.le.s32.totalorder 2, %s26
      // Predicated region
      $region105: #{bert_for_sts_forward.1} parent=5 // pred_check
        %p5279 = pneg %p5278
      $region106: #{bert_for_sts_forward.1} parent=5 // pred_check_branch
        %5281 = sbr.rel (%p5279) target = $region108
      $region107: #{bert_for_sts_forward.1} parent=5 // pred_region
        %s5282 = ssub.s32 %s26, 2
      $region108: #{bert_for_sts_forward.1} parent=5 // pred_fallthru
        _
    $region6: #{bert_for_sts_forward.1} parent=1 // loop_footer
      %s30 = sadd.s32 1, %s26
    $region7: #{bert_for_sts_forward.1} parent=1 // loop_footer_branch
      %25 = sbr.rel target = $region3
    $region8: #{bert_for_sts_forward.1} parent=1 // loop_exit
      _
    %5283 = vsyncpa [#allocation4], 1
    %s5284 = scalar_lea.sflag [#allocation4], 1
    %5285 = vsyncpa %s5284, 1
    %5286 = vsyncpa [#allocation5], 1
    %s5287 = scalar_lea.sflag [#allocation5], 1
    %5288 = vsyncpa %s5287, 1

</llo_original>
